<compile_context>
chip_gen: v5e
topology: v5e:2x2
jax: 0.10.0
libtpu: 0.0.40
codegen_flags: <defaults>
</compile_context>

<pallas_src>
import functools

import jax
import jax.numpy as jnp
from jax.experimental import pallas as pl
from jax.experimental.pallas import tpu as pltpu

# ----------------------------- configuration ------------------------------
N = 8                 # batch (queue_size % batch == 0, as MoCo asserts)
C_IN = 4
H = W = 16
DIM_MLP = 32          # == online_network.fc.weight.shape[1]
OUT_DIM = 16
QUEUE_SIZE = 64
M_MOM = 0.999
T_TEMP = 0.07
KH = KW = 3
HW = H * W
TAPS = KH * KW
COLS = TAPS * C_IN    # im2col contraction width (36)
LOGITS_PAD = 128      # lane-dense padded logits width (>= 1 + QUEUE_SIZE)

_VMEM = pl.BlockSpec(memory_space=pltpu.MemorySpace.VMEM)
_SMEM = pl.BlockSpec(memory_space=pltpu.MemorySpace.SMEM)
_ANY = pl.BlockSpec(memory_space=pl.ANY)
_PARAM_KEYS = ("wc", "bc", "w1", "b1", "w2", "b2")


# ------------------------------ fused kernel -------------------------------
def _moco_fused_kernel(
    # ---- inputs ----
    ptr_ref,                                            # (1,) int32 in SMEM
    xq_ref, xk_ref,                                     # (N*HW, COLS) bf16 im2col
    wc_q_ref, bc_q_ref, w1_q_ref, b1_q_ref, w2_q_ref, b2_q_ref,   # online params
    wc_k_ref, bc_k_ref, w1_k_ref, b1_k_ref, w2_k_ref, b2_k_ref,   # target params
    queue_hbm,                                          # (QS, OUT_DIM) f32, HBM
    # ---- outputs ----
    logits_ref, qout_ref, queue_out_hbm,
    wc_t_ref, bc_t_ref, w1_t_ref, b1_t_ref, w2_t_ref, b2_t_ref,
    # ---- scratch ----
    queue_vmem, key_vmem, dma_sems,
    *, n, hw, qs, inv_t, m_mom, logits_pad,
):
    f32 = jnp.float32

    # Pull the queue into VMEM now; it is only needed for l_neg, so the DMA
    # overlaps both encoder computations.
    queue_load = pltpu.make_async_copy(queue_hbm, queue_vmem, dma_sems.at[0])
    queue_load.start()

    # ---- momentum update of the key encoder (fused, aliased outputs) ----
    def ema(t_ref, s_ref, o_ref):
        upd = m_mom * t_ref[...] + (1.0 - m_mom) * s_ref[...]
        o_ref[...] = upd
        return upd

    wc_t = ema(wc_k_ref, wc_q_ref, wc_t_ref)
    bc_t = ema(bc_k_ref, bc_q_ref, bc_t_ref)
    w1_t = ema(w1_k_ref, w1_q_ref, w1_t_ref)
    b1_t = ema(b1_k_ref, b1_q_ref, b1_t_ref)
    w2_t = ema(w2_k_ref, w2_q_ref, w2_t_ref)
    b2_t = ema(b2_k_ref, b2_q_ref, b2_t_ref)

    def encoder(cols, wc, bc, w1, b1, w2, b2):
        # conv3x3 (padding=1) as ONE im2col matmul: bf16 operands, f32 acc.
        y = jnp.dot(cols, wc.astype(jnp.bfloat16), preferred_element_type=f32)
        y = jnp.maximum(y + bc, 0.0)                                  # (n*hw, cm)
        # Global average pool: per-sample cross-sublane reductions (VPU/XLU,
        # overlaps MXU work) — slices are tile-aligned (hw % 8 == 0), no relayout.
        feats = jnp.concatenate(
            [jnp.sum(y[i * hw:(i + 1) * hw, :], axis=0, keepdims=True)
             for i in range(n)], axis=0) * (1.0 / hw)                 # (n, cm)
        hid = jnp.maximum(jnp.dot(feats, w1, preferred_element_type=f32) + b1, 0.0)
        return jnp.dot(hid, w2, preferred_element_type=f32) + b2      # (n, out_dim)

    q_out = encoder(xq_ref[...], wc_q_ref[...], bc_q_ref[...],
                    w1_q_ref[...], b1_q_ref[...], w2_q_ref[...], b2_q_ref[...])
    k_out = encoder(xk_ref[...], wc_t, bc_t, w1_t, b1_t, w2_t, b2_t)

    qout_ref[...] = q_out       # MoCo returns the UNnormalized q_out (as PyTorch)

    # F.normalize: x / max(||x||, eps) == x * rsqrt(max(||x||^2, eps^2))  (EUP)
    def l2norm(x):
        ss = jnp.sum(x * x, axis=1, keepdims=True)
        return x * jax.lax.rsqrt(jnp.maximum(ss, 1e-24))

    qn = l2norm(q_out)
    kn = l2norm(k_out)

    # ---- logits: ONE unmasked lane-dense (n, 128) store ----
    l_pos = jnp.sum(qn * kn, axis=1, keepdims=True)                    # (n, 1)
    queue_load.wait()
    l_neg = jax.lax.dot_general(                                       # (n, qs)
        qn, queue_vmem[...],
        dimension_numbers=(((1,), (1,)), ((), ())),
        preferred_element_type=f32)
    logits_ref[...] = jnp.concatenate(
        [l_pos, l_neg, jnp.zeros((n, logits_pad - 1 - qs), f32)], axis=1) * inv_t

    # ---- dequeue/enqueue: write ONLY the n new rows of the HBM queue ----
    # queue[ptr:ptr+n, :] = kn  (rows-of-keys layout; output aliases the input,
    # so untouched rows keep their values — no full-queue rewrite).
    # queue_size % batch == 0  =>  ptr + n <= qs, no wraparound (as in PyTorch).
    key_vmem[...] = kn
    ptr = pl.multiple_of(ptr_ref[0], n)
    enqueue = pltpu.make_async_copy(
        key_vmem, queue_out_hbm.at[pl.ds(ptr, n)], dma_sems.at[1])
    enqueue.start()
    enqueue.wait()


# ------------------------------ kernel wrapper ------------------------------
def _im2col(x):
    """(N, C, H, W) -> (N*H*W, KH*KW*C) bf16 patches for the padding=1 conv.

    Column order is tap-major with channels innermost, matching the
    (COLS, DIM_MLP) layout of the stored conv weight.
    """
    xt = jnp.transpose(x, (0, 2, 3, 1))                        # NHWC
    xp = jnp.pad(xt, ((0, 0), (1, 1), (1, 1), (0, 0)))
    taps = [xp[:, ki:ki + H, kj:kj + W, :] for ki in range(KH) for kj in range(KW)]
    cols = jnp.concatenate(taps, axis=-1)                      # (N, H, W, COLS)
    return cols.reshape(N * HW, COLS).astype(jnp.bfloat16)


def moco_fused_step(xq_cols, xk_cols, online, target, queue, ptr):
    kernel = functools.partial(
        _moco_fused_kernel, n=N, hw=HW, qs=QUEUE_SIZE,
        inv_t=1.0 / T_TEMP, m_mom=M_MOM, logits_pad=LOGITS_PAD)
    q_params = tuple(online[k] for k in _PARAM_KEYS)
    k_params = tuple(target[k] for k in _PARAM_KEYS)
    n_in = 3 + len(q_params) + len(k_params) + 1       # ptr, xq, xk, params, queue
    # Aliases: queue (in-place HBM update) and the six EMA-updated target params.
    aliases = {n_in - 1: 2}
    aliases.update({3 + len(q_params) + i: 3 + i for i in range(len(k_params))})
    out_shapes = (
        jax.ShapeDtypeStruct((N, LOGITS_PAD), jnp.float32),        # padded logits
        jax.ShapeDtypeStruct((N, OUT_DIM), jnp.float32),           # q_out
        jax.ShapeDtypeStruct((QUEUE_SIZE, OUT_DIM), jnp.float32),  # updated queue
    ) + tuple(jax.ShapeDtypeStruct(p.shape, p.dtype) for p in k_params)
    return pl.pallas_call(
        kernel,
        out_shape=out_shapes,
        in_specs=[_SMEM, _VMEM, _VMEM] + [_VMEM] * 12 + [_ANY],
        out_specs=(_VMEM, _VMEM, _ANY) + (_VMEM,) * len(k_params),
        scratch_shapes=[
            pltpu.VMEM((QUEUE_SIZE, OUT_DIM), jnp.float32),  # queue copy for l_neg
            pltpu.VMEM((N, OUT_DIM), jnp.float32),           # staging for enqueue DMA
            pltpu.SemaphoreType.DMA((2,)),
        ],
        input_output_aliases=aliases,
    )(ptr, xq_cols, xk_cols, *q_params, *k_params, queue)


# ------------------------------- MoCo module --------------------------------
# TODO(synk): base_encoder is user-supplied in the spec; a minimal
# conv3x3 -> ReLU -> global-avg-pool -> [Linear, ReLU, Linear] stand-in is used
# (dim_mlp = 32), matching MoCo's fc replacement.
def init_encoder_params(key):
    """Parameters stored kernel-ready (im2col-flattened conv, pre-transposed fc)."""
    ks = jax.random.split(key, 6)
    return {
        # wc[tap*C_IN + c_in, c_out] == torch_conv_weight[c_out, c_in, ki, kj]
        "wc": 0.1 * jax.random.normal(ks[0], (COLS, DIM_MLP), jnp.float32),
        "bc": 0.01 * jax.random.normal(ks[1], (1, DIM_MLP), jnp.float32),
        # fc weights stored as (in_features, out_features) == torch_weight.T
        "w1": 0.1 * jax.random.normal(ks[2], (DIM_MLP, DIM_MLP), jnp.float32),
        "b1": 0.01 * jax.random.normal(ks[3], (1, DIM_MLP), jnp.float32),
        "w2": 0.1 * jax.random.normal(ks[4], (DIM_MLP, OUT_DIM), jnp.float32),
        "b2": 0.01 * jax.random.normal(ks[5], (1, OUT_DIM), jnp.float32),
    }


def init_moco_state(key):
    k_enc, k_queue = jax.random.split(key)
    online = init_encoder_params(k_enc)
    target = jax.tree_util.tree_map(lambda p: p, online)    # param_k <- param_q
    # Queue stored rows-of-keys (QUEUE_SIZE, OUT_DIM), each key unit-norm
    # (== F.normalize(randn(out_dim, queue_size), dim=0), transposed).
    queue = jax.random.normal(k_queue, (QUEUE_SIZE, OUT_DIM), jnp.float32)
    queue = queue / jnp.linalg.norm(queue, axis=1, keepdims=True)
    return {"online": online, "target": target,
            "queue": queue, "queue_ptr": jnp.zeros((1,), jnp.int32)}


def moco_forward(state, im_q, im_k):
    batch = im_q.shape[0]
    assert QUEUE_SIZE % batch == 0          # same invariant PyTorch MoCo asserts
    online = state["online"]

    outs = moco_fused_step(_im2col(im_q), _im2col(im_k),
                           online, state["target"], state["queue"],
                           state["queue_ptr"])
    logits_pad, q_out, new_queue = outs[0], outs[1], outs[2]
    new_target = dict(zip(_PARAM_KEYS, outs[3:]))

    logits = logits_pad[:, :1 + QUEUE_SIZE]
    labels = jnp.zeros(logits.shape[0], dtype=jnp.int32)    # torch.long -> int32
    new_ptr = ((state["queue_ptr"] + batch) % QUEUE_SIZE).astype(jnp.int32)

    new_state = {"online": online, "target": new_target,
                 "queue": new_queue, "queue_ptr": new_ptr}
    return (logits, labels, q_out), new_state


# ---------------------------------- main -------------------------------------
if __name__ == "__main__":
    key = jax.random.PRNGKey(0)
    k_state, k_q, k_k = jax.random.split(key, 3)

    state = init_moco_state(k_state)
    im_q = jax.random.normal(k_q, (N, C_IN, H, W), jnp.float32)
    im_k = jax.random.normal(k_k, (N, C_IN, H, W), jnp.float32)

    (logits, labels, q_out), new_state = jax.jit(moco_forward)(state, im_q, im_k)
    jax.block_until_ready((logits, labels, q_out, new_state))

    assert logits.shape == (N, 1 + QUEUE_SIZE)
    assert labels.shape == (N,)
    assert q_out.shape == (N, OUT_DIM)
    assert new_state["queue"].shape == (QUEUE_SIZE, OUT_DIM)
    assert int(new_state["queue_ptr"][0]) == N % QUEUE_SIZE
    assert bool(jnp.all(jnp.isfinite(logits)))
    # Only the N newly-enqueued rows may change; they must be unit-norm keys.
    assert bool(jnp.allclose(new_state["queue"][N:], state["queue"][N:]))
    assert bool(jnp.allclose(jnp.linalg.norm(new_state["queue"][:N], axis=1),
                             1.0, atol=1e-3))
    print("KERNEL_OK")
</pallas_src>

<mosaic_0001>
module attributes {stable_mosaic.version = 11 : i64} {
  func.func @_moco_fused_kernel(%arg0: memref<1xi32, #tpu.memory_space<smem>>, %arg1: memref<2048x36xbf16, #tpu.memory_space<vmem>>, %arg2: memref<2048x36xbf16, #tpu.memory_space<vmem>>, %arg3: memref<36x32xf32, #tpu.memory_space<vmem>>, %arg4: memref<1x32xf32, #tpu.memory_space<vmem>>, %arg5: memref<32x32xf32, #tpu.memory_space<vmem>>, %arg6: memref<1x32xf32, #tpu.memory_space<vmem>>, %arg7: memref<32x16xf32, #tpu.memory_space<vmem>>, %arg8: memref<1x16xf32, #tpu.memory_space<vmem>>, %arg9: memref<36x32xf32, #tpu.memory_space<vmem>>, %arg10: memref<1x32xf32, #tpu.memory_space<vmem>>, %arg11: memref<32x32xf32, #tpu.memory_space<vmem>>, %arg12: memref<1x32xf32, #tpu.memory_space<vmem>>, %arg13: memref<32x16xf32, #tpu.memory_space<vmem>>, %arg14: memref<1x16xf32, #tpu.memory_space<vmem>>, %arg15: memref<64x16xf32, #tpu.memory_space<any>>, %arg16: memref<8x128xf32, #tpu.memory_space<vmem>>, %arg17: memref<8x16xf32, #tpu.memory_space<vmem>>, %arg18: memref<64x16xf32, #tpu.memory_space<any>>, %arg19: memref<36x32xf32, #tpu.memory_space<vmem>>, %arg20: memref<1x32xf32, #tpu.memory_space<vmem>>, %arg21: memref<32x32xf32, #tpu.memory_space<vmem>>, %arg22: memref<1x32xf32, #tpu.memory_space<vmem>>, %arg23: memref<32x16xf32, #tpu.memory_space<vmem>>, %arg24: memref<1x16xf32, #tpu.memory_space<vmem>>, %arg25: memref<64x16xf32, #tpu.memory_space<vmem>>, %arg26: memref<8x16xf32, #tpu.memory_space<vmem>>, %arg27: memref<2x!tpu.dma_semaphore, #tpu.memory_space<semaphore_mem>>) attributes {dimension_semantics = [], scalar_prefetch = 0 : i64, scratch_operands = 3 : i64, tpu.core_type = #tpu.core_type<tc>} {
    %c0_i32 = arith.constant 0 : i32
    %0 = tpu.memref_slice %arg27[%c0_i32] : memref<2x!tpu.dma_semaphore, #tpu.memory_space<semaphore_mem>> -> memref<1x!tpu.dma_semaphore, #tpu.memory_space<semaphore_mem>>
    %1 = tpu.memref_squeeze %0 : memref<1x!tpu.dma_semaphore, #tpu.memory_space<semaphore_mem>> -> memref<!tpu.dma_semaphore, #tpu.memory_space<semaphore_mem>>
    tpu.enqueue_dma source(%arg15 : memref<64x16xf32, #tpu.memory_space<any>>) target(%arg25 : memref<64x16xf32, #tpu.memory_space<vmem>>) target_semaphore(%1 : memref<!tpu.dma_semaphore, #tpu.memory_space<semaphore_mem>>)
    %c0 = arith.constant 0 : index
    %c0_0 = arith.constant 0 : index
    %2 = vector.load %arg9[%c0, %c0_0] : memref<36x32xf32, #tpu.memory_space<vmem>>, vector<36x32xf32>
    %cst = arith.constant 9.990000e-01 : f32
    %3 = vector.broadcast %cst : f32 to vector<36x32xf32>
    %4 = arith.mulf %3, %2 : vector<36x32xf32>
    %c0_1 = arith.constant 0 : index
    %c0_2 = arith.constant 0 : index
    %5 = vector.load %arg3[%c0_1, %c0_2] : memref<36x32xf32, #tpu.memory_space<vmem>>, vector<36x32xf32>
    %cst_3 = arith.constant 1.000000e-03 : f32
    %6 = vector.broadcast %cst_3 : f32 to vector<36x32xf32>
    %7 = arith.mulf %6, %5 : vector<36x32xf32>
    %8 = arith.addf %4, %7 : vector<36x32xf32>
    %c0_4 = arith.constant 0 : index
    %c0_5 = arith.constant 0 : index
    %9 = vector.load %arg19[%c0_4, %c0_5] : memref<36x32xf32, #tpu.memory_space<vmem>>, vector<36x32xf32>
    tpu.vector_store %arg19[%c0_4, %c0_5], %8 {strides = array<i32>} : memref<36x32xf32, #tpu.memory_space<vmem>>, vector<36x32xf32>,
    %c0_6 = arith.constant 0 : index
    %c0_7 = arith.constant 0 : index
    %10 = vector.load %arg10[%c0_6, %c0_7] : memref<1x32xf32, #tpu.memory_space<vmem>>, vector<1x32xf32>
    %cst_8 = arith.constant 9.990000e-01 : f32
    %11 = vector.broadcast %cst_8 : f32 to vector<1x32xf32>
    %12 = arith.mulf %11, %10 : vector<1x32xf32>
    %c0_9 = arith.constant 0 : index
    %c0_10 = arith.constant 0 : index
    %13 = vector.load %arg4[%c0_9, %c0_10] : memref<1x32xf32, #tpu.memory_space<vmem>>, vector<1x32xf32>
    %cst_11 = arith.constant 1.000000e-03 : f32
    %14 = vector.broadcast %cst_11 : f32 to vector<1x32xf32>
    %15 = arith.mulf %14, %13 : vector<1x32xf32>
    %16 = arith.addf %12, %15 : vector<1x32xf32>
    %c0_12 = arith.constant 0 : index
    %c0_13 = arith.constant 0 : index
    %17 = vector.load %arg20[%c0_12, %c0_13] : memref<1x32xf32, #tpu.memory_space<vmem>>, vector<1x32xf32>
    tpu.vector_store %arg20[%c0_12, %c0_13], %16 {strides = array<i32>} : memref<1x32xf32, #tpu.memory_space<vmem>>, vector<1x32xf32>,
    %c0_14 = arith.constant 0 : index
    %c0_15 = arith.constant 0 : index
    %18 = vector.load %arg11[%c0_14, %c0_15] : memref<32x32xf32, #tpu.memory_space<vmem>>, vector<32x32xf32>
    %cst_16 = arith.constant 9.990000e-01 : f32
    %19 = vector.broadcast %cst_16 : f32 to vector<32x32xf32>
    %20 = arith.mulf %19, %18 : vector<32x32xf32>
    %c0_17 = arith.constant 0 : index
    %c0_18 = arith.constant 0 : index
    %21 = vector.load %arg5[%c0_17, %c0_18] : memref<32x32xf32, #tpu.memory_space<vmem>>, vector<32x32xf32>
    %cst_19 = arith.constant 1.000000e-03 : f32
    %22 = vector.broadcast %cst_19 : f32 to vector<32x32xf32>
    %23 = arith.mulf %22, %21 : vector<32x32xf32>
    %24 = arith.addf %20, %23 : vector<32x32xf32>
    %c0_20 = arith.constant 0 : index
    %c0_21 = arith.constant 0 : index
    %25 = vector.load %arg21[%c0_20, %c0_21] : memref<32x32xf32, #tpu.memory_space<vmem>>, vector<32x32xf32>
    tpu.vector_store %arg21[%c0_20, %c0_21], %24 {strides = array<i32>} : memref<32x32xf32, #tpu.memory_space<vmem>>, vector<32x32xf32>,
    %c0_22 = arith.constant 0 : index
    %c0_23 = arith.constant 0 : index
    %26 = vector.load %arg12[%c0_22, %c0_23] : memref<1x32xf32, #tpu.memory_space<vmem>>, vector<1x32xf32>
    %cst_24 = arith.constant 9.990000e-01 : f32
    %27 = vector.broadcast %cst_24 : f32 to vector<1x32xf32>
    %28 = arith.mulf %27, %26 : vector<1x32xf32>
    %c0_25 = arith.constant 0 : index
    %c0_26 = arith.constant 0 : index
    %29 = vector.load %arg6[%c0_25, %c0_26] : memref<1x32xf32, #tpu.memory_space<vmem>>, vector<1x32xf32>
    %cst_27 = arith.constant 1.000000e-03 : f32
    %30 = vector.broadcast %cst_27 : f32 to vector<1x32xf32>
    %31 = arith.mulf %30, %29 : vector<1x32xf32>
    %32 = arith.addf %28, %31 : vector<1x32xf32>
    %c0_28 = arith.constant 0 : index
    %c0_29 = arith.constant 0 : index
    %33 = vector.load %arg22[%c0_28, %c0_29] : memref<1x32xf32, #tpu.memory_space<vmem>>, vector<1x32xf32>
    tpu.vector_store %arg22[%c0_28, %c0_29], %32 {strides = array<i32>} : memref<1x32xf32, #tpu.memory_space<vmem>>, vector<1x32xf32>,
    %c0_30 = arith.constant 0 : index
    %c0_31 = arith.constant 0 : index
    %34 = vector.load %arg13[%c0_30, %c0_31] : memref<32x16xf32, #tpu.memory_space<vmem>>, vector<32x16xf32>
    %cst_32 = arith.constant 9.990000e-01 : f32
    %35 = vector.broadcast %cst_32 : f32 to vector<32x16xf32>
    %36 = arith.mulf %35, %34 : vector<32x16xf32>
    %c0_33 = arith.constant 0 : index
    %c0_34 = arith.constant 0 : index
    %37 = vector.load %arg7[%c0_33, %c0_34] : memref<32x16xf32, #tpu.memory_space<vmem>>, vector<32x16xf32>
    %cst_35 = arith.constant 1.000000e-03 : f32
    %38 = vector.broadcast %cst_35 : f32 to vector<32x16xf32>
    %39 = arith.mulf %38, %37 : vector<32x16xf32>
    %40 = arith.addf %36, %39 : vector<32x16xf32>
    %c0_36 = arith.constant 0 : index
    %c0_37 = arith.constant 0 : index
    %41 = vector.load %arg23[%c0_36, %c0_37] : memref<32x16xf32, #tpu.memory_space<vmem>>, vector<32x16xf32>
    tpu.vector_store %arg23[%c0_36, %c0_37], %40 {strides = array<i32>} : memref<32x16xf32, #tpu.memory_space<vmem>>, vector<32x16xf32>,
    %c0_38 = arith.constant 0 : index
    %c0_39 = arith.constant 0 : index
    %42 = vector.load %arg14[%c0_38, %c0_39] : memref<1x16xf32, #tpu.memory_space<vmem>>, vector<1x16xf32>
    %cst_40 = arith.constant 9.990000e-01 : f32
    %43 = vector.broadcast %cst_40 : f32 to vector<1x16xf32>
    %44 = arith.mulf %43, %42 : vector<1x16xf32>
    %c0_41 = arith.constant 0 : index
    %c0_42 = arith.constant 0 : index
    %45 = vector.load %arg8[%c0_41, %c0_42] : memref<1x16xf32, #tpu.memory_space<vmem>>, vector<1x16xf32>
    %cst_43 = arith.constant 1.000000e-03 : f32
    %46 = vector.broadcast %cst_43 : f32 to vector<1x16xf32>
    %47 = arith.mulf %46, %45 : vector<1x16xf32>
    %48 = arith.addf %44, %47 : vector<1x16xf32>
    %c0_44 = arith.constant 0 : index
    %c0_45 = arith.constant 0 : index
    %49 = vector.load %arg24[%c0_44, %c0_45] : memref<1x16xf32, #tpu.memory_space<vmem>>, vector<1x16xf32>
    tpu.vector_store %arg24[%c0_44, %c0_45], %48 {strides = array<i32>} : memref<1x16xf32, #tpu.memory_space<vmem>>, vector<1x16xf32>,
    %c0_46 = arith.constant 0 : index
    %c0_47 = arith.constant 0 : index
    %50 = vector.load %arg1[%c0_46, %c0_47] : memref<2048x36xbf16, #tpu.memory_space<vmem>>, vector<2048x36xbf16>
    %c0_48 = arith.constant 0 : index
    %c0_49 = arith.constant 0 : index
    %51 = vector.load %arg3[%c0_48, %c0_49] : memref<36x32xf32, #tpu.memory_space<vmem>>, vector<36x32xf32>
    %c0_50 = arith.constant 0 : index
    %c0_51 = arith.constant 0 : index
    %52 = vector.load %arg4[%c0_50, %c0_51] : memref<1x32xf32, #tpu.memory_space<vmem>>, vector<1x32xf32>
    %c0_52 = arith.constant 0 : index
    %c0_53 = arith.constant 0 : index
    %53 = vector.load %arg5[%c0_52, %c0_53] : memref<32x32xf32, #tpu.memory_space<vmem>>, vector<32x32xf32>
    %c0_54 = arith.constant 0 : index
    %c0_55 = arith.constant 0 : index
    %54 = vector.load %arg6[%c0_54, %c0_55] : memref<1x32xf32, #tpu.memory_space<vmem>>, vector<1x32xf32>
    %c0_56 = arith.constant 0 : index
    %c0_57 = arith.constant 0 : index
    %55 = vector.load %arg7[%c0_56, %c0_57] : memref<32x16xf32, #tpu.memory_space<vmem>>, vector<32x16xf32>
    %c0_58 = arith.constant 0 : index
    %c0_59 = arith.constant 0 : index
    %56 = vector.load %arg8[%c0_58, %c0_59] : memref<1x16xf32, #tpu.memory_space<vmem>>, vector<1x16xf32>
    %57 = arith.truncf %51 : vector<36x32xf32> to vector<36x32xbf16>
    %cst_60 = arith.constant dense<0.000000e+00> : vector<2048x32xf32>
    %58 = tpu.matmul %50, %57, %cst_60 {dimension_numbers = #tpu.dot_dimension_numbers<[1], [0], [0], [1], [0, 0, 1, 1], [], []>} : vector<2048x36xbf16>, vector<36x32xbf16>, vector<2048x32xf32> -> vector<2048x32xf32>
    %59 = vector.broadcast %52 : vector<1x32xf32> to vector<2048x32xf32>
    %60 = arith.addf %58, %59 : vector<2048x32xf32>
    %cst_61 = arith.constant 0.000000e+00 : f32
    %61 = vector.broadcast %cst_61 : f32 to vector<2048x32xf32>
    %62 = arith.maximumf %60, %61 : vector<2048x32xf32>
    %63 = vector.extract_strided_slice %62 {offsets = [0, 0], sizes = [256, 32], strides = [1, 1]} : vector<2048x32xf32> to vector<256x32xf32>
    %cst_62 = arith.constant dense<0.000000e+00> : vector<32xf32>
    %64 = vector.multi_reduction <add>, %63, %cst_62 [0] : vector<256x32xf32> to vector<32xf32>
    %65 = vector.shape_cast %64 : vector<32xf32> to vector<1x32xf32>
    %66 = vector.extract_strided_slice %62 {offsets = [256, 0], sizes = [256, 32], strides = [1, 1]} : vector<2048x32xf32> to vector<256x32xf32>
    %cst_63 = arith.constant dense<0.000000e+00> : vector<32xf32>
    %67 = vector.multi_reduction <add>, %66, %cst_63 [0] : vector<256x32xf32> to vector<32xf32>
    %68 = vector.shape_cast %67 : vector<32xf32> to vector<1x32xf32>
    %69 = vector.extract_strided_slice %62 {offsets = [512, 0], sizes = [256, 32], strides = [1, 1]} : vector<2048x32xf32> to vector<256x32xf32>
    %cst_64 = arith.constant dense<0.000000e+00> : vector<32xf32>
    %70 = vector.multi_reduction <add>, %69, %cst_64 [0] : vector<256x32xf32> to vector<32xf32>
    %71 = vector.shape_cast %70 : vector<32xf32> to vector<1x32xf32>
    %72 = vector.extract_strided_slice %62 {offsets = [768, 0], sizes = [256, 32], strides = [1, 1]} : vector<2048x32xf32> to vector<256x32xf32>
    %cst_65 = arith.constant dense<0.000000e+00> : vector<32xf32>
    %73 = vector.multi_reduction <add>, %72, %cst_65 [0] : vector<256x32xf32> to vector<32xf32>
    %74 = vector.shape_cast %73 : vector<32xf32> to vector<1x32xf32>
    %75 = vector.extract_strided_slice %62 {offsets = [1024, 0], sizes = [256, 32], strides = [1, 1]} : vector<2048x32xf32> to vector<256x32xf32>
    %cst_66 = arith.constant dense<0.000000e+00> : vector<32xf32>
    %76 = vector.multi_reduction <add>, %75, %cst_66 [0] : vector<256x32xf32> to vector<32xf32>
    %77 = vector.shape_cast %76 : vector<32xf32> to vector<1x32xf32>
    %78 = vector.extract_strided_slice %62 {offsets = [1280, 0], sizes = [256, 32], strides = [1, 1]} : vector<2048x32xf32> to vector<256x32xf32>
    %cst_67 = arith.constant dense<0.000000e+00> : vector<32xf32>
    %79 = vector.multi_reduction <add>, %78, %cst_67 [0] : vector<256x32xf32> to vector<32xf32>
    %80 = vector.shape_cast %79 : vector<32xf32> to vector<1x32xf32>
    %81 = vector.extract_strided_slice %62 {offsets = [1536, 0], sizes = [256, 32], strides = [1, 1]} : vector<2048x32xf32> to vector<256x32xf32>
    %cst_68 = arith.constant dense<0.000000e+00> : vector<32xf32>
    %82 = vector.multi_reduction <add>, %81, %cst_68 [0] : vector<256x32xf32> to vector<32xf32>
    %83 = vector.shape_cast %82 : vector<32xf32> to vector<1x32xf32>
    %84 = vector.extract_strided_slice %62 {offsets = [1792, 0], sizes = [256, 32], strides = [1, 1]} : vector<2048x32xf32> to vector<256x32xf32>
    %cst_69 = arith.constant dense<0.000000e+00> : vector<32xf32>
    %85 = vector.multi_reduction <add>, %84, %cst_69 [0] : vector<256x32xf32> to vector<32xf32>
    %86 = vector.shape_cast %85 : vector<32xf32> to vector<1x32xf32>
    %87 = tpu.concatenate %65, %68, %71, %74, %77, %80, %83, %86 in 0 : vector<1x32xf32>, vector<1x32xf32>, vector<1x32xf32>, vector<1x32xf32>, vector<1x32xf32>, vector<1x32xf32>, vector<1x32xf32>, vector<1x32xf32> -> vector<8x32xf32>
    %cst_70 = arith.constant 3.906250e-03 : f32
    %88 = vector.broadcast %cst_70 : f32 to vector<8x32xf32>
    %89 = arith.mulf %87, %88 : vector<8x32xf32>
    %cst_71 = arith.constant dense<0.000000e+00> : vector<8x32xf32>
    %90 = tpu.matmul %89, %53, %cst_71 {dimension_numbers = #tpu.dot_dimension_numbers<[1], [0], [0], [1], [0, 0, 1, 1], [], []>} : vector<8x32xf32>, vector<32x32xf32>, vector<8x32xf32> -> vector<8x32xf32>
    %91 = vector.broadcast %54 : vector<1x32xf32> to vector<8x32xf32>
    %92 = arith.addf %90, %91 : vector<8x32xf32>
    %cst_72 = arith.constant 0.000000e+00 : f32
    %93 = vector.broadcast %cst_72 : f32 to vector<8x32xf32>
    %94 = arith.maximumf %92, %93 : vector<8x32xf32>
    %cst_73 = arith.constant dense<0.000000e+00> : vector<8x16xf32>
    %95 = tpu.matmul %94, %55, %cst_73 {dimension_numbers = #tpu.dot_dimension_numbers<[1], [0], [0], [1], [0, 0, 1, 1], [], []>} : vector<8x32xf32>, vector<32x16xf32>, vector<8x16xf32> -> vector<8x16xf32>
    %96 = vector.broadcast %56 : vector<1x16xf32> to vector<8x16xf32>
    %97 = arith.addf %95, %96 : vector<8x16xf32>
    %c0_74 = arith.constant 0 : index
    %c0_75 = arith.constant 0 : index
    %98 = vector.load %arg2[%c0_74, %c0_75] : memref<2048x36xbf16, #tpu.memory_space<vmem>>, vector<2048x36xbf16>
    %99 = arith.truncf %8 : vector<36x32xf32> to vector<36x32xbf16>
    %cst_76 = arith.constant dense<0.000000e+00> : vector<2048x32xf32>
    %100 = tpu.matmul %98, %99, %cst_76 {dimension_numbers = #tpu.dot_dimension_numbers<[1], [0], [0], [1], [0, 0, 1, 1], [], []>} : vector<2048x36xbf16>, vector<36x32xbf16>, vector<2048x32xf32> -> vector<2048x32xf32>
    %101 = vector.broadcast %16 : vector<1x32xf32> to vector<2048x32xf32>
    %102 = arith.addf %100, %101 : vector<2048x32xf32>
    %cst_77 = arith.constant 0.000000e+00 : f32
    %103 = vector.broadcast %cst_77 : f32 to vector<2048x32xf32>
    %104 = arith.maximumf %102, %103 : vector<2048x32xf32>
    %105 = vector.extract_strided_slice %104 {offsets = [0, 0], sizes = [256, 32], strides = [1, 1]} : vector<2048x32xf32> to vector<256x32xf32>
    %cst_78 = arith.constant dense<0.000000e+00> : vector<32xf32>
    %106 = vector.multi_reduction <add>, %105, %cst_78 [0] : vector<256x32xf32> to vector<32xf32>
    %107 = vector.shape_cast %106 : vector<32xf32> to vector<1x32xf32>
    %108 = vector.extract_strided_slice %104 {offsets = [256, 0], sizes = [256, 32], strides = [1, 1]} : vector<2048x32xf32> to vector<256x32xf32>
    %cst_79 = arith.constant dense<0.000000e+00> : vector<32xf32>
    %109 = vector.multi_reduction <add>, %108, %cst_79 [0] : vector<256x32xf32> to vector<32xf32>
    %110 = vector.shape_cast %109 : vector<32xf32> to vector<1x32xf32>
    %111 = vector.extract_strided_slice %104 {offsets = [512, 0], sizes = [256, 32], strides = [1, 1]} : vector<2048x32xf32> to vector<256x32xf32>
    %cst_80 = arith.constant dense<0.000000e+00> : vector<32xf32>
    %112 = vector.multi_reduction <add>, %111, %cst_80 [0] : vector<256x32xf32> to vector<32xf32>
    %113 = vector.shape_cast %112 : vector<32xf32> to vector<1x32xf32>
    %114 = vector.extract_strided_slice %104 {offsets = [768, 0], sizes = [256, 32], strides = [1, 1]} : vector<2048x32xf32> to vector<256x32xf32>
    %cst_81 = arith.constant dense<0.000000e+00> : vector<32xf32>
    %115 = vector.multi_reduction <add>, %114, %cst_81 [0] : vector<256x32xf32> to vector<32xf32>
    %116 = vector.shape_cast %115 : vector<32xf32> to vector<1x32xf32>
    %117 = vector.extract_strided_slice %104 {offsets = [1024, 0], sizes = [256, 32], strides = [1, 1]} : vector<2048x32xf32> to vector<256x32xf32>
    %cst_82 = arith.constant dense<0.000000e+00> : vector<32xf32>
    %118 = vector.multi_reduction <add>, %117, %cst_82 [0] : vector<256x32xf32> to vector<32xf32>
    %119 = vector.shape_cast %118 : vector<32xf32> to vector<1x32xf32>
    %120 = vector.extract_strided_slice %104 {offsets = [1280, 0], sizes = [256, 32], strides = [1, 1]} : vector<2048x32xf32> to vector<256x32xf32>
    %cst_83 = arith.constant dense<0.000000e+00> : vector<32xf32>
    %121 = vector.multi_reduction <add>, %120, %cst_83 [0] : vector<256x32xf32> to vector<32xf32>
    %122 = vector.shape_cast %121 : vector<32xf32> to vector<1x32xf32>
    %123 = vector.extract_strided_slice %104 {offsets = [1536, 0], sizes = [256, 32], strides = [1, 1]} : vector<2048x32xf32> to vector<256x32xf32>
    %cst_84 = arith.constant dense<0.000000e+00> : vector<32xf32>
    %124 = vector.multi_reduction <add>, %123, %cst_84 [0] : vector<256x32xf32> to vector<32xf32>
    %125 = vector.shape_cast %124 : vector<32xf32> to vector<1x32xf32>
    %126 = vector.extract_strided_slice %104 {offsets = [1792, 0], sizes = [256, 32], strides = [1, 1]} : vector<2048x32xf32> to vector<256x32xf32>
    %cst_85 = arith.constant dense<0.000000e+00> : vector<32xf32>
    %127 = vector.multi_reduction <add>, %126, %cst_85 [0] : vector<256x32xf32> to vector<32xf32>
    %128 = vector.shape_cast %127 : vector<32xf32> to vector<1x32xf32>
    %129 = tpu.concatenate %107, %110, %113, %116, %119, %122, %125, %128 in 0 : vector<1x32xf32>, vector<1x32xf32>, vector<1x32xf32>, vector<1x32xf32>, vector<1x32xf32>, vector<1x32xf32>, vector<1x32xf32>, vector<1x32xf32> -> vector<8x32xf32>
    %cst_86 = arith.constant 3.906250e-03 : f32
    %130 = vector.broadcast %cst_86 : f32 to vector<8x32xf32>
    %131 = arith.mulf %129, %130 : vector<8x32xf32>
    %cst_87 = arith.constant dense<0.000000e+00> : vector<8x32xf32>
    %132 = tpu.matmul %131, %24, %cst_87 {dimension_numbers = #tpu.dot_dimension_numbers<[1], [0], [0], [1], [0, 0, 1, 1], [], []>} : vector<8x32xf32>, vector<32x32xf32>, vector<8x32xf32> -> vector<8x32xf32>
    %133 = vector.broadcast %32 : vector<1x32xf32> to vector<8x32xf32>
    %134 = arith.addf %132, %133 : vector<8x32xf32>
    %cst_88 = arith.constant 0.000000e+00 : f32
    %135 = vector.broadcast %cst_88 : f32 to vector<8x32xf32>
    %136 = arith.maximumf %134, %135 : vector<8x32xf32>
    %cst_89 = arith.constant dense<0.000000e+00> : vector<8x16xf32>
    %137 = tpu.matmul %136, %40, %cst_89 {dimension_numbers = #tpu.dot_dimension_numbers<[1], [0], [0], [1], [0, 0, 1, 1], [], []>} : vector<8x32xf32>, vector<32x16xf32>, vector<8x16xf32> -> vector<8x16xf32>
    %138 = vector.broadcast %48 : vector<1x16xf32> to vector<8x16xf32>
    %139 = arith.addf %137, %138 : vector<8x16xf32>
    %c0_90 = arith.constant 0 : index
    %c0_91 = arith.constant 0 : index
    %140 = vector.load %arg17[%c0_90, %c0_91] : memref<8x16xf32, #tpu.memory_space<vmem>>, vector<8x16xf32>
    tpu.vector_store %arg17[%c0_90, %c0_91], %97 {strides = array<i32>} : memref<8x16xf32, #tpu.memory_space<vmem>>, vector<8x16xf32>,
    %141 = arith.mulf %97, %97 : vector<8x16xf32>
    %cst_92 = arith.constant dense<0.000000e+00> : vector<8xf32>
    %142 = vector.multi_reduction <add>, %141, %cst_92 [1] : vector<8x16xf32> to vector<8xf32>
    %143 = vector.shape_cast %142 : vector<8xf32> to vector<8x1xf32>
    %cst_93 = arith.constant 1.000000e-24 : f32
    %144 = vector.broadcast %cst_93 : f32 to vector<8x1xf32>
    %145 = arith.maximumf %143, %144 : vector<8x1xf32>
    %146 = math.rsqrt %145 : vector<8x1xf32>
    %147 = vector.broadcast %146 : vector<8x1xf32> to vector<8x16xf32>
    %148 = arith.mulf %97, %147 : vector<8x16xf32>
    %149 = arith.mulf %139, %139 : vector<8x16xf32>
    %cst_94 = arith.constant dense<0.000000e+00> : vector<8xf32>
    %150 = vector.multi_reduction <add>, %149, %cst_94 [1] : vector<8x16xf32> to vector<8xf32>
    %151 = vector.shape_cast %150 : vector<8xf32> to vector<8x1xf32>
    %cst_95 = arith.constant 1.000000e-24 : f32
    %152 = vector.broadcast %cst_95 : f32 to vector<8x1xf32>
    %153 = arith.maximumf %151, %152 : vector<8x1xf32>
    %154 = math.rsqrt %153 : vector<8x1xf32>
    %155 = vector.broadcast %154 : vector<8x1xf32> to vector<8x16xf32>
    %156 = arith.mulf %139, %155 : vector<8x16xf32>
    %157 = arith.mulf %148, %156 : vector<8x16xf32>
    %cst_96 = arith.constant dense<0.000000e+00> : vector<8xf32>
    %158 = vector.multi_reduction <add>, %157, %cst_96 [1] : vector<8x16xf32> to vector<8xf32>
    %159 = vector.shape_cast %158 : vector<8xf32> to vector<8x1xf32>
    %c0_i32_97 = arith.constant 0 : i32
    %160 = tpu.memref_slice %arg27[%c0_i32_97] : memref<2x!tpu.dma_semaphore, #tpu.memory_space<semaphore_mem>> -> memref<1x!tpu.dma_semaphore, #tpu.memory_space<semaphore_mem>>
    %161 = tpu.memref_squeeze %160 : memref<1x!tpu.dma_semaphore, #tpu.memory_space<semaphore_mem>> -> memref<!tpu.dma_semaphore, #tpu.memory_space<semaphore_mem>>
    tpu.wait_dma2 semaphore(%161 : memref<!tpu.dma_semaphore, #tpu.memory_space<semaphore_mem>>) src(%arg15 : memref<64x16xf32, #tpu.memory_space<any>>) dst(%arg25 : memref<64x16xf32, #tpu.memory_space<vmem>>)
    %c0_98 = arith.constant 0 : index
    %c0_99 = arith.constant 0 : index
    %162 = vector.load %arg25[%c0_98, %c0_99] : memref<64x16xf32, #tpu.memory_space<vmem>>, vector<64x16xf32>
    %cst_100 = arith.constant dense<0.000000e+00> : vector<8x64xf32>
    %163 = tpu.matmul %148, %162, %cst_100 {dimension_numbers = #tpu.dot_dimension_numbers<[1], [1], [0], [0], [0, 0, 1, 0], [], []>} : vector<8x16xf32>, vector<64x16xf32>, vector<8x64xf32> -> vector<8x64xf32>
    %cst_101 = arith.constant 0.000000e+00 : f32
    %164 = vector.broadcast %cst_101 : f32 to vector<8x63xf32>
    %165 = tpu.concatenate %159, %163, %164 in 1 : vector<8x1xf32>, vector<8x64xf32>, vector<8x63xf32> -> vector<8x128xf32>
    %cst_102 = arith.constant 14.2857141 : f32
    %166 = vector.broadcast %cst_102 : f32 to vector<8x128xf32>
    %167 = arith.mulf %165, %166 : vector<8x128xf32>
    %c0_103 = arith.constant 0 : index
    %c0_104 = arith.constant 0 : index
    %168 = vector.load %arg16[%c0_103, %c0_104] : memref<8x128xf32, #tpu.memory_space<vmem>>, vector<8x128xf32>
    tpu.vector_store %arg16[%c0_103, %c0_104], %167 {strides = array<i32>} : memref<8x128xf32, #tpu.memory_space<vmem>>, vector<8x128xf32>,
    %c0_105 = arith.constant 0 : index
    %c0_106 = arith.constant 0 : index
    %169 = vector.load %arg26[%c0_105, %c0_106] : memref<8x16xf32, #tpu.memory_space<vmem>>, vector<8x16xf32>
    tpu.vector_store %arg26[%c0_105, %c0_106], %156 {strides = array<i32>} : memref<8x16xf32, #tpu.memory_space<vmem>>, vector<8x16xf32>,
    %c0_107 = arith.constant 0 : index
    %170 = memref.load %arg0[%c0_107] : memref<1xi32, #tpu.memory_space<smem>>
    %171 = tpu.assume_multiple %170, 8 : i32
    %c1_i32 = arith.constant 1 : i32
    %c0_i32_108 = arith.constant 0 : i32
    %172 = tpu.memref_slice %arg18[%171, %c0_i32_108] : memref<64x16xf32, #tpu.memory_space<any>> -> memref<8x16xf32, #tpu.memory_space<any>>
    %173 = tpu.memref_slice %arg27[%c1_i32] : memref<2x!tpu.dma_semaphore, #tpu.memory_space<semaphore_mem>> -> memref<1x!tpu.dma_semaphore, #tpu.memory_space<semaphore_mem>>
    %174 = tpu.memref_squeeze %173 : memref<1x!tpu.dma_semaphore, #tpu.memory_space<semaphore_mem>> -> memref<!tpu.dma_semaphore, #tpu.memory_space<semaphore_mem>>
    tpu.enqueue_dma source(%arg26 : memref<8x16xf32, #tpu.memory_space<vmem>>) target(%172 : memref<8x16xf32, #tpu.memory_space<any>>) target_semaphore(%174 : memref<!tpu.dma_semaphore, #tpu.memory_space<semaphore_mem>>)
    %c1_i32_109 = arith.constant 1 : i32
    %c0_i32_110 = arith.constant 0 : i32
    %175 = tpu.memref_slice %arg18[%171, %c0_i32_110] : memref<64x16xf32, #tpu.memory_space<any>> -> memref<8x16xf32, #tpu.memory_space<any>>
    %176 = tpu.memref_slice %arg27[%c1_i32_109] : memref<2x!tpu.dma_semaphore, #tpu.memory_space<semaphore_mem>> -> memref<1x!tpu.dma_semaphore, #tpu.memory_space<semaphore_mem>>
    %177 = tpu.memref_squeeze %176 : memref<1x!tpu.dma_semaphore, #tpu.memory_space<semaphore_mem>> -> memref<!tpu.dma_semaphore, #tpu.memory_space<semaphore_mem>>
    tpu.wait_dma2 semaphore(%177 : memref<!tpu.dma_semaphore, #tpu.memory_space<semaphore_mem>>) src(%arg26 : memref<8x16xf32, #tpu.memory_space<vmem>>) dst(%175 : memref<8x16xf32, #tpu.memory_space<any>>)
    return
  }
}

</mosaic_0001>

<llo_original>
// kernel: moco_forward.1
$region0: #{moco_forward.1}
  #allocation0 [shape = 'u32[]', space=smem, size = 0x4, offset = 0x4, fixed_abs, tag = 'smem constant byte address 0x4 - core index']
  #allocation1 [shape = 'u32[72,128]{1,0:T(1,128)}', space=vmem, size = 0x9000, scoped, tag = 'internal scratch']
  #allocation2 [shape = 'f32[64,16]{1,0:T(8,128)}', space=vmem, size = 0x8000, scoped, tag = 'scratch operand']
  #allocation3 [shape = 'f32[8,16]{1,0:T(8,128)}', space=vmem, size = 0x1000, scoped, tag = 'scratch operand']
  #allocation4 [shape = 's32[2]{0}', space=sflag, size = 0x8, scoped, tag = 'scratch operand']
  #allocation5 [shape = 's32[1]{0:T(128)S(6)}', space=smem, size = 0x200, scoped, tag = 'scoped memory for moco_forward.1']
  #allocation10 [shape = 's32[]', space=sflag, size = 0x4, offset = 0, fixed_abs, tag = 'sflag constant byte address 0x0 - dummy sync flag']
  #allocation11 [shape = 's32[]', space=sflag, size = 0x4, offset = 0, fixed_abs, tag = 'sflag constant byte address 0x0 - dummy sync flag']
  %s0 = inlined_call_operand.<no memory space> [shape: s32[1], index: 0, kind: input, shape index: {}]
  %s1 = inlined_call_operand.vmem [shape: bf16[2048,36], index: 1, kind: input, shape index: {}]
  %s2 = inlined_call_operand.vmem [shape: bf16[2048,36], index: 2, kind: input, shape index: {}]
  %s3 = inlined_call_operand.vmem [shape: f32[36,32], index: 3, kind: input, shape index: {}]
  %s4 = inlined_call_operand.vmem [shape: f32[1,32], index: 4, kind: input, shape index: {}]
  %s5 = inlined_call_operand.vmem [shape: f32[32,32], index: 5, kind: input, shape index: {}]
  %s6 = inlined_call_operand.vmem [shape: f32[1,32], index: 6, kind: input, shape index: {}]
  %s7 = inlined_call_operand.vmem [shape: f32[32,16], index: 7, kind: input, shape index: {}]
  %s8 = inlined_call_operand.vmem [shape: f32[1,16], index: 8, kind: input, shape index: {}]
  %s9 = inlined_call_operand.vmem [shape: f32[36,32], index: 9, kind: input, shape index: {}, may-alias: {9,19}]
  %s10 = inlined_call_operand.vmem [shape: f32[1,32], index: 10, kind: input, shape index: {}, may-alias: {10,20}]
  %s11 = inlined_call_operand.vmem [shape: f32[32,32], index: 11, kind: input, shape index: {}, may-alias: {11,21}]
  %s12 = inlined_call_operand.vmem [shape: f32[1,32], index: 12, kind: input, shape index: {}, may-alias: {12,22}]
  %s13 = inlined_call_operand.vmem [shape: f32[32,16], index: 13, kind: input, shape index: {}, may-alias: {13,23}]
  %s14 = inlined_call_operand.vmem [shape: f32[1,16], index: 14, kind: input, shape index: {}, may-alias: {14,24}]
  %s15 = inlined_call_operand.vmem [shape: f32[64,16], index: 15, kind: input, shape index: {}, may-alias: {15,18}]
  %s16 = inlined_call_operand.hbm [shape: f32[8,128], index: 16, kind: output, shape index: {0}]
  %s17 = inlined_call_operand.hbm [shape: f32[8,16], index: 17, kind: output, shape index: {1}]
  %s18 = inlined_call_operand.vmem [shape: f32[64,16], index: 18, kind: output, shape index: {2}, may-alias: {15,18}]
  %s19 = inlined_call_operand.vmem [shape: f32[36,32], index: 19, kind: output, shape index: {3}, may-alias: {9,19}]
  %s20 = inlined_call_operand.vmem [shape: f32[1,32], index: 20, kind: output, shape index: {4}, may-alias: {10,20}]
  %s21 = inlined_call_operand.vmem [shape: f32[32,32], index: 21, kind: output, shape index: {5}, may-alias: {11,21}]
  %s22 = inlined_call_operand.vmem [shape: f32[1,32], index: 22, kind: output, shape index: {6}, may-alias: {12,22}]
  %s23 = inlined_call_operand.vmem [shape: f32[32,16], index: 23, kind: output, shape index: {7}, may-alias: {13,23}]
  %s24 = inlined_call_operand.vmem [shape: f32[1,16], index: 24, kind: output, shape index: {8}, may-alias: {14,24}]
  %25 = xla_tuple %s16, %s17, %s18, %s19, %s20, %s21, %s22, %s23, %s24
  %s26 = sld [smem:[#allocation0]]
  $region179: #{moco_forward.1} parent=0
    _
  %s28 = ssub.s32 1, %s26
  %s29 = scalar_select 0, %s28, %s26
  %30 = sst [smem:[#allocation5]] %s0
  $region1: #{moco_forward.1} parent=0
    #allocation6 [shape = 'u8[4096]{0}', space=vmem, size = 0x1000, scoped, tag = 'output window, operand 0, single buffered']
    #allocation7 [shape = 's32[1]{0}', space=sflag, size = 0x4, scoped, tag = 'scoped memory for moco_forward.1']
    #allocation8 [shape = 'u8[4096]{0}', space=vmem, size = 0x1000, scoped, tag = 'output window, operand 1, single buffered']
    #allocation9 [shape = 's32[1]{0}', space=sflag, size = 0x4, scoped, tag = 'scoped memory for moco_forward.1']
    %31 = vsyncpa [#allocation7], 0
    %32 = vsyncpa [#allocation9], 0
    // Predicated region
    $region2: #{moco_forward.1} parent=1 // pred_check
      _
    $region3: #{moco_forward.1} parent=1 // pred_check_branch
      %34 = sbr.rel (0) target = $region5
    $region4: #{moco_forward.1} parent=1 // pred_region
      _
    $region5: #{moco_forward.1} parent=1 // pred_fallthru
      _
    // Predicated region
    $region6: #{moco_forward.1} parent=1 // pred_check
      _
    $region7: #{moco_forward.1} parent=1 // pred_check_branch
      %36 = sbr.rel (0) target = $region9
    $region8: #{moco_forward.1} parent=1 // pred_region
      _
    $region9: #{moco_forward.1} parent=1 // pred_fallthru
      _
    // Predicated region
    $region10: #{moco_forward.1} parent=1 // pred_check
      _
    $region11: #{moco_forward.1} parent=1 // pred_check_branch
      %38 = sbr.rel (0) target = $region13
    $region12: #{moco_forward.1} parent=1 // pred_region
      _
    $region13: #{moco_forward.1} parent=1 // pred_fallthru
      _
    // Predicated region
    $region14: #{moco_forward.1} parent=1 // pred_check
      _
    $region15: #{moco_forward.1} parent=1 // pred_check_branch
      %40 = sbr.rel (0) target = $region17
    $region16: #{moco_forward.1} parent=1 // pred_region
      _
    $region17: #{moco_forward.1} parent=1 // pred_fallthru
      _
    // Predicated region
    $region18: #{moco_forward.1} parent=1 // pred_check
      _
    $region19: #{moco_forward.1} parent=1 // pred_check_branch
      %42 = sbr.rel (0) target = $region21
    $region20: #{moco_forward.1} parent=1 // pred_region
      _
    $region21: #{moco_forward.1} parent=1 // pred_fallthru
      _
    // Predicated region
    $region22: #{moco_forward.1} parent=1 // pred_check
      _
    $region23: #{moco_forward.1} parent=1 // pred_check_branch
      %44 = sbr.rel (0) target = $region25
    $region24: #{moco_forward.1} parent=1 // pred_region
      _
    $region25: #{moco_forward.1} parent=1 // pred_fallthru
      _
    // Predicated region
    $region26: #{moco_forward.1} parent=1 // pred_check
      _
    $region27: #{moco_forward.1} parent=1 // pred_check_branch
      %46 = sbr.rel (0) target = $region29
    $region28: #{moco_forward.1} parent=1 // pred_region
      _
    $region29: #{moco_forward.1} parent=1 // pred_fallthru
      _
    // Predicated region
    $region30: #{moco_forward.1} parent=1 // pred_check
      _
    $region31: #{moco_forward.1} parent=1 // pred_check_branch
      %48 = sbr.rel (0) target = $region33
    $region32: #{moco_forward.1} parent=1 // pred_region
      _
    $region33: #{moco_forward.1} parent=1 // pred_fallthru
      _
    // Predicated region
    $region34: #{moco_forward.1} parent=1 // pred_check
      _
    $region35: #{moco_forward.1} parent=1 // pred_check_branch
      %50 = sbr.rel (0) target = $region37
    $region36: #{moco_forward.1} parent=1 // pred_region
      _
    $region37: #{moco_forward.1} parent=1 // pred_fallthru
      _
    // Predicated region
    $region38: #{moco_forward.1} parent=1 // pred_check
      _
    $region39: #{moco_forward.1} parent=1 // pred_check_branch
      %52 = sbr.rel (0) target = $region41
    $region40: #{moco_forward.1} parent=1 // pred_region
      _
    $region41: #{moco_forward.1} parent=1 // pred_fallthru
      _
    // Predicated region
    $region42: #{moco_forward.1} parent=1 // pred_check
      _
    $region43: #{moco_forward.1} parent=1 // pred_check_branch
      %54 = sbr.rel (0) target = $region45
    $region44: #{moco_forward.1} parent=1 // pred_region
      _
    $region45: #{moco_forward.1} parent=1 // pred_fallthru
      _
    // Predicated region
    $region46: #{moco_forward.1} parent=1 // pred_check
      _
    $region47: #{moco_forward.1} parent=1 // pred_check_branch
      %56 = sbr.rel (0) target = $region49
    $region48: #{moco_forward.1} parent=1 // pred_region
      _
    $region49: #{moco_forward.1} parent=1 // pred_fallthru
      _
    // Predicated region
    $region50: #{moco_forward.1} parent=1 // pred_check
      _
    $region51: #{moco_forward.1} parent=1 // pred_check_branch
      %58 = sbr.rel (0) target = $region53
    $region52: #{moco_forward.1} parent=1 // pred_region
      _
    $region53: #{moco_forward.1} parent=1 // pred_fallthru
      _
    // Predicated region
    $region54: #{moco_forward.1} parent=1 // pred_check
      _
    $region55: #{moco_forward.1} parent=1 // pred_check_branch
      %60 = sbr.rel (0) target = $region57
    $region56: #{moco_forward.1} parent=1 // pred_region
      _
    $region57: #{moco_forward.1} parent=1 // pred_fallthru
      _
    // Predicated region
    $region58: #{moco_forward.1} parent=1 // pred_check
      _
    $region59: #{moco_forward.1} parent=1 // pred_check_branch
      %62 = sbr.rel (0) target = $region61
    $region60: #{moco_forward.1} parent=1 // pred_region
      _
    $region61: #{moco_forward.1} parent=1 // pred_fallthru
      _
    // Predicated region
    $region62: #{moco_forward.1} parent=1 // pred_check
      _
    $region63: #{moco_forward.1} parent=1 // pred_check_branch
      %65 = sbr.rel (0) target = $region65
    $region64: #{moco_forward.1} parent=1 // pred_region
      loop: start=0, step=1, limit=1
      $region66: #{moco_forward.1} parent=64 // loop_pre_header
        _
      $region67: #{moco_forward.1} parent=64 // loop_header
        %s67 = sphi 0, %s71
        %p68 = scmp.ge.s32.totalorder %s67, 1
        %s72 = sphi %s15, %s15
        %s73 = sphi [#allocation2], [#allocation2]
      $region68: #{moco_forward.1} parent=64 // loop_header_branch
        %70 = sbr.rel (%p68) target = $region72
      $region69: #{moco_forward.1} parent=64 // loop_body
        %v74 = vld [vmem:[%s72] sm:$0xff]
        %75 = vst [vmem:[%s73] sm:$0xff] %v74
        %v76 = vld [vmem:[%s72 + $0x8] sm:$0xff]
        %77 = vst [vmem:[%s73 + $0x8] sm:$0xff] %v76
        %v78 = vld [vmem:[%s72 + $0x10] sm:$0xff]
        %79 = vst [vmem:[%s73 + $0x10] sm:$0xff] %v78
        %v80 = vld [vmem:[%s72 + $0x18] sm:$0xff]
        %81 = vst [vmem:[%s73 + $0x18] sm:$0xff] %v80
        %v82 = vld [vmem:[%s72 + $0x20] sm:$0xff]
        %83 = vst [vmem:[%s73 + $0x20] sm:$0xff] %v82
        %v84 = vld [vmem:[%s72 + $0x28] sm:$0xff]
        %85 = vst [vmem:[%s73 + $0x28] sm:$0xff] %v84
        %v86 = vld [vmem:[%s72 + $0x30] sm:$0xff]
        %87 = vst [vmem:[%s73 + $0x30] sm:$0xff] %v86
        %v88 = vld [vmem:[%s72 + $0x38] sm:$0xff]
        %89 = vst [vmem:[%s73 + $0x38] sm:$0xff] %v88
      $region70: #{moco_forward.1} parent=64 // loop_footer
        %s71 = sadd.s32 1, %s67
      $region71: #{moco_forward.1} parent=64 // loop_footer_branch
        %66 = sbr.rel target = $region67
      $region72: #{moco_forward.1} parent=64 // loop_exit
        _
    $region65: #{moco_forward.1} parent=1 // pred_fallthru
      _
    // Predicated region
    $region73: #{moco_forward.1} parent=1 // pred_check
      _
    $region74: #{moco_forward.1} parent=1 // pred_check_branch
      %91 = sbr.rel target = $region76
    $region75: #{moco_forward.1} parent=1 // pred_region
      _
    $region76: #{moco_forward.1} parent=1 // pred_fallthru
      _
    // Predicated region
    $region77: #{moco_forward.1} parent=1 // pred_check
      _
    $region78: #{moco_forward.1} parent=1 // pred_check_branch
      %94 = sbr.rel (0) target = $region80
    $region79: #{moco_forward.1} parent=1 // pred_region
      %95 = vsyncadd [#allocation4], 1024
    $region80: #{moco_forward.1} parent=1 // pred_fallthru
      _
    %v96 = vld [vmem:[%s9] sm:$0xff]
    %v97 = vld [vmem:[%s9 + $0x8] sm:$0xff]
    %v98 = vld [vmem:[%s9 + $0x10] sm:$0xff]
    %v99 = vld [vmem:[%s9 + $0x18] sm:$0xff]
    %v100 = vld [vmem:[%s9 + $0x20] sm:$0xf]
    %v101 = vmul.f32 %v96, 0.999
    %v102 = vmul.f32 %v97, 0.999
    %v103 = vmul.f32 %v98, 0.999
    %v104 = vmul.f32 %v99, 0.999
    %v105 = vmul.f32 %v100, 0.999
    %v106 = vld [vmem:[%s3] sm:$0xff]
    %v107 = vld [vmem:[%s3 + $0x8] sm:$0xff]
    %v108 = vld [vmem:[%s3 + $0x10] sm:$0xff]
    %v109 = vld [vmem:[%s3 + $0x18] sm:$0xff]
    %v110 = vld [vmem:[%s3 + $0x20] sm:$0xf]
    %v111 = vmul.f32 %v106, 0.001
    %v112 = vmul.f32 %v107, 0.001
    %v113 = vmul.f32 %v108, 0.001
    %v114 = vmul.f32 %v109, 0.001
    %v115 = vmul.f32 %v110, 0.001
    %v116 = vadd.f32 %v101, %v111
    %v117 = vadd.f32 %v102, %v112
    %v118 = vadd.f32 %v103, %v113
    %v119 = vadd.f32 %v104, %v114
    %v120 = vadd.f32 %v105, %v115
    %vm121 = vcmask 261120
    %122 = vst.msk [vmem:[%s19] sm:$0xff] %vm121, %v116
    %123 = vst.msk [vmem:[%s19 + $0x8] sm:$0xff] %vm121, %v117
    %124 = vst.msk [vmem:[%s19 + $0x10] sm:$0xff] %vm121, %v118
    %125 = vst.msk [vmem:[%s19 + $0x18] sm:$0xff] %vm121, %v119
    %vm126 = vcmask 257024
    %127 = vst.msk [vmem:[%s19 + $0x20] sm:$0xf] %vm126, %v120
    %v128 = vld [vmem:[%s10] sm:$0x1]
    %v129 = vmul.f32 %v128, 0.999
    %v130 = vld [vmem:[%s4] sm:$0x1]
    %v131 = vmul.f32 %v130, 0.001
    %v132 = vadd.f32 %v129, %v131
    %vm133 = vcmask 253952
    %134 = vst.msk [vmem:[%s20] sm:$0x1] %vm133, %v132
    %v135 = vld [vmem:[%s11] sm:$0xff]
    %v136 = vld [vmem:[%s11 + $0x8] sm:$0xff]
    %v137 = vld [vmem:[%s11 + $0x10] sm:$0xff]
    %v138 = vld [vmem:[%s11 + $0x18] sm:$0xff]
    %v139 = vmul.f32 %v135, 0.999
    %v140 = vmul.f32 %v136, 0.999
    %v141 = vmul.f32 %v137, 0.999
    %v142 = vmul.f32 %v138, 0.999
    %v143 = vld [vmem:[%s5] sm:$0xff]
    %v144 = vld [vmem:[%s5 + $0x8] sm:$0xff]
    %v145 = vld [vmem:[%s5 + $0x10] sm:$0xff]
    %v146 = vld [vmem:[%s5 + $0x18] sm:$0xff]
    %v147 = vmul.f32 %v143, 0.001
    %v148 = vmul.f32 %v144, 0.001
    %v149 = vmul.f32 %v145, 0.001
    %v150 = vmul.f32 %v146, 0.001
    %v151 = vadd.f32 %v139, %v147
    %v152 = vadd.f32 %v140, %v148
    %v153 = vadd.f32 %v141, %v149
    %v154 = vadd.f32 %v142, %v150
    %155 = vst.msk [vmem:[%s21] sm:$0xff] %vm121, %v151
    %156 = vst.msk [vmem:[%s21 + $0x8] sm:$0xff] %vm121, %v152
    %157 = vst.msk [vmem:[%s21 + $0x10] sm:$0xff] %vm121, %v153
    %158 = vst.msk [vmem:[%s21 + $0x18] sm:$0xff] %vm121, %v154
    %v159 = vld [vmem:[%s12] sm:$0x1]
    %v160 = vmul.f32 %v159, 0.999
    %v161 = vld [vmem:[%s6] sm:$0x1]
    %v162 = vmul.f32 %v161, 0.001
    %v163 = vadd.f32 %v160, %v162
    %164 = vst.msk [vmem:[%s22] sm:$0x1] %vm133, %v163
    %v165 = vld [vmem:[%s13] sm:$0xff]
    %v166 = vld [vmem:[%s13 + $0x8] sm:$0xff]
    %v167 = vld [vmem:[%s13 + $0x10] sm:$0xff]
    %v168 = vld [vmem:[%s13 + $0x18] sm:$0xff]
    %v169 = vmul.f32 %v165, 0.999
    %v170 = vmul.f32 %v166, 0.999
    %v171 = vmul.f32 %v167, 0.999
    %v172 = vmul.f32 %v168, 0.999
    %v173 = vld [vmem:[%s7] sm:$0xff]
    %v174 = vld [vmem:[%s7 + $0x8] sm:$0xff]
    %v175 = vld [vmem:[%s7 + $0x10] sm:$0xff]
    %v176 = vld [vmem:[%s7 + $0x18] sm:$0xff]
    %v177 = vmul.f32 %v173, 0.001
    %v178 = vmul.f32 %v174, 0.001
    %v179 = vmul.f32 %v175, 0.001
    %v180 = vmul.f32 %v176, 0.001
    %v181 = vadd.f32 %v169, %v177
    %v182 = vadd.f32 %v170, %v178
    %v183 = vadd.f32 %v171, %v179
    %v184 = vadd.f32 %v172, %v180
    %vm185 = vcmask 130048
    %186 = vst.msk [vmem:[%s23] sm:$0xff] %vm185, %v181
    %187 = vst.msk [vmem:[%s23 + $0x8] sm:$0xff] %vm185, %v182
    %188 = vst.msk [vmem:[%s23 + $0x10] sm:$0xff] %vm185, %v183
    %189 = vst.msk [vmem:[%s23 + $0x18] sm:$0xff] %vm185, %v184
    %v190 = vld [vmem:[%s14] sm:$0x1]
    %v191 = vmul.f32 %v190, 0.999
    %v192 = vld [vmem:[%s8] sm:$0x1]
    %v193 = vmul.f32 %v192, 0.001
    %v194 = vadd.f32 %v191, %v193
    %vm195 = vcmask 122880
    %196 = vst.msk [vmem:[%s24] sm:$0x1] %vm195, %v194
    %v197 = vld [vmem:[%s1] sm:$0xf]
    %v198 = vld [vmem:[%s1 + $0x4] sm:$0xf]
    %v199 = vld [vmem:[%s1 + $0x8] sm:$0xf]
    %v200 = vld [vmem:[%s1 + $0xc] sm:$0xf]
    %v201 = vld [vmem:[%s1 + $0x10] sm:$0xf]
    %v202 = vld [vmem:[%s1 + $0x14] sm:$0xf]
    %v203 = vld [vmem:[%s1 + $0x18] sm:$0xf]
    %v204 = vld [vmem:[%s1 + $0x1c] sm:$0xf]
    %v205 = vld [vmem:[%s1 + $0x20] sm:$0xf]
    %v206 = vld [vmem:[%s1 + $0x24] sm:$0xf]
    %v207 = vld [vmem:[%s1 + $0x28] sm:$0xf]
    %v208 = vld [vmem:[%s1 + $0x2c] sm:$0xf]
    %v209 = vld [vmem:[%s1 + $0x30] sm:$0xf]
    %v210 = vld [vmem:[%s1 + $0x34] sm:$0xf]
    %v211 = vld [vmem:[%s1 + $0x38] sm:$0xf]
    %v212 = vld [vmem:[%s1 + $0x3c] sm:$0xf]
    %v213 = vld [vmem:[%s1 + $0x40] sm:$0xf]
    %v214 = vld [vmem:[%s1 + $0x44] sm:$0xf]
    %v215 = vld [vmem:[%s1 + $0x48] sm:$0xf]
    %v216 = vld [vmem:[%s1 + $0x4c] sm:$0xf]
    %v217 = vld [vmem:[%s1 + $0x50] sm:$0xf]
    %v218 = vld [vmem:[%s1 + $0x54] sm:$0xf]
    %v219 = vld [vmem:[%s1 + $0x58] sm:$0xf]
    %v220 = vld [vmem:[%s1 + $0x5c] sm:$0xf]
    %v221 = vld [vmem:[%s1 + $0x60] sm:$0xf]
    %v222 = vld [vmem:[%s1 + $0x64] sm:$0xf]
    %v223 = vld [vmem:[%s1 + $0x68] sm:$0xf]
    %v224 = vld [vmem:[%s1 + $0x6c] sm:$0xf]
    %v225 = vld [vmem:[%s1 + $0x70] sm:$0xf]
    %v226 = vld [vmem:[%s1 + $0x74] sm:$0xf]
    %v227 = vld [vmem:[%s1 + $0x78] sm:$0xf]
    %v228 = vld [vmem:[%s1 + $0x7c] sm:$0xf]
    %v229 = vld [vmem:[%s1 + $0x80] sm:$0xf]
    %v230 = vld [vmem:[%s1 + $0x84] sm:$0xf]
    %v231 = vld [vmem:[%s1 + $0x88] sm:$0xf]
    %v232 = vld [vmem:[%s1 + $0x8c] sm:$0xf]
    %v233 = vld [vmem:[%s1 + $0x90] sm:$0xf]
    %v234 = vld [vmem:[%s1 + $0x94] sm:$0xf]
    %v235 = vld [vmem:[%s1 + $0x98] sm:$0xf]
    %v236 = vld [vmem:[%s1 + $0x9c] sm:$0xf]
    %v237 = vld [vmem:[%s1 + $0xa0] sm:$0xf]
    %v238 = vld [vmem:[%s1 + $0xa4] sm:$0xf]
    %v239 = vld [vmem:[%s1 + $0xa8] sm:$0xf]
    %v240 = vld [vmem:[%s1 + $0xac] sm:$0xf]
    %v241 = vld [vmem:[%s1 + $0xb0] sm:$0xf]
    %v242 = vld [vmem:[%s1 + $0xb4] sm:$0xf]
    %v243 = vld [vmem:[%s1 + $0xb8] sm:$0xf]
    %v244 = vld [vmem:[%s1 + $0xbc] sm:$0xf]
    %v245 = vld [vmem:[%s1 + $0xc0] sm:$0xf]
    %v246 = vld [vmem:[%s1 + $0xc4] sm:$0xf]
    %v247 = vld [vmem:[%s1 + $0xc8] sm:$0xf]
    %v248 = vld [vmem:[%s1 + $0xcc] sm:$0xf]
    %v249 = vld [vmem:[%s1 + $0xd0] sm:$0xf]
    %v250 = vld [vmem:[%s1 + $0xd4] sm:$0xf]
    %v251 = vld [vmem:[%s1 + $0xd8] sm:$0xf]
    %v252 = vld [vmem:[%s1 + $0xdc] sm:$0xf]
    %v253 = vld [vmem:[%s1 + $0xe0] sm:$0xf]
    %v254 = vld [vmem:[%s1 + $0xe4] sm:$0xf]
    %v255 = vld [vmem:[%s1 + $0xe8] sm:$0xf]
    %v256 = vld [vmem:[%s1 + $0xec] sm:$0xf]
    %v257 = vld [vmem:[%s1 + $0xf0] sm:$0xf]
    %v258 = vld [vmem:[%s1 + $0xf4] sm:$0xf]
    %v259 = vld [vmem:[%s1 + $0xf8] sm:$0xf]
    %v260 = vld [vmem:[%s1 + $0xfc] sm:$0xf]
    %v261 = vld [vmem:[%s1 + $0x100] sm:$0xf]
    %v262 = vld [vmem:[%s1 + $0x104] sm:$0xf]
    %v263 = vld [vmem:[%s1 + $0x108] sm:$0xf]
    %v264 = vld [vmem:[%s1 + $0x10c] sm:$0xf]
    %v265 = vld [vmem:[%s1 + $0x110] sm:$0xf]
    %v266 = vld [vmem:[%s1 + $0x114] sm:$0xf]
    %v267 = vld [vmem:[%s1 + $0x118] sm:$0xf]
    %v268 = vld [vmem:[%s1 + $0x11c] sm:$0xf]
    %v269 = vld [vmem:[%s1 + $0x120] sm:$0xf]
    %v270 = vld [vmem:[%s1 + $0x124] sm:$0xf]
    %v271 = vld [vmem:[%s1 + $0x128] sm:$0xf]
    %v272 = vld [vmem:[%s1 + $0x12c] sm:$0xf]
    %v273 = vld [vmem:[%s1 + $0x130] sm:$0xf]
    %v274 = vld [vmem:[%s1 + $0x134] sm:$0xf]
    %v275 = vld [vmem:[%s1 + $0x138] sm:$0xf]
    %v276 = vld [vmem:[%s1 + $0x13c] sm:$0xf]
    %v277 = vld [vmem:[%s1 + $0x140] sm:$0xf]
    %v278 = vld [vmem:[%s1 + $0x144] sm:$0xf]
    %v279 = vld [vmem:[%s1 + $0x148] sm:$0xf]
    %v280 = vld [vmem:[%s1 + $0x14c] sm:$0xf]
    %v281 = vld [vmem:[%s1 + $0x150] sm:$0xf]
    %v282 = vld [vmem:[%s1 + $0x154] sm:$0xf]
    %v283 = vld [vmem:[%s1 + $0x158] sm:$0xf]
    %v284 = vld [vmem:[%s1 + $0x15c] sm:$0xf]
    %v285 = vld [vmem:[%s1 + $0x160] sm:$0xf]
    %v286 = vld [vmem:[%s1 + $0x164] sm:$0xf]
    %v287 = vld [vmem:[%s1 + $0x168] sm:$0xf]
    %v288 = vld [vmem:[%s1 + $0x16c] sm:$0xf]
    %v289 = vld [vmem:[%s1 + $0x170] sm:$0xf]
    %v290 = vld [vmem:[%s1 + $0x174] sm:$0xf]
    %v291 = vld [vmem:[%s1 + $0x178] sm:$0xf]
    %v292 = vld [vmem:[%s1 + $0x17c] sm:$0xf]
    %v293 = vld [vmem:[%s1 + $0x180] sm:$0xf]
    %v294 = vld [vmem:[%s1 + $0x184] sm:$0xf]
    %v295 = vld [vmem:[%s1 + $0x188] sm:$0xf]
    %v296 = vld [vmem:[%s1 + $0x18c] sm:$0xf]
    %v297 = vld [vmem:[%s1 + $0x190] sm:$0xf]
    %v298 = vld [vmem:[%s1 + $0x194] sm:$0xf]
    %v299 = vld [vmem:[%s1 + $0x198] sm:$0xf]
    %v300 = vld [vmem:[%s1 + $0x19c] sm:$0xf]
    %v301 = vld [vmem:[%s1 + $0x1a0] sm:$0xf]
    %v302 = vld [vmem:[%s1 + $0x1a4] sm:$0xf]
    %v303 = vld [vmem:[%s1 + $0x1a8] sm:$0xf]
    %v304 = vld [vmem:[%s1 + $0x1ac] sm:$0xf]
    %v305 = vld [vmem:[%s1 + $0x1b0] sm:$0xf]
    %v306 = vld [vmem:[%s1 + $0x1b4] sm:$0xf]
    %v307 = vld [vmem:[%s1 + $0x1b8] sm:$0xf]
    %v308 = vld [vmem:[%s1 + $0x1bc] sm:$0xf]
    %v309 = vld [vmem:[%s1 + $0x1c0] sm:$0xf]
    %v310 = vld [vmem:[%s1 + $0x1c4] sm:$0xf]
    %v311 = vld [vmem:[%s1 + $0x1c8] sm:$0xf]
    %v312 = vld [vmem:[%s1 + $0x1cc] sm:$0xf]
    %v313 = vld [vmem:[%s1 + $0x1d0] sm:$0xf]
    %v314 = vld [vmem:[%s1 + $0x1d4] sm:$0xf]
    %v315 = vld [vmem:[%s1 + $0x1d8] sm:$0xf]
    %v316 = vld [vmem:[%s1 + $0x1dc] sm:$0xf]
    %v317 = vld [vmem:[%s1 + $0x1e0] sm:$0xf]
    %v318 = vld [vmem:[%s1 + $0x1e4] sm:$0xf]
    %v319 = vld [vmem:[%s1 + $0x1e8] sm:$0xf]
    %v320 = vld [vmem:[%s1 + $0x1ec] sm:$0xf]
    %v321 = vld [vmem:[%s1 + $0x1f0] sm:$0xf]
    %v322 = vld [vmem:[%s1 + $0x1f4] sm:$0xf]
    %v323 = vld [vmem:[%s1 + $0x1f8] sm:$0xf]
    %v324 = vld [vmem:[%s1 + $0x1fc] sm:$0xf]
    %v325 = vld [vmem:[%s1 + $0x200] sm:$0xf]
    %v326 = vld [vmem:[%s1 + $0x204] sm:$0xf]
    %v327 = vld [vmem:[%s1 + $0x208] sm:$0xf]
    %v328 = vld [vmem:[%s1 + $0x20c] sm:$0xf]
    %v329 = vld [vmem:[%s1 + $0x210] sm:$0xf]
    %v330 = vld [vmem:[%s1 + $0x214] sm:$0xf]
    %v331 = vld [vmem:[%s1 + $0x218] sm:$0xf]
    %v332 = vld [vmem:[%s1 + $0x21c] sm:$0xf]
    %v333 = vld [vmem:[%s1 + $0x220] sm:$0xf]
    %v334 = vld [vmem:[%s1 + $0x224] sm:$0xf]
    %v335 = vld [vmem:[%s1 + $0x228] sm:$0xf]
    %v336 = vld [vmem:[%s1 + $0x22c] sm:$0xf]
    %v337 = vld [vmem:[%s1 + $0x230] sm:$0xf]
    %v338 = vld [vmem:[%s1 + $0x234] sm:$0xf]
    %v339 = vld [vmem:[%s1 + $0x238] sm:$0xf]
    %v340 = vld [vmem:[%s1 + $0x23c] sm:$0xf]
    %v341 = vld [vmem:[%s1 + $0x240] sm:$0xf]
    %v342 = vld [vmem:[%s1 + $0x244] sm:$0xf]
    %v343 = vld [vmem:[%s1 + $0x248] sm:$0xf]
    %v344 = vld [vmem:[%s1 + $0x24c] sm:$0xf]
    %v345 = vld [vmem:[%s1 + $0x250] sm:$0xf]
    %v346 = vld [vmem:[%s1 + $0x254] sm:$0xf]
    %v347 = vld [vmem:[%s1 + $0x258] sm:$0xf]
    %v348 = vld [vmem:[%s1 + $0x25c] sm:$0xf]
    %v349 = vld [vmem:[%s1 + $0x260] sm:$0xf]
    %v350 = vld [vmem:[%s1 + $0x264] sm:$0xf]
    %v351 = vld [vmem:[%s1 + $0x268] sm:$0xf]
    %v352 = vld [vmem:[%s1 + $0x26c] sm:$0xf]
    %v353 = vld [vmem:[%s1 + $0x270] sm:$0xf]
    %v354 = vld [vmem:[%s1 + $0x274] sm:$0xf]
    %v355 = vld [vmem:[%s1 + $0x278] sm:$0xf]
    %v356 = vld [vmem:[%s1 + $0x27c] sm:$0xf]
    %v357 = vld [vmem:[%s1 + $0x280] sm:$0xf]
    %v358 = vld [vmem:[%s1 + $0x284] sm:$0xf]
    %v359 = vld [vmem:[%s1 + $0x288] sm:$0xf]
    %v360 = vld [vmem:[%s1 + $0x28c] sm:$0xf]
    %v361 = vld [vmem:[%s1 + $0x290] sm:$0xf]
    %v362 = vld [vmem:[%s1 + $0x294] sm:$0xf]
    %v363 = vld [vmem:[%s1 + $0x298] sm:$0xf]
    %v364 = vld [vmem:[%s1 + $0x29c] sm:$0xf]
    %v365 = vld [vmem:[%s1 + $0x2a0] sm:$0xf]
    %v366 = vld [vmem:[%s1 + $0x2a4] sm:$0xf]
    %v367 = vld [vmem:[%s1 + $0x2a8] sm:$0xf]
    %v368 = vld [vmem:[%s1 + $0x2ac] sm:$0xf]
    %v369 = vld [vmem:[%s1 + $0x2b0] sm:$0xf]
    %v370 = vld [vmem:[%s1 + $0x2b4] sm:$0xf]
    %v371 = vld [vmem:[%s1 + $0x2b8] sm:$0xf]
    %v372 = vld [vmem:[%s1 + $0x2bc] sm:$0xf]
    %v373 = vld [vmem:[%s1 + $0x2c0] sm:$0xf]
    %v374 = vld [vmem:[%s1 + $0x2c4] sm:$0xf]
    %v375 = vld [vmem:[%s1 + $0x2c8] sm:$0xf]
    %v376 = vld [vmem:[%s1 + $0x2cc] sm:$0xf]
    %v377 = vld [vmem:[%s1 + $0x2d0] sm:$0xf]
    %v378 = vld [vmem:[%s1 + $0x2d4] sm:$0xf]
    %v379 = vld [vmem:[%s1 + $0x2d8] sm:$0xf]
    %v380 = vld [vmem:[%s1 + $0x2dc] sm:$0xf]
    %v381 = vld [vmem:[%s1 + $0x2e0] sm:$0xf]
    %v382 = vld [vmem:[%s1 + $0x2e4] sm:$0xf]
    %v383 = vld [vmem:[%s1 + $0x2e8] sm:$0xf]
    %v384 = vld [vmem:[%s1 + $0x2ec] sm:$0xf]
    %v385 = vld [vmem:[%s1 + $0x2f0] sm:$0xf]
    %v386 = vld [vmem:[%s1 + $0x2f4] sm:$0xf]
    %v387 = vld [vmem:[%s1 + $0x2f8] sm:$0xf]
    %v388 = vld [vmem:[%s1 + $0x2fc] sm:$0xf]
    %v389 = vld [vmem:[%s1 + $0x300] sm:$0xf]
    %v390 = vld [vmem:[%s1 + $0x304] sm:$0xf]
    %v391 = vld [vmem:[%s1 + $0x308] sm:$0xf]
    %v392 = vld [vmem:[%s1 + $0x30c] sm:$0xf]
    %v393 = vld [vmem:[%s1 + $0x310] sm:$0xf]
    %v394 = vld [vmem:[%s1 + $0x314] sm:$0xf]
    %v395 = vld [vmem:[%s1 + $0x318] sm:$0xf]
    %v396 = vld [vmem:[%s1 + $0x31c] sm:$0xf]
    %v397 = vld [vmem:[%s1 + $0x320] sm:$0xf]
    %v398 = vld [vmem:[%s1 + $0x324] sm:$0xf]
    %v399 = vld [vmem:[%s1 + $0x328] sm:$0xf]
    %v400 = vld [vmem:[%s1 + $0x32c] sm:$0xf]
    %v401 = vld [vmem:[%s1 + $0x330] sm:$0xf]
    %v402 = vld [vmem:[%s1 + $0x334] sm:$0xf]
    %v403 = vld [vmem:[%s1 + $0x338] sm:$0xf]
    %v404 = vld [vmem:[%s1 + $0x33c] sm:$0xf]
    %v405 = vld [vmem:[%s1 + $0x340] sm:$0xf]
    %v406 = vld [vmem:[%s1 + $0x344] sm:$0xf]
    %v407 = vld [vmem:[%s1 + $0x348] sm:$0xf]
    %v408 = vld [vmem:[%s1 + $0x34c] sm:$0xf]
    %v409 = vld [vmem:[%s1 + $0x350] sm:$0xf]
    %v410 = vld [vmem:[%s1 + $0x354] sm:$0xf]
    %v411 = vld [vmem:[%s1 + $0x358] sm:$0xf]
    %v412 = vld [vmem:[%s1 + $0x35c] sm:$0xf]
    %v413 = vld [vmem:[%s1 + $0x360] sm:$0xf]
    %v414 = vld [vmem:[%s1 + $0x364] sm:$0xf]
    %v415 = vld [vmem:[%s1 + $0x368] sm:$0xf]
    %v416 = vld [vmem:[%s1 + $0x36c] sm:$0xf]
    %v417 = vld [vmem:[%s1 + $0x370] sm:$0xf]
    %v418 = vld [vmem:[%s1 + $0x374] sm:$0xf]
    %v419 = vld [vmem:[%s1 + $0x378] sm:$0xf]
    %v420 = vld [vmem:[%s1 + $0x37c] sm:$0xf]
    %v421 = vld [vmem:[%s1 + $0x380] sm:$0xf]
    %v422 = vld [vmem:[%s1 + $0x384] sm:$0xf]
    %v423 = vld [vmem:[%s1 + $0x388] sm:$0xf]
    %v424 = vld [vmem:[%s1 + $0x38c] sm:$0xf]
    %v425 = vld [vmem:[%s1 + $0x390] sm:$0xf]
    %v426 = vld [vmem:[%s1 + $0x394] sm:$0xf]
    %v427 = vld [vmem:[%s1 + $0x398] sm:$0xf]
    %v428 = vld [vmem:[%s1 + $0x39c] sm:$0xf]
    %v429 = vld [vmem:[%s1 + $0x3a0] sm:$0xf]
    %v430 = vld [vmem:[%s1 + $0x3a4] sm:$0xf]
    %v431 = vld [vmem:[%s1 + $0x3a8] sm:$0xf]
    %v432 = vld [vmem:[%s1 + $0x3ac] sm:$0xf]
    %v433 = vld [vmem:[%s1 + $0x3b0] sm:$0xf]
    %v434 = vld [vmem:[%s1 + $0x3b4] sm:$0xf]
    %v435 = vld [vmem:[%s1 + $0x3b8] sm:$0xf]
    %v436 = vld [vmem:[%s1 + $0x3bc] sm:$0xf]
    %v437 = vld [vmem:[%s1 + $0x3c0] sm:$0xf]
    %v438 = vld [vmem:[%s1 + $0x3c4] sm:$0xf]
    %v439 = vld [vmem:[%s1 + $0x3c8] sm:$0xf]
    %v440 = vld [vmem:[%s1 + $0x3cc] sm:$0xf]
    %v441 = vld [vmem:[%s1 + $0x3d0] sm:$0xf]
    %v442 = vld [vmem:[%s1 + $0x3d4] sm:$0xf]
    %v443 = vld [vmem:[%s1 + $0x3d8] sm:$0xf]
    %v444 = vld [vmem:[%s1 + $0x3dc] sm:$0xf]
    %v445 = vld [vmem:[%s1 + $0x3e0] sm:$0xf]
    %v446 = vld [vmem:[%s1 + $0x3e4] sm:$0xf]
    %v447 = vld [vmem:[%s1 + $0x3e8] sm:$0xf]
    %v448 = vld [vmem:[%s1 + $0x3ec] sm:$0xf]
    %v449 = vld [vmem:[%s1 + $0x3f0] sm:$0xf]
    %v450 = vld [vmem:[%s1 + $0x3f4] sm:$0xf]
    %v451 = vld [vmem:[%s1 + $0x3f8] sm:$0xf]
    %v452 = vld [vmem:[%s1 + $0x3fc] sm:$0xf]
    %v453 = vld [vmem:[%s3] sm:$0xff]
    %v454 = vld [vmem:[%s3 + $0x8] sm:$0xff]
    %v455 = vld [vmem:[%s3 + $0x10] sm:$0xff]
    %v456 = vld [vmem:[%s3 + $0x18] sm:$0xff]
    %v457 = vld [vmem:[%s3 + $0x20] sm:$0xf]
    %v458 = vld [vmem:[%s4] sm:$0x1]
    %v459 = vld [vmem:[%s5] sm:$0xff]
    %v460 = vld [vmem:[%s5 + $0x8] sm:$0xff]
    %v461 = vld [vmem:[%s5 + $0x10] sm:$0xff]
    %v462 = vld [vmem:[%s5 + $0x18] sm:$0xff]
    %v463 = vld [vmem:[%s6] sm:$0x1]
    %v464 = vld [vmem:[%s7] sm:$0xff]
    %v465 = vld [vmem:[%s7 + $0x8] sm:$0xff]
    %v466 = vld [vmem:[%s7 + $0x10] sm:$0xff]
    %v467 = vld [vmem:[%s7 + $0x18] sm:$0xff]
    %v468 = vld [vmem:[%s8] sm:$0x1]
    %v469 = vpack.c.bf16 %v454, %v453
    %v470 = vpack.c.bf16 %v456, %v455
    %v471 = vpack.c.bf16 %v457, %v457
    %v473 = vperm.slane %v458, 0
    %v731 = vunpack.c.l.b16 %v197
    %v732 = vunpack.c.l.b16 %v198
    %v733 = vunpack.c.l.b16 %v199
    %v734 = vunpack.c.l.b16 %v200
    %v735 = vunpack.c.l.b16 %v201
    %v736 = vunpack.c.l.b16 %v202
    %v737 = vunpack.c.l.b16 %v203
    %v738 = vunpack.c.l.b16 %v204
    %v739 = vunpack.c.l.b16 %v205
    %v740 = vunpack.c.l.b16 %v206
    %v741 = vunpack.c.l.b16 %v207
    %v742 = vunpack.c.l.b16 %v208
    %v743 = vunpack.c.l.b16 %v209
    %v744 = vunpack.c.l.b16 %v210
    %v745 = vunpack.c.l.b16 %v211
    %v746 = vunpack.c.l.b16 %v212
    %v747 = vunpack.c.l.b16 %v213
    %v748 = vunpack.c.l.b16 %v214
    %v749 = vunpack.c.l.b16 %v215
    %v750 = vunpack.c.l.b16 %v216
    %v751 = vunpack.c.l.b16 %v217
    %v752 = vunpack.c.l.b16 %v218
    %v753 = vunpack.c.l.b16 %v219
    %v754 = vunpack.c.l.b16 %v220
    %v755 = vunpack.c.l.b16 %v221
    %v756 = vunpack.c.l.b16 %v222
    %v757 = vunpack.c.l.b16 %v223
    %v758 = vunpack.c.l.b16 %v224
    %v759 = vunpack.c.l.b16 %v225
    %v760 = vunpack.c.l.b16 %v226
    %v761 = vunpack.c.l.b16 %v227
    %v762 = vunpack.c.l.b16 %v228
    %v763 = vunpack.c.l.b16 %v229
    %v764 = vunpack.c.l.b16 %v230
    %v765 = vunpack.c.l.b16 %v231
    %v766 = vunpack.c.l.b16 %v232
    %v767 = vunpack.c.l.b16 %v233
    %v768 = vunpack.c.l.b16 %v234
    %v769 = vunpack.c.l.b16 %v235
    %v770 = vunpack.c.l.b16 %v236
    %v771 = vunpack.c.l.b16 %v237
    %v772 = vunpack.c.l.b16 %v238
    %v773 = vunpack.c.l.b16 %v239
    %v774 = vunpack.c.l.b16 %v240
    %v775 = vunpack.c.l.b16 %v241
    %v776 = vunpack.c.l.b16 %v242
    %v777 = vunpack.c.l.b16 %v243
    %v778 = vunpack.c.l.b16 %v244
    %v779 = vunpack.c.l.b16 %v245
    %v780 = vunpack.c.l.b16 %v246
    %v781 = vunpack.c.l.b16 %v247
    %v782 = vunpack.c.l.b16 %v248
    %v783 = vunpack.c.l.b16 %v249
    %v784 = vunpack.c.l.b16 %v250
    %v785 = vunpack.c.l.b16 %v251
    %v786 = vunpack.c.l.b16 %v252
    %v787 = vunpack.c.l.b16 %v253
    %v788 = vunpack.c.l.b16 %v254
    %v789 = vunpack.c.l.b16 %v255
    %v790 = vunpack.c.l.b16 %v256
    %v791 = vunpack.c.l.b16 %v257
    %v792 = vunpack.c.l.b16 %v258
    %v793 = vunpack.c.l.b16 %v259
    %v794 = vunpack.c.l.b16 %v260
    %v795 = vunpack.c.l.b16 %v261
    %v796 = vunpack.c.l.b16 %v262
    %v797 = vunpack.c.l.b16 %v263
    %v798 = vunpack.c.l.b16 %v264
    %v799 = vunpack.c.l.b16 %v265
    %v800 = vunpack.c.l.b16 %v266
    %v801 = vunpack.c.l.b16 %v267
    %v802 = vunpack.c.l.b16 %v268
    %v803 = vunpack.c.l.b16 %v269
    %v804 = vunpack.c.l.b16 %v270
    %v805 = vunpack.c.l.b16 %v271
    %v806 = vunpack.c.l.b16 %v272
    %v807 = vunpack.c.l.b16 %v273
    %v808 = vunpack.c.l.b16 %v274
    %v809 = vunpack.c.l.b16 %v275
    %v810 = vunpack.c.l.b16 %v276
    %v811 = vunpack.c.l.b16 %v277
    %v812 = vunpack.c.l.b16 %v278
    %v813 = vunpack.c.l.b16 %v279
    %v814 = vunpack.c.l.b16 %v280
    %v815 = vunpack.c.l.b16 %v281
    %v816 = vunpack.c.l.b16 %v282
    %v817 = vunpack.c.l.b16 %v283
    %v818 = vunpack.c.l.b16 %v284
    %v819 = vunpack.c.l.b16 %v285
    %v820 = vunpack.c.l.b16 %v286
    %v821 = vunpack.c.l.b16 %v287
    %v822 = vunpack.c.l.b16 %v288
    %v823 = vunpack.c.l.b16 %v289
    %v824 = vunpack.c.l.b16 %v290
    %v825 = vunpack.c.l.b16 %v291
    %v826 = vunpack.c.l.b16 %v292
    %v827 = vunpack.c.l.b16 %v293
    %v828 = vunpack.c.l.b16 %v294
    %v829 = vunpack.c.l.b16 %v295
    %v830 = vunpack.c.l.b16 %v296
    %v831 = vunpack.c.l.b16 %v297
    %v832 = vunpack.c.l.b16 %v298
    %v833 = vunpack.c.l.b16 %v299
    %v834 = vunpack.c.l.b16 %v300
    %v835 = vunpack.c.l.b16 %v301
    %v836 = vunpack.c.l.b16 %v302
    %v837 = vunpack.c.l.b16 %v303
    %v838 = vunpack.c.l.b16 %v304
    %v839 = vunpack.c.l.b16 %v305
    %v840 = vunpack.c.l.b16 %v306
    %v841 = vunpack.c.l.b16 %v307
    %v842 = vunpack.c.l.b16 %v308
    %v843 = vunpack.c.l.b16 %v309
    %v844 = vunpack.c.l.b16 %v310
    %v845 = vunpack.c.l.b16 %v311
    %v846 = vunpack.c.l.b16 %v312
    %v847 = vunpack.c.l.b16 %v313
    %v848 = vunpack.c.l.b16 %v314
    %v849 = vunpack.c.l.b16 %v315
    %v850 = vunpack.c.l.b16 %v316
    %v851 = vunpack.c.l.b16 %v317
    %v852 = vunpack.c.l.b16 %v318
    %v853 = vunpack.c.l.b16 %v319
    %v854 = vunpack.c.l.b16 %v320
    %v855 = vunpack.c.l.b16 %v321
    %v856 = vunpack.c.l.b16 %v322
    %v857 = vunpack.c.l.b16 %v323
    %v858 = vunpack.c.l.b16 %v324
    %v859 = vunpack.c.l.b16 %v325
    %v860 = vunpack.c.l.b16 %v326
    %v861 = vunpack.c.l.b16 %v327
    %v862 = vunpack.c.l.b16 %v328
    %v863 = vunpack.c.l.b16 %v329
    %v864 = vunpack.c.l.b16 %v330
    %v865 = vunpack.c.l.b16 %v331
    %v866 = vunpack.c.l.b16 %v332
    %v867 = vunpack.c.l.b16 %v333
    %v868 = vunpack.c.l.b16 %v334
    %v869 = vunpack.c.l.b16 %v335
    %v870 = vunpack.c.l.b16 %v336
    %v871 = vunpack.c.l.b16 %v337
    %v872 = vunpack.c.l.b16 %v338
    %v873 = vunpack.c.l.b16 %v339
    %v874 = vunpack.c.l.b16 %v340
    %v875 = vunpack.c.l.b16 %v341
    %v876 = vunpack.c.l.b16 %v342
    %v877 = vunpack.c.l.b16 %v343
    %v878 = vunpack.c.l.b16 %v344
    %v879 = vunpack.c.l.b16 %v345
    %v880 = vunpack.c.l.b16 %v346
    %v881 = vunpack.c.l.b16 %v347
    %v882 = vunpack.c.l.b16 %v348
    %v883 = vunpack.c.l.b16 %v349
    %v884 = vunpack.c.l.b16 %v350
    %v885 = vunpack.c.l.b16 %v351
    %v886 = vunpack.c.l.b16 %v352
    %v887 = vunpack.c.l.b16 %v353
    %v888 = vunpack.c.l.b16 %v354
    %v889 = vunpack.c.l.b16 %v355
    %v890 = vunpack.c.l.b16 %v356
    %v891 = vunpack.c.l.b16 %v357
    %v892 = vunpack.c.l.b16 %v358
    %v893 = vunpack.c.l.b16 %v359
    %v894 = vunpack.c.l.b16 %v360
    %v895 = vunpack.c.l.b16 %v361
    %v896 = vunpack.c.l.b16 %v362
    %v897 = vunpack.c.l.b16 %v363
    %v898 = vunpack.c.l.b16 %v364
    %v899 = vunpack.c.l.b16 %v365
    %v900 = vunpack.c.l.b16 %v366
    %v901 = vunpack.c.l.b16 %v367
    %v902 = vunpack.c.l.b16 %v368
    %v903 = vunpack.c.l.b16 %v369
    %v904 = vunpack.c.l.b16 %v370
    %v905 = vunpack.c.l.b16 %v371
    %v906 = vunpack.c.l.b16 %v372
    %v907 = vunpack.c.l.b16 %v373
    %v908 = vunpack.c.l.b16 %v374
    %v909 = vunpack.c.l.b16 %v375
    %v910 = vunpack.c.l.b16 %v376
    %v911 = vunpack.c.l.b16 %v377
    %v912 = vunpack.c.l.b16 %v378
    %v913 = vunpack.c.l.b16 %v379
    %v914 = vunpack.c.l.b16 %v380
    %v915 = vunpack.c.l.b16 %v381
    %v916 = vunpack.c.l.b16 %v382
    %v917 = vunpack.c.l.b16 %v383
    %v918 = vunpack.c.l.b16 %v384
    %v919 = vunpack.c.l.b16 %v385
    %v920 = vunpack.c.l.b16 %v386
    %v921 = vunpack.c.l.b16 %v387
    %v922 = vunpack.c.l.b16 %v388
    %v923 = vunpack.c.l.b16 %v389
    %v924 = vunpack.c.l.b16 %v390
    %v925 = vunpack.c.l.b16 %v391
    %v926 = vunpack.c.l.b16 %v392
    %v927 = vunpack.c.l.b16 %v393
    %v928 = vunpack.c.l.b16 %v394
    %v929 = vunpack.c.l.b16 %v395
    %v930 = vunpack.c.l.b16 %v396
    %v931 = vunpack.c.l.b16 %v397
    %v932 = vunpack.c.l.b16 %v398
    %v933 = vunpack.c.l.b16 %v399
    %v934 = vunpack.c.l.b16 %v400
    %v935 = vunpack.c.l.b16 %v401
    %v936 = vunpack.c.l.b16 %v402
    %v937 = vunpack.c.l.b16 %v403
    %v938 = vunpack.c.l.b16 %v404
    %v939 = vunpack.c.l.b16 %v405
    %v940 = vunpack.c.l.b16 %v406
    %v941 = vunpack.c.l.b16 %v407
    %v942 = vunpack.c.l.b16 %v408
    %v943 = vunpack.c.l.b16 %v409
    %v944 = vunpack.c.l.b16 %v410
    %v945 = vunpack.c.l.b16 %v411
    %v946 = vunpack.c.l.b16 %v412
    %v947 = vunpack.c.l.b16 %v413
    %v948 = vunpack.c.l.b16 %v414
    %v949 = vunpack.c.l.b16 %v415
    %v950 = vunpack.c.l.b16 %v416
    %v951 = vunpack.c.l.b16 %v417
    %v952 = vunpack.c.l.b16 %v418
    %v953 = vunpack.c.l.b16 %v419
    %v954 = vunpack.c.l.b16 %v420
    %v955 = vunpack.c.l.b16 %v421
    %v956 = vunpack.c.l.b16 %v422
    %v957 = vunpack.c.l.b16 %v423
    %v958 = vunpack.c.l.b16 %v424
    %v959 = vunpack.c.l.b16 %v425
    %v960 = vunpack.c.l.b16 %v426
    %v961 = vunpack.c.l.b16 %v427
    %v962 = vunpack.c.l.b16 %v428
    %v963 = vunpack.c.l.b16 %v429
    %v964 = vunpack.c.l.b16 %v430
    %v965 = vunpack.c.l.b16 %v431
    %v966 = vunpack.c.l.b16 %v432
    %v967 = vunpack.c.l.b16 %v433
    %v968 = vunpack.c.l.b16 %v434
    %v969 = vunpack.c.l.b16 %v435
    %v970 = vunpack.c.l.b16 %v436
    %v971 = vunpack.c.l.b16 %v437
    %v972 = vunpack.c.l.b16 %v438
    %v973 = vunpack.c.l.b16 %v439
    %v974 = vunpack.c.l.b16 %v440
    %v975 = vunpack.c.l.b16 %v441
    %v976 = vunpack.c.l.b16 %v442
    %v977 = vunpack.c.l.b16 %v443
    %v978 = vunpack.c.l.b16 %v444
    %v979 = vunpack.c.l.b16 %v445
    %v980 = vunpack.c.l.b16 %v446
    %v981 = vunpack.c.l.b16 %v447
    %v982 = vunpack.c.l.b16 %v448
    %v983 = vunpack.c.l.b16 %v449
    %v984 = vunpack.c.l.b16 %v450
    %v985 = vunpack.c.l.b16 %v451
    %v986 = vunpack.c.l.b16 %v452
    %v987 = vpack.c.b16 %v732, %v731
    %v988 = vpack.c.b16 %v734, %v733
    %v989 = vpack.c.b16 %v736, %v735
    %v990 = vpack.c.b16 %v738, %v737
    %v991 = vpack.c.b16 %v740, %v739
    %v992 = vpack.c.b16 %v742, %v741
    %v993 = vpack.c.b16 %v744, %v743
    %v994 = vpack.c.b16 %v746, %v745
    %v995 = vpack.c.b16 %v748, %v747
    %v996 = vpack.c.b16 %v750, %v749
    %v997 = vpack.c.b16 %v752, %v751
    %v998 = vpack.c.b16 %v754, %v753
    %v999 = vpack.c.b16 %v756, %v755
    %v1000 = vpack.c.b16 %v758, %v757
    %v1001 = vpack.c.b16 %v760, %v759
    %v1002 = vpack.c.b16 %v762, %v761
    %v1003 = vpack.c.b16 %v764, %v763
    %v1004 = vpack.c.b16 %v766, %v765
    %v1005 = vpack.c.b16 %v768, %v767
    %v1006 = vpack.c.b16 %v770, %v769
    %v1007 = vpack.c.b16 %v772, %v771
    %v1008 = vpack.c.b16 %v774, %v773
    %v1009 = vpack.c.b16 %v776, %v775
    %v1010 = vpack.c.b16 %v778, %v777
    %v1011 = vpack.c.b16 %v780, %v779
    %v1012 = vpack.c.b16 %v782, %v781
    %v1013 = vpack.c.b16 %v784, %v783
    %v1014 = vpack.c.b16 %v786, %v785
    %v1015 = vpack.c.b16 %v788, %v787
    %v1016 = vpack.c.b16 %v790, %v789
    %v1017 = vpack.c.b16 %v792, %v791
    %v1018 = vpack.c.b16 %v794, %v793
    %v1019 = vpack.c.b16 %v796, %v795
    %v1020 = vpack.c.b16 %v798, %v797
    %v1021 = vpack.c.b16 %v800, %v799
    %v1022 = vpack.c.b16 %v802, %v801
    %v1023 = vpack.c.b16 %v804, %v803
    %v1024 = vpack.c.b16 %v806, %v805
    %v1025 = vpack.c.b16 %v808, %v807
    %v1026 = vpack.c.b16 %v810, %v809
    %v1027 = vpack.c.b16 %v812, %v811
    %v1028 = vpack.c.b16 %v814, %v813
    %v1029 = vpack.c.b16 %v816, %v815
    %v1030 = vpack.c.b16 %v818, %v817
    %v1031 = vpack.c.b16 %v820, %v819
    %v1032 = vpack.c.b16 %v822, %v821
    %v1033 = vpack.c.b16 %v824, %v823
    %v1034 = vpack.c.b16 %v826, %v825
    %v1035 = vpack.c.b16 %v828, %v827
    %v1036 = vpack.c.b16 %v830, %v829
    %v1037 = vpack.c.b16 %v832, %v831
    %v1038 = vpack.c.b16 %v834, %v833
    %v1039 = vpack.c.b16 %v836, %v835
    %v1040 = vpack.c.b16 %v838, %v837
    %v1041 = vpack.c.b16 %v840, %v839
    %v1042 = vpack.c.b16 %v842, %v841
    %v1043 = vpack.c.b16 %v844, %v843
    %v1044 = vpack.c.b16 %v846, %v845
    %v1045 = vpack.c.b16 %v848, %v847
    %v1046 = vpack.c.b16 %v850, %v849
    %v1047 = vpack.c.b16 %v852, %v851
    %v1048 = vpack.c.b16 %v854, %v853
    %v1049 = vpack.c.b16 %v856, %v855
    %v1050 = vpack.c.b16 %v858, %v857
    %v1051 = vpack.c.b16 %v860, %v859
    %v1052 = vpack.c.b16 %v862, %v861
    %v1053 = vpack.c.b16 %v864, %v863
    %v1054 = vpack.c.b16 %v866, %v865
    %v1055 = vpack.c.b16 %v868, %v867
    %v1056 = vpack.c.b16 %v870, %v869
    %v1057 = vpack.c.b16 %v872, %v871
    %v1058 = vpack.c.b16 %v874, %v873
    %v1059 = vpack.c.b16 %v876, %v875
    %v1060 = vpack.c.b16 %v878, %v877
    %v1061 = vpack.c.b16 %v880, %v879
    %v1062 = vpack.c.b16 %v882, %v881
    %v1063 = vpack.c.b16 %v884, %v883
    %v1064 = vpack.c.b16 %v886, %v885
    %v1065 = vpack.c.b16 %v888, %v887
    %v1066 = vpack.c.b16 %v890, %v889
    %v1067 = vpack.c.b16 %v892, %v891
    %v1068 = vpack.c.b16 %v894, %v893
    %v1069 = vpack.c.b16 %v896, %v895
    %v1070 = vpack.c.b16 %v898, %v897
    %v1071 = vpack.c.b16 %v900, %v899
    %v1072 = vpack.c.b16 %v902, %v901
    %v1073 = vpack.c.b16 %v904, %v903
    %v1074 = vpack.c.b16 %v906, %v905
    %v1075 = vpack.c.b16 %v908, %v907
    %v1076 = vpack.c.b16 %v910, %v909
    %v1077 = vpack.c.b16 %v912, %v911
    %v1078 = vpack.c.b16 %v914, %v913
    %v1079 = vpack.c.b16 %v916, %v915
    %v1080 = vpack.c.b16 %v918, %v917
    %v1081 = vpack.c.b16 %v920, %v919
    %v1082 = vpack.c.b16 %v922, %v921
    %v1083 = vpack.c.b16 %v924, %v923
    %v1084 = vpack.c.b16 %v926, %v925
    %v1085 = vpack.c.b16 %v928, %v927
    %v1086 = vpack.c.b16 %v930, %v929
    %v1087 = vpack.c.b16 %v932, %v931
    %v1088 = vpack.c.b16 %v934, %v933
    %v1089 = vpack.c.b16 %v936, %v935
    %v1090 = vpack.c.b16 %v938, %v937
    %v1091 = vpack.c.b16 %v940, %v939
    %v1092 = vpack.c.b16 %v942, %v941
    %v1093 = vpack.c.b16 %v944, %v943
    %v1094 = vpack.c.b16 %v946, %v945
    %v1095 = vpack.c.b16 %v948, %v947
    %v1096 = vpack.c.b16 %v950, %v949
    %v1097 = vpack.c.b16 %v952, %v951
    %v1098 = vpack.c.b16 %v954, %v953
    %v1099 = vpack.c.b16 %v956, %v955
    %v1100 = vpack.c.b16 %v958, %v957
    %v1101 = vpack.c.b16 %v960, %v959
    %v1102 = vpack.c.b16 %v962, %v961
    %v1103 = vpack.c.b16 %v964, %v963
    %v1104 = vpack.c.b16 %v966, %v965
    %v1105 = vpack.c.b16 %v968, %v967
    %v1106 = vpack.c.b16 %v970, %v969
    %v1107 = vpack.c.b16 %v972, %v971
    %v1108 = vpack.c.b16 %v974, %v973
    %v1109 = vpack.c.b16 %v976, %v975
    %v1110 = vpack.c.b16 %v978, %v977
    %v1111 = vpack.c.b16 %v980, %v979
    %v1112 = vpack.c.b16 %v982, %v981
    %v1113 = vpack.c.b16 %v984, %v983
    %v1114 = vpack.c.b16 %v986, %v985
    %vm1115 = vcmask 293888
    %v1117 = vsel %vm1115, %v987, 0
    %v1120 = vsel %vm1115, %v988, 0
    %v1123 = vsel %vm1115, %v989, 0
    %v1126 = vsel %vm1115, %v990, 0
    %v1129 = vsel %vm1115, %v991, 0
    %v1132 = vsel %vm1115, %v992, 0
    %v1135 = vsel %vm1115, %v993, 0
    %v1138 = vsel %vm1115, %v994, 0
    %v1141 = vsel %vm1115, %v995, 0
    %v1144 = vsel %vm1115, %v996, 0
    %v1147 = vsel %vm1115, %v997, 0
    %v1150 = vsel %vm1115, %v998, 0
    %v1153 = vsel %vm1115, %v999, 0
    %v1156 = vsel %vm1115, %v1000, 0
    %v1159 = vsel %vm1115, %v1001, 0
    %v1162 = vsel %vm1115, %v1002, 0
    %v1165 = vsel %vm1115, %v1003, 0
    %v1168 = vsel %vm1115, %v1004, 0
    %v1171 = vsel %vm1115, %v1005, 0
    %v1174 = vsel %vm1115, %v1006, 0
    %v1177 = vsel %vm1115, %v1007, 0
    %v1180 = vsel %vm1115, %v1008, 0
    %v1183 = vsel %vm1115, %v1009, 0
    %v1186 = vsel %vm1115, %v1010, 0
    %v1189 = vsel %vm1115, %v1011, 0
    %v1192 = vsel %vm1115, %v1012, 0
    %v1195 = vsel %vm1115, %v1013, 0
    %v1198 = vsel %vm1115, %v1014, 0
    %v1201 = vsel %vm1115, %v1015, 0
    %v1204 = vsel %vm1115, %v1016, 0
    %v1207 = vsel %vm1115, %v1017, 0
    %v1210 = vsel %vm1115, %v1018, 0
    %v1213 = vsel %vm1115, %v1019, 0
    %v1216 = vsel %vm1115, %v1020, 0
    %v1219 = vsel %vm1115, %v1021, 0
    %v1222 = vsel %vm1115, %v1022, 0
    %v1225 = vsel %vm1115, %v1023, 0
    %v1228 = vsel %vm1115, %v1024, 0
    %v1231 = vsel %vm1115, %v1025, 0
    %v1234 = vsel %vm1115, %v1026, 0
    %v1237 = vsel %vm1115, %v1027, 0
    %v1240 = vsel %vm1115, %v1028, 0
    %v1243 = vsel %vm1115, %v1029, 0
    %v1246 = vsel %vm1115, %v1030, 0
    %v1249 = vsel %vm1115, %v1031, 0
    %v1252 = vsel %vm1115, %v1032, 0
    %v1255 = vsel %vm1115, %v1033, 0
    %v1258 = vsel %vm1115, %v1034, 0
    %v1261 = vsel %vm1115, %v1035, 0
    %v1264 = vsel %vm1115, %v1036, 0
    %v1267 = vsel %vm1115, %v1037, 0
    %v1270 = vsel %vm1115, %v1038, 0
    %v1273 = vsel %vm1115, %v1039, 0
    %v1276 = vsel %vm1115, %v1040, 0
    %v1279 = vsel %vm1115, %v1041, 0
    %v1282 = vsel %vm1115, %v1042, 0
    %v1285 = vsel %vm1115, %v1043, 0
    %v1288 = vsel %vm1115, %v1044, 0
    %v1291 = vsel %vm1115, %v1045, 0
    %v1294 = vsel %vm1115, %v1046, 0
    %v1297 = vsel %vm1115, %v1047, 0
    %v1300 = vsel %vm1115, %v1048, 0
    %v1303 = vsel %vm1115, %v1049, 0
    %v1306 = vsel %vm1115, %v1050, 0
    %v1309 = vsel %vm1115, %v1051, 0
    %v1312 = vsel %vm1115, %v1052, 0
    %v1315 = vsel %vm1115, %v1053, 0
    %v1318 = vsel %vm1115, %v1054, 0
    %v1321 = vsel %vm1115, %v1055, 0
    %v1324 = vsel %vm1115, %v1056, 0
    %v1327 = vsel %vm1115, %v1057, 0
    %v1330 = vsel %vm1115, %v1058, 0
    %v1333 = vsel %vm1115, %v1059, 0
    %v1336 = vsel %vm1115, %v1060, 0
    %v1339 = vsel %vm1115, %v1061, 0
    %v1342 = vsel %vm1115, %v1062, 0
    %v1345 = vsel %vm1115, %v1063, 0
    %v1348 = vsel %vm1115, %v1064, 0
    %v1351 = vsel %vm1115, %v1065, 0
    %v1354 = vsel %vm1115, %v1066, 0
    %v1357 = vsel %vm1115, %v1067, 0
    %v1360 = vsel %vm1115, %v1068, 0
    %v1363 = vsel %vm1115, %v1069, 0
    %v1366 = vsel %vm1115, %v1070, 0
    %v1369 = vsel %vm1115, %v1071, 0
    %v1372 = vsel %vm1115, %v1072, 0
    %v1375 = vsel %vm1115, %v1073, 0
    %v1378 = vsel %vm1115, %v1074, 0
    %v1381 = vsel %vm1115, %v1075, 0
    %v1384 = vsel %vm1115, %v1076, 0
    %v1387 = vsel %vm1115, %v1077, 0
    %v1390 = vsel %vm1115, %v1078, 0
    %v1393 = vsel %vm1115, %v1079, 0
    %v1396 = vsel %vm1115, %v1080, 0
    %v1399 = vsel %vm1115, %v1081, 0
    %v1402 = vsel %vm1115, %v1082, 0
    %v1405 = vsel %vm1115, %v1083, 0
    %v1408 = vsel %vm1115, %v1084, 0
    %v1411 = vsel %vm1115, %v1085, 0
    %v1414 = vsel %vm1115, %v1086, 0
    %v1417 = vsel %vm1115, %v1087, 0
    %v1420 = vsel %vm1115, %v1088, 0
    %v1423 = vsel %vm1115, %v1089, 0
    %v1426 = vsel %vm1115, %v1090, 0
    %v1429 = vsel %vm1115, %v1091, 0
    %v1432 = vsel %vm1115, %v1092, 0
    %v1435 = vsel %vm1115, %v1093, 0
    %v1438 = vsel %vm1115, %v1094, 0
    %v1441 = vsel %vm1115, %v1095, 0
    %v1444 = vsel %vm1115, %v1096, 0
    %v1447 = vsel %vm1115, %v1097, 0
    %v1450 = vsel %vm1115, %v1098, 0
    %v1453 = vsel %vm1115, %v1099, 0
    %v1456 = vsel %vm1115, %v1100, 0
    %v1459 = vsel %vm1115, %v1101, 0
    %v1462 = vsel %vm1115, %v1102, 0
    %v1465 = vsel %vm1115, %v1103, 0
    %v1468 = vsel %vm1115, %v1104, 0
    %v1471 = vsel %vm1115, %v1105, 0
    %v1474 = vsel %vm1115, %v1106, 0
    %v1477 = vsel %vm1115, %v1107, 0
    %v1480 = vsel %vm1115, %v1108, 0
    %v1483 = vsel %vm1115, %v1109, 0
    %v1486 = vsel %vm1115, %v1110, 0
    %v1489 = vsel %vm1115, %v1111, 0
    %v1492 = vsel %vm1115, %v1112, 0
    %v1495 = vsel %vm1115, %v1113, 0
    %v1498 = vsel %vm1115, %v1114, 0
    %vm1500 = vcmask 1041408
    %v1502 = vsel %vm1500, %v471, 0
    %1504 = vmatpush.bf16.msra.mxu0 0
    %1505 = vmatpush.bf16.msra.mxu0 0
    %1506 = vmatpush.bf16.msra.mxu0 0
    %1507 = vmatpush.bf16.msra.mxu0 0
    %1508 = vmatpush.bf16.msra.mxu0 0
    %1509 = vmatpush.bf16.msra.mxu0 %v1502
    %1510 = vmatpush.bf16.msra.mxu0 %v470
    %1511 = vmatpush.bf16.msra.mxu0 %v469
    %1512 = vmatmul.bf16.gmra.mxu0 %v1117
    %v1513 = vpop.f32.mrf.mxu0
    %v1514 = vadd.f32 %v473, %v1513
    %v1515 = vpop.f32.mrf.mxu0
    %v1516 = vadd.f32 %v473, %v1515
    %1517 = vmatmul.bf16.gmra.mxu0 %v1120
    %v1518 = vpop.f32.mrf.mxu0
    %v1519 = vadd.f32 %v473, %v1518
    %v1520 = vpop.f32.mrf.mxu0
    %v1521 = vadd.f32 %v473, %v1520
    %1522 = vmatmul.bf16.gmra.mxu0 %v1123
    %v1523 = vpop.f32.mrf.mxu0
    %v1524 = vadd.f32 %v473, %v1523
    %v1525 = vpop.f32.mrf.mxu0
    %v1526 = vadd.f32 %v473, %v1525
    %1527 = vmatmul.bf16.gmra.mxu0 %v1126
    %v1528 = vpop.f32.mrf.mxu0
    %v1529 = vadd.f32 %v473, %v1528
    %v1530 = vpop.f32.mrf.mxu0
    %v1531 = vadd.f32 %v473, %v1530
    %1532 = vmatmul.bf16.gmra.mxu0 %v1129
    %v1533 = vpop.f32.mrf.mxu0
    %v1534 = vadd.f32 %v473, %v1533
    %v1535 = vpop.f32.mrf.mxu0
    %v1536 = vadd.f32 %v473, %v1535
    %1537 = vmatmul.bf16.gmra.mxu0 %v1132
    %v1538 = vpop.f32.mrf.mxu0
    %v1539 = vadd.f32 %v473, %v1538
    %v1540 = vpop.f32.mrf.mxu0
    %v1541 = vadd.f32 %v473, %v1540
    %1542 = vmatmul.bf16.gmra.mxu0 %v1135
    %v1543 = vpop.f32.mrf.mxu0
    %v1544 = vadd.f32 %v473, %v1543
    %v1545 = vpop.f32.mrf.mxu0
    %v1546 = vadd.f32 %v473, %v1545
    %1547 = vmatmul.bf16.gmra.mxu0 %v1138
    %v1548 = vpop.f32.mrf.mxu0
    %v1549 = vadd.f32 %v473, %v1548
    %v1550 = vpop.f32.mrf.mxu0
    %v1551 = vadd.f32 %v473, %v1550
    %1552 = vmatmul.bf16.gmra.mxu0 %v1141
    %v1553 = vpop.f32.mrf.mxu0
    %v1554 = vadd.f32 %v473, %v1553
    %v1555 = vpop.f32.mrf.mxu0
    %v1556 = vadd.f32 %v473, %v1555
    %1557 = vmatmul.bf16.gmra.mxu0 %v1144
    %v1558 = vpop.f32.mrf.mxu0
    %v1559 = vadd.f32 %v473, %v1558
    %v1560 = vpop.f32.mrf.mxu0
    %v1561 = vadd.f32 %v473, %v1560
    %1562 = vmatmul.bf16.gmra.mxu0 %v1147
    %v1563 = vpop.f32.mrf.mxu0
    %v1564 = vadd.f32 %v473, %v1563
    %v1565 = vpop.f32.mrf.mxu0
    %v1566 = vadd.f32 %v473, %v1565
    %1567 = vmatmul.bf16.gmra.mxu0 %v1150
    %v1568 = vpop.f32.mrf.mxu0
    %v1569 = vadd.f32 %v473, %v1568
    %v1570 = vpop.f32.mrf.mxu0
    %v1571 = vadd.f32 %v473, %v1570
    %1572 = vmatmul.bf16.gmra.mxu0 %v1153
    %v1573 = vpop.f32.mrf.mxu0
    %v1574 = vadd.f32 %v473, %v1573
    %v1575 = vpop.f32.mrf.mxu0
    %v1576 = vadd.f32 %v473, %v1575
    %1577 = vmatmul.bf16.gmra.mxu0 %v1156
    %v1578 = vpop.f32.mrf.mxu0
    %v1579 = vadd.f32 %v473, %v1578
    %v1580 = vpop.f32.mrf.mxu0
    %v1581 = vadd.f32 %v473, %v1580
    %1582 = vmatmul.bf16.gmra.mxu0 %v1159
    %v1583 = vpop.f32.mrf.mxu0
    %v1584 = vadd.f32 %v473, %v1583
    %v1585 = vpop.f32.mrf.mxu0
    %v1586 = vadd.f32 %v473, %v1585
    %1587 = vmatmul.bf16.gmra.mxu0 %v1162
    %v1588 = vpop.f32.mrf.mxu0
    %v1589 = vadd.f32 %v473, %v1588
    %v1590 = vpop.f32.mrf.mxu0
    %v1591 = vadd.f32 %v473, %v1590
    %1592 = vmatmul.bf16.gmra.mxu0 %v1165
    %v1593 = vpop.f32.mrf.mxu0
    %v1594 = vadd.f32 %v473, %v1593
    %v1595 = vpop.f32.mrf.mxu0
    %v1596 = vadd.f32 %v473, %v1595
    %1597 = vmatmul.bf16.gmra.mxu0 %v1168
    %v1598 = vpop.f32.mrf.mxu0
    %v1599 = vadd.f32 %v473, %v1598
    %v1600 = vpop.f32.mrf.mxu0
    %v1601 = vadd.f32 %v473, %v1600
    %1602 = vmatmul.bf16.gmra.mxu0 %v1171
    %v1603 = vpop.f32.mrf.mxu0
    %v1604 = vadd.f32 %v473, %v1603
    %v1605 = vpop.f32.mrf.mxu0
    %v1606 = vadd.f32 %v473, %v1605
    %1607 = vmatmul.bf16.gmra.mxu0 %v1174
    %v1608 = vpop.f32.mrf.mxu0
    %v1609 = vadd.f32 %v473, %v1608
    %v1610 = vpop.f32.mrf.mxu0
    %v1611 = vadd.f32 %v473, %v1610
    %1612 = vmatmul.bf16.gmra.mxu0 %v1177
    %v1613 = vpop.f32.mrf.mxu0
    %v1614 = vadd.f32 %v473, %v1613
    %v1615 = vpop.f32.mrf.mxu0
    %v1616 = vadd.f32 %v473, %v1615
    %1617 = vmatmul.bf16.gmra.mxu0 %v1180
    %v1618 = vpop.f32.mrf.mxu0
    %v1619 = vadd.f32 %v473, %v1618
    %v1620 = vpop.f32.mrf.mxu0
    %v1621 = vadd.f32 %v473, %v1620
    %1622 = vmatmul.bf16.gmra.mxu0 %v1183
    %v1623 = vpop.f32.mrf.mxu0
    %v1624 = vadd.f32 %v473, %v1623
    %v1625 = vpop.f32.mrf.mxu0
    %v1626 = vadd.f32 %v473, %v1625
    %1627 = vmatmul.bf16.gmra.mxu0 %v1186
    %v1628 = vpop.f32.mrf.mxu0
    %v1629 = vadd.f32 %v473, %v1628
    %v1630 = vpop.f32.mrf.mxu0
    %v1631 = vadd.f32 %v473, %v1630
    %1632 = vmatmul.bf16.gmra.mxu0 %v1189
    %v1633 = vpop.f32.mrf.mxu0
    %v1634 = vadd.f32 %v473, %v1633
    %v1635 = vpop.f32.mrf.mxu0
    %v1636 = vadd.f32 %v473, %v1635
    %1637 = vmatmul.bf16.gmra.mxu0 %v1192
    %v1638 = vpop.f32.mrf.mxu0
    %v1639 = vadd.f32 %v473, %v1638
    %v1640 = vpop.f32.mrf.mxu0
    %v1641 = vadd.f32 %v473, %v1640
    %1642 = vmatmul.bf16.gmra.mxu0 %v1195
    %v1643 = vpop.f32.mrf.mxu0
    %v1644 = vadd.f32 %v473, %v1643
    %v1645 = vpop.f32.mrf.mxu0
    %v1646 = vadd.f32 %v473, %v1645
    %1647 = vmatmul.bf16.gmra.mxu0 %v1198
    %v1648 = vpop.f32.mrf.mxu0
    %v1649 = vadd.f32 %v473, %v1648
    %v1650 = vpop.f32.mrf.mxu0
    %v1651 = vadd.f32 %v473, %v1650
    %1652 = vmatmul.bf16.gmra.mxu0 %v1201
    %v1653 = vpop.f32.mrf.mxu0
    %v1654 = vadd.f32 %v473, %v1653
    %v1655 = vpop.f32.mrf.mxu0
    %v1656 = vadd.f32 %v473, %v1655
    %1657 = vmatmul.bf16.gmra.mxu0 %v1204
    %v1658 = vpop.f32.mrf.mxu0
    %v1659 = vadd.f32 %v473, %v1658
    %v1660 = vpop.f32.mrf.mxu0
    %v1661 = vadd.f32 %v473, %v1660
    %1662 = vmatmul.bf16.gmra.mxu0 %v1207
    %v1663 = vpop.f32.mrf.mxu0
    %v1664 = vadd.f32 %v473, %v1663
    %v1665 = vpop.f32.mrf.mxu0
    %v1666 = vadd.f32 %v473, %v1665
    %1667 = vmatmul.bf16.gmra.mxu0 %v1210
    %v1668 = vpop.f32.mrf.mxu0
    %v1669 = vadd.f32 %v473, %v1668
    %v1670 = vpop.f32.mrf.mxu0
    %v1671 = vadd.f32 %v473, %v1670
    %1672 = vmatmul.bf16.gmra.mxu0 %v1213
    %v1673 = vpop.f32.mrf.mxu0
    %v1674 = vadd.f32 %v473, %v1673
    %v1675 = vpop.f32.mrf.mxu0
    %v1676 = vadd.f32 %v473, %v1675
    %1677 = vmatmul.bf16.gmra.mxu0 %v1216
    %v1678 = vpop.f32.mrf.mxu0
    %v1679 = vadd.f32 %v473, %v1678
    %v1680 = vpop.f32.mrf.mxu0
    %v1681 = vadd.f32 %v473, %v1680
    %1682 = vmatmul.bf16.gmra.mxu0 %v1219
    %v1683 = vpop.f32.mrf.mxu0
    %v1684 = vadd.f32 %v473, %v1683
    %v1685 = vpop.f32.mrf.mxu0
    %v1686 = vadd.f32 %v473, %v1685
    %1687 = vmatmul.bf16.gmra.mxu0 %v1222
    %v1688 = vpop.f32.mrf.mxu0
    %v1689 = vadd.f32 %v473, %v1688
    %v1690 = vpop.f32.mrf.mxu0
    %v1691 = vadd.f32 %v473, %v1690
    %1692 = vmatmul.bf16.gmra.mxu0 %v1225
    %v1693 = vpop.f32.mrf.mxu0
    %v1694 = vadd.f32 %v473, %v1693
    %v1695 = vpop.f32.mrf.mxu0
    %v1696 = vadd.f32 %v473, %v1695
    %1697 = vmatmul.bf16.gmra.mxu0 %v1228
    %v1698 = vpop.f32.mrf.mxu0
    %v1699 = vadd.f32 %v473, %v1698
    %v1700 = vpop.f32.mrf.mxu0
    %v1701 = vadd.f32 %v473, %v1700
    %1702 = vmatmul.bf16.gmra.mxu0 %v1231
    %v1703 = vpop.f32.mrf.mxu0
    %v1704 = vadd.f32 %v473, %v1703
    %v1705 = vpop.f32.mrf.mxu0
    %v1706 = vadd.f32 %v473, %v1705
    %1707 = vmatmul.bf16.gmra.mxu0 %v1234
    %v1708 = vpop.f32.mrf.mxu0
    %v1709 = vadd.f32 %v473, %v1708
    %v1710 = vpop.f32.mrf.mxu0
    %v1711 = vadd.f32 %v473, %v1710
    %1712 = vmatmul.bf16.gmra.mxu0 %v1237
    %v1713 = vpop.f32.mrf.mxu0
    %v1714 = vadd.f32 %v473, %v1713
    %v1715 = vpop.f32.mrf.mxu0
    %v1716 = vadd.f32 %v473, %v1715
    %1717 = vmatmul.bf16.gmra.mxu0 %v1240
    %v1718 = vpop.f32.mrf.mxu0
    %v1719 = vadd.f32 %v473, %v1718
    %v1720 = vpop.f32.mrf.mxu0
    %v1721 = vadd.f32 %v473, %v1720
    %1722 = vmatmul.bf16.gmra.mxu0 %v1243
    %v1723 = vpop.f32.mrf.mxu0
    %v1724 = vadd.f32 %v473, %v1723
    %v1725 = vpop.f32.mrf.mxu0
    %v1726 = vadd.f32 %v473, %v1725
    %1727 = vmatmul.bf16.gmra.mxu0 %v1246
    %v1728 = vpop.f32.mrf.mxu0
    %v1729 = vadd.f32 %v473, %v1728
    %v1730 = vpop.f32.mrf.mxu0
    %v1731 = vadd.f32 %v473, %v1730
    %1732 = vmatmul.bf16.gmra.mxu0 %v1249
    %v1733 = vpop.f32.mrf.mxu0
    %v1734 = vadd.f32 %v473, %v1733
    %v1735 = vpop.f32.mrf.mxu0
    %v1736 = vadd.f32 %v473, %v1735
    %1737 = vmatmul.bf16.gmra.mxu0 %v1252
    %v1738 = vpop.f32.mrf.mxu0
    %v1739 = vadd.f32 %v473, %v1738
    %v1740 = vpop.f32.mrf.mxu0
    %v1741 = vadd.f32 %v473, %v1740
    %1742 = vmatmul.bf16.gmra.mxu0 %v1255
    %v1743 = vpop.f32.mrf.mxu0
    %v1744 = vadd.f32 %v473, %v1743
    %v1745 = vpop.f32.mrf.mxu0
    %v1746 = vadd.f32 %v473, %v1745
    %1747 = vmatmul.bf16.gmra.mxu0 %v1258
    %v1748 = vpop.f32.mrf.mxu0
    %v1749 = vadd.f32 %v473, %v1748
    %v1750 = vpop.f32.mrf.mxu0
    %v1751 = vadd.f32 %v473, %v1750
    %1752 = vmatmul.bf16.gmra.mxu0 %v1261
    %v1753 = vpop.f32.mrf.mxu0
    %v1754 = vadd.f32 %v473, %v1753
    %v1755 = vpop.f32.mrf.mxu0
    %v1756 = vadd.f32 %v473, %v1755
    %1757 = vmatmul.bf16.gmra.mxu0 %v1264
    %v1758 = vpop.f32.mrf.mxu0
    %v1759 = vadd.f32 %v473, %v1758
    %v1760 = vpop.f32.mrf.mxu0
    %v1761 = vadd.f32 %v473, %v1760
    %1762 = vmatmul.bf16.gmra.mxu0 %v1267
    %v1763 = vpop.f32.mrf.mxu0
    %v1764 = vadd.f32 %v473, %v1763
    %v1765 = vpop.f32.mrf.mxu0
    %v1766 = vadd.f32 %v473, %v1765
    %1767 = vmatmul.bf16.gmra.mxu0 %v1270
    %v1768 = vpop.f32.mrf.mxu0
    %v1769 = vadd.f32 %v473, %v1768
    %v1770 = vpop.f32.mrf.mxu0
    %v1771 = vadd.f32 %v473, %v1770
    %1772 = vmatmul.bf16.gmra.mxu0 %v1273
    %v1773 = vpop.f32.mrf.mxu0
    %v1774 = vadd.f32 %v473, %v1773
    %v1775 = vpop.f32.mrf.mxu0
    %v1776 = vadd.f32 %v473, %v1775
    %1777 = vmatmul.bf16.gmra.mxu0 %v1276
    %v1778 = vpop.f32.mrf.mxu0
    %v1779 = vadd.f32 %v473, %v1778
    %v1780 = vpop.f32.mrf.mxu0
    %v1781 = vadd.f32 %v473, %v1780
    %1782 = vmatmul.bf16.gmra.mxu0 %v1279
    %v1783 = vpop.f32.mrf.mxu0
    %v1784 = vadd.f32 %v473, %v1783
    %v1785 = vpop.f32.mrf.mxu0
    %v1786 = vadd.f32 %v473, %v1785
    %1787 = vmatmul.bf16.gmra.mxu0 %v1282
    %v1788 = vpop.f32.mrf.mxu0
    %v1789 = vadd.f32 %v473, %v1788
    %v1790 = vpop.f32.mrf.mxu0
    %v1791 = vadd.f32 %v473, %v1790
    %1792 = vmatmul.bf16.gmra.mxu0 %v1285
    %v1793 = vpop.f32.mrf.mxu0
    %v1794 = vadd.f32 %v473, %v1793
    %v1795 = vpop.f32.mrf.mxu0
    %v1796 = vadd.f32 %v473, %v1795
    %1797 = vmatmul.bf16.gmra.mxu0 %v1288
    %v1798 = vpop.f32.mrf.mxu0
    %v1799 = vadd.f32 %v473, %v1798
    %v1800 = vpop.f32.mrf.mxu0
    %v1801 = vadd.f32 %v473, %v1800
    %1802 = vmatmul.bf16.gmra.mxu0 %v1291
    %v1803 = vpop.f32.mrf.mxu0
    %v1804 = vadd.f32 %v473, %v1803
    %v1805 = vpop.f32.mrf.mxu0
    %v1806 = vadd.f32 %v473, %v1805
    %1807 = vmatmul.bf16.gmra.mxu0 %v1294
    %v1808 = vpop.f32.mrf.mxu0
    %v1809 = vadd.f32 %v473, %v1808
    %v1810 = vpop.f32.mrf.mxu0
    %v1811 = vadd.f32 %v473, %v1810
    %1812 = vmatmul.bf16.gmra.mxu0 %v1297
    %v1813 = vpop.f32.mrf.mxu0
    %v1814 = vadd.f32 %v473, %v1813
    %v1815 = vpop.f32.mrf.mxu0
    %v1816 = vadd.f32 %v473, %v1815
    %1817 = vmatmul.bf16.gmra.mxu0 %v1300
    %v1818 = vpop.f32.mrf.mxu0
    %v1819 = vadd.f32 %v473, %v1818
    %v1820 = vpop.f32.mrf.mxu0
    %v1821 = vadd.f32 %v473, %v1820
    %1822 = vmatmul.bf16.gmra.mxu0 %v1303
    %v1823 = vpop.f32.mrf.mxu0
    %v1824 = vadd.f32 %v473, %v1823
    %v1825 = vpop.f32.mrf.mxu0
    %v1826 = vadd.f32 %v473, %v1825
    %1827 = vmatmul.bf16.gmra.mxu0 %v1306
    %v1828 = vpop.f32.mrf.mxu0
    %v1829 = vadd.f32 %v473, %v1828
    %v1830 = vpop.f32.mrf.mxu0
    %v1831 = vadd.f32 %v473, %v1830
    %1832 = vmatmul.bf16.gmra.mxu0 %v1309
    %v1833 = vpop.f32.mrf.mxu0
    %v1834 = vadd.f32 %v473, %v1833
    %v1835 = vpop.f32.mrf.mxu0
    %v1836 = vadd.f32 %v473, %v1835
    %1837 = vmatmul.bf16.gmra.mxu0 %v1312
    %v1838 = vpop.f32.mrf.mxu0
    %v1839 = vadd.f32 %v473, %v1838
    %v1840 = vpop.f32.mrf.mxu0
    %v1841 = vadd.f32 %v473, %v1840
    %1842 = vmatmul.bf16.gmra.mxu0 %v1315
    %v1843 = vpop.f32.mrf.mxu0
    %v1844 = vadd.f32 %v473, %v1843
    %v1845 = vpop.f32.mrf.mxu0
    %v1846 = vadd.f32 %v473, %v1845
    %1847 = vmatmul.bf16.gmra.mxu0 %v1318
    %v1848 = vpop.f32.mrf.mxu0
    %v1849 = vadd.f32 %v473, %v1848
    %v1850 = vpop.f32.mrf.mxu0
    %v1851 = vadd.f32 %v473, %v1850
    %1852 = vmatmul.bf16.gmra.mxu0 %v1321
    %v1853 = vpop.f32.mrf.mxu0
    %v1854 = vadd.f32 %v473, %v1853
    %v1855 = vpop.f32.mrf.mxu0
    %v1856 = vadd.f32 %v473, %v1855
    %1857 = vmatmul.bf16.gmra.mxu0 %v1324
    %v1858 = vpop.f32.mrf.mxu0
    %v1859 = vadd.f32 %v473, %v1858
    %v1860 = vpop.f32.mrf.mxu0
    %v1861 = vadd.f32 %v473, %v1860
    %1862 = vmatmul.bf16.gmra.mxu0 %v1327
    %v1863 = vpop.f32.mrf.mxu0
    %v1864 = vadd.f32 %v473, %v1863
    %v1865 = vpop.f32.mrf.mxu0
    %v1866 = vadd.f32 %v473, %v1865
    %1867 = vmatmul.bf16.gmra.mxu0 %v1330
    %v1868 = vpop.f32.mrf.mxu0
    %v1869 = vadd.f32 %v473, %v1868
    %v1870 = vpop.f32.mrf.mxu0
    %v1871 = vadd.f32 %v473, %v1870
    %1872 = vmatmul.bf16.gmra.mxu0 %v1333
    %v1873 = vpop.f32.mrf.mxu0
    %v1874 = vadd.f32 %v473, %v1873
    %v1875 = vpop.f32.mrf.mxu0
    %v1876 = vadd.f32 %v473, %v1875
    %1877 = vmatmul.bf16.gmra.mxu0 %v1336
    %v1878 = vpop.f32.mrf.mxu0
    %v1879 = vadd.f32 %v473, %v1878
    %v1880 = vpop.f32.mrf.mxu0
    %v1881 = vadd.f32 %v473, %v1880
    %1882 = vmatmul.bf16.gmra.mxu0 %v1339
    %v1883 = vpop.f32.mrf.mxu0
    %v1884 = vadd.f32 %v473, %v1883
    %v1885 = vpop.f32.mrf.mxu0
    %v1886 = vadd.f32 %v473, %v1885
    %1887 = vmatmul.bf16.gmra.mxu0 %v1342
    %v1888 = vpop.f32.mrf.mxu0
    %v1889 = vadd.f32 %v473, %v1888
    %v1890 = vpop.f32.mrf.mxu0
    %v1891 = vadd.f32 %v473, %v1890
    %1892 = vmatmul.bf16.gmra.mxu0 %v1345
    %v1893 = vpop.f32.mrf.mxu0
    %v1894 = vadd.f32 %v473, %v1893
    %v1895 = vpop.f32.mrf.mxu0
    %v1896 = vadd.f32 %v473, %v1895
    %1897 = vmatmul.bf16.gmra.mxu0 %v1348
    %v1898 = vpop.f32.mrf.mxu0
    %v1899 = vadd.f32 %v473, %v1898
    %v1900 = vpop.f32.mrf.mxu0
    %v1901 = vadd.f32 %v473, %v1900
    %1902 = vmatmul.bf16.gmra.mxu0 %v1351
    %v1903 = vpop.f32.mrf.mxu0
    %v1904 = vadd.f32 %v473, %v1903
    %v1905 = vpop.f32.mrf.mxu0
    %v1906 = vadd.f32 %v473, %v1905
    %1907 = vmatmul.bf16.gmra.mxu0 %v1354
    %v1908 = vpop.f32.mrf.mxu0
    %v1909 = vadd.f32 %v473, %v1908
    %v1910 = vpop.f32.mrf.mxu0
    %v1911 = vadd.f32 %v473, %v1910
    %1912 = vmatmul.bf16.gmra.mxu0 %v1357
    %v1913 = vpop.f32.mrf.mxu0
    %v1914 = vadd.f32 %v473, %v1913
    %v1915 = vpop.f32.mrf.mxu0
    %v1916 = vadd.f32 %v473, %v1915
    %1917 = vmatmul.bf16.gmra.mxu0 %v1360
    %v1918 = vpop.f32.mrf.mxu0
    %v1919 = vadd.f32 %v473, %v1918
    %v1920 = vpop.f32.mrf.mxu0
    %v1921 = vadd.f32 %v473, %v1920
    %1922 = vmatmul.bf16.gmra.mxu0 %v1363
    %v1923 = vpop.f32.mrf.mxu0
    %v1924 = vadd.f32 %v473, %v1923
    %v1925 = vpop.f32.mrf.mxu0
    %v1926 = vadd.f32 %v473, %v1925
    %1927 = vmatmul.bf16.gmra.mxu0 %v1366
    %v1928 = vpop.f32.mrf.mxu0
    %v1929 = vadd.f32 %v473, %v1928
    %v1930 = vpop.f32.mrf.mxu0
    %v1931 = vadd.f32 %v473, %v1930
    %1932 = vmatmul.bf16.gmra.mxu0 %v1369
    %v1933 = vpop.f32.mrf.mxu0
    %v1934 = vadd.f32 %v473, %v1933
    %v1935 = vpop.f32.mrf.mxu0
    %v1936 = vadd.f32 %v473, %v1935
    %1937 = vmatmul.bf16.gmra.mxu0 %v1372
    %v1938 = vpop.f32.mrf.mxu0
    %v1939 = vadd.f32 %v473, %v1938
    %v1940 = vpop.f32.mrf.mxu0
    %v1941 = vadd.f32 %v473, %v1940
    %1942 = vmatmul.bf16.gmra.mxu0 %v1375
    %v1943 = vpop.f32.mrf.mxu0
    %v1944 = vadd.f32 %v473, %v1943
    %v1945 = vpop.f32.mrf.mxu0
    %v1946 = vadd.f32 %v473, %v1945
    %1947 = vmatmul.bf16.gmra.mxu0 %v1378
    %v1948 = vpop.f32.mrf.mxu0
    %v1949 = vadd.f32 %v473, %v1948
    %v1950 = vpop.f32.mrf.mxu0
    %v1951 = vadd.f32 %v473, %v1950
    %1952 = vmatmul.bf16.gmra.mxu0 %v1381
    %v1953 = vpop.f32.mrf.mxu0
    %v1954 = vadd.f32 %v473, %v1953
    %v1955 = vpop.f32.mrf.mxu0
    %v1956 = vadd.f32 %v473, %v1955
    %1957 = vmatmul.bf16.gmra.mxu0 %v1384
    %v1958 = vpop.f32.mrf.mxu0
    %v1959 = vadd.f32 %v473, %v1958
    %v1960 = vpop.f32.mrf.mxu0
    %v1961 = vadd.f32 %v473, %v1960
    %1962 = vmatmul.bf16.gmra.mxu0 %v1387
    %v1963 = vpop.f32.mrf.mxu0
    %v1964 = vadd.f32 %v473, %v1963
    %v1965 = vpop.f32.mrf.mxu0
    %v1966 = vadd.f32 %v473, %v1965
    %1967 = vmatmul.bf16.gmra.mxu0 %v1390
    %v1968 = vpop.f32.mrf.mxu0
    %v1969 = vadd.f32 %v473, %v1968
    %v1970 = vpop.f32.mrf.mxu0
    %v1971 = vadd.f32 %v473, %v1970
    %1972 = vmatmul.bf16.gmra.mxu0 %v1393
    %v1973 = vpop.f32.mrf.mxu0
    %v1974 = vadd.f32 %v473, %v1973
    %v1975 = vpop.f32.mrf.mxu0
    %v1976 = vadd.f32 %v473, %v1975
    %1977 = vmatmul.bf16.gmra.mxu0 %v1396
    %v1978 = vpop.f32.mrf.mxu0
    %v1979 = vadd.f32 %v473, %v1978
    %v1980 = vpop.f32.mrf.mxu0
    %v1981 = vadd.f32 %v473, %v1980
    %1982 = vmatmul.bf16.gmra.mxu0 %v1399
    %v1983 = vpop.f32.mrf.mxu0
    %v1984 = vadd.f32 %v473, %v1983
    %v1985 = vpop.f32.mrf.mxu0
    %v1986 = vadd.f32 %v473, %v1985
    %1987 = vmatmul.bf16.gmra.mxu0 %v1402
    %v1988 = vpop.f32.mrf.mxu0
    %v1989 = vadd.f32 %v473, %v1988
    %v1990 = vpop.f32.mrf.mxu0
    %v1991 = vadd.f32 %v473, %v1990
    %1992 = vmatmul.bf16.gmra.mxu0 %v1405
    %v1993 = vpop.f32.mrf.mxu0
    %v1994 = vadd.f32 %v473, %v1993
    %v1995 = vpop.f32.mrf.mxu0
    %v1996 = vadd.f32 %v473, %v1995
    %1997 = vmatmul.bf16.gmra.mxu0 %v1408
    %v1998 = vpop.f32.mrf.mxu0
    %v1999 = vadd.f32 %v473, %v1998
    %v2000 = vpop.f32.mrf.mxu0
    %v2001 = vadd.f32 %v473, %v2000
    %2002 = vmatmul.bf16.gmra.mxu0 %v1411
    %v2003 = vpop.f32.mrf.mxu0
    %v2004 = vadd.f32 %v473, %v2003
    %v2005 = vpop.f32.mrf.mxu0
    %v2006 = vadd.f32 %v473, %v2005
    %2007 = vmatmul.bf16.gmra.mxu0 %v1414
    %v2008 = vpop.f32.mrf.mxu0
    %v2009 = vadd.f32 %v473, %v2008
    %v2010 = vpop.f32.mrf.mxu0
    %v2011 = vadd.f32 %v473, %v2010
    %2012 = vmatmul.bf16.gmra.mxu0 %v1417
    %v2013 = vpop.f32.mrf.mxu0
    %v2014 = vadd.f32 %v473, %v2013
    %v2015 = vpop.f32.mrf.mxu0
    %v2016 = vadd.f32 %v473, %v2015
    %2017 = vmatmul.bf16.gmra.mxu0 %v1420
    %v2018 = vpop.f32.mrf.mxu0
    %v2019 = vadd.f32 %v473, %v2018
    %v2020 = vpop.f32.mrf.mxu0
    %v2021 = vadd.f32 %v473, %v2020
    %2022 = vmatmul.bf16.gmra.mxu0 %v1423
    %v2023 = vpop.f32.mrf.mxu0
    %v2024 = vadd.f32 %v473, %v2023
    %v2025 = vpop.f32.mrf.mxu0
    %v2026 = vadd.f32 %v473, %v2025
    %2027 = vmatmul.bf16.gmra.mxu0 %v1426
    %v2028 = vpop.f32.mrf.mxu0
    %v2029 = vadd.f32 %v473, %v2028
    %v2030 = vpop.f32.mrf.mxu0
    %v2031 = vadd.f32 %v473, %v2030
    %2032 = vmatmul.bf16.gmra.mxu0 %v1429
    %v2033 = vpop.f32.mrf.mxu0
    %v2034 = vadd.f32 %v473, %v2033
    %v2035 = vpop.f32.mrf.mxu0
    %v2036 = vadd.f32 %v473, %v2035
    %2037 = vmatmul.bf16.gmra.mxu0 %v1432
    %v2038 = vpop.f32.mrf.mxu0
    %v2039 = vadd.f32 %v473, %v2038
    %v2040 = vpop.f32.mrf.mxu0
    %v2041 = vadd.f32 %v473, %v2040
    %2042 = vmatmul.bf16.gmra.mxu0 %v1435
    %v2043 = vpop.f32.mrf.mxu0
    %v2044 = vadd.f32 %v473, %v2043
    %v2045 = vpop.f32.mrf.mxu0
    %v2046 = vadd.f32 %v473, %v2045
    %2047 = vmatmul.bf16.gmra.mxu0 %v1438
    %v2048 = vpop.f32.mrf.mxu0
    %v2049 = vadd.f32 %v473, %v2048
    %v2050 = vpop.f32.mrf.mxu0
    %v2051 = vadd.f32 %v473, %v2050
    %2052 = vmatmul.bf16.gmra.mxu0 %v1441
    %v2053 = vpop.f32.mrf.mxu0
    %v2054 = vadd.f32 %v473, %v2053
    %v2055 = vpop.f32.mrf.mxu0
    %v2056 = vadd.f32 %v473, %v2055
    %2057 = vmatmul.bf16.gmra.mxu0 %v1444
    %v2058 = vpop.f32.mrf.mxu0
    %v2059 = vadd.f32 %v473, %v2058
    %v2060 = vpop.f32.mrf.mxu0
    %v2061 = vadd.f32 %v473, %v2060
    %2062 = vmatmul.bf16.gmra.mxu0 %v1447
    %v2063 = vpop.f32.mrf.mxu0
    %v2064 = vadd.f32 %v473, %v2063
    %v2065 = vpop.f32.mrf.mxu0
    %v2066 = vadd.f32 %v473, %v2065
    %2067 = vmatmul.bf16.gmra.mxu0 %v1450
    %v2068 = vpop.f32.mrf.mxu0
    %v2069 = vadd.f32 %v473, %v2068
    %v2070 = vpop.f32.mrf.mxu0
    %v2071 = vadd.f32 %v473, %v2070
    %2072 = vmatmul.bf16.gmra.mxu0 %v1453
    %v2073 = vpop.f32.mrf.mxu0
    %v2074 = vadd.f32 %v473, %v2073
    %v2075 = vpop.f32.mrf.mxu0
    %v2076 = vadd.f32 %v473, %v2075
    %2077 = vmatmul.bf16.gmra.mxu0 %v1456
    %v2078 = vpop.f32.mrf.mxu0
    %v2079 = vadd.f32 %v473, %v2078
    %v2080 = vpop.f32.mrf.mxu0
    %v2081 = vadd.f32 %v473, %v2080
    %2082 = vmatmul.bf16.gmra.mxu0 %v1459
    %v2083 = vpop.f32.mrf.mxu0
    %v2084 = vadd.f32 %v473, %v2083
    %v2085 = vpop.f32.mrf.mxu0
    %v2086 = vadd.f32 %v473, %v2085
    %2087 = vmatmul.bf16.gmra.mxu0 %v1462
    %v2088 = vpop.f32.mrf.mxu0
    %v2089 = vadd.f32 %v473, %v2088
    %v2090 = vpop.f32.mrf.mxu0
    %v2091 = vadd.f32 %v473, %v2090
    %2092 = vmatmul.bf16.gmra.mxu0 %v1465
    %v2093 = vpop.f32.mrf.mxu0
    %v2094 = vadd.f32 %v473, %v2093
    %v2095 = vpop.f32.mrf.mxu0
    %v2096 = vadd.f32 %v473, %v2095
    %2097 = vmatmul.bf16.gmra.mxu0 %v1468
    %v2098 = vpop.f32.mrf.mxu0
    %v2099 = vadd.f32 %v473, %v2098
    %v2100 = vpop.f32.mrf.mxu0
    %v2101 = vadd.f32 %v473, %v2100
    %2102 = vmatmul.bf16.gmra.mxu0 %v1471
    %v2103 = vpop.f32.mrf.mxu0
    %v2104 = vadd.f32 %v473, %v2103
    %v2105 = vpop.f32.mrf.mxu0
    %v2106 = vadd.f32 %v473, %v2105
    %2107 = vmatmul.bf16.gmra.mxu0 %v1474
    %v2108 = vpop.f32.mrf.mxu0
    %v2109 = vadd.f32 %v473, %v2108
    %v2110 = vpop.f32.mrf.mxu0
    %v2111 = vadd.f32 %v473, %v2110
    %2112 = vmatmul.bf16.gmra.mxu0 %v1477
    %v2113 = vpop.f32.mrf.mxu0
    %v2114 = vadd.f32 %v473, %v2113
    %v2115 = vpop.f32.mrf.mxu0
    %v2116 = vadd.f32 %v473, %v2115
    %2117 = vmatmul.bf16.gmra.mxu0 %v1480
    %v2118 = vpop.f32.mrf.mxu0
    %v2119 = vadd.f32 %v473, %v2118
    %v2120 = vpop.f32.mrf.mxu0
    %v2121 = vadd.f32 %v473, %v2120
    %2122 = vmatmul.bf16.gmra.mxu0 %v1483
    %v2123 = vpop.f32.mrf.mxu0
    %v2124 = vadd.f32 %v473, %v2123
    %v2125 = vpop.f32.mrf.mxu0
    %v2126 = vadd.f32 %v473, %v2125
    %2127 = vmatmul.bf16.gmra.mxu0 %v1486
    %v2128 = vpop.f32.mrf.mxu0
    %v2129 = vadd.f32 %v473, %v2128
    %v2130 = vpop.f32.mrf.mxu0
    %v2131 = vadd.f32 %v473, %v2130
    %2132 = vmatmul.bf16.gmra.mxu0 %v1489
    %v2133 = vpop.f32.mrf.mxu0
    %v2134 = vadd.f32 %v473, %v2133
    %v2135 = vpop.f32.mrf.mxu0
    %v2136 = vadd.f32 %v473, %v2135
    %2137 = vmatmul.bf16.gmra.mxu0 %v1492
    %v2138 = vpop.f32.mrf.mxu0
    %v2139 = vadd.f32 %v473, %v2138
    %v2140 = vpop.f32.mrf.mxu0
    %v2141 = vadd.f32 %v473, %v2140
    %2142 = vmatmul.bf16.gmra.mxu0 %v1495
    %v2143 = vpop.f32.mrf.mxu0
    %v2144 = vadd.f32 %v473, %v2143
    %v2145 = vpop.f32.mrf.mxu0
    %v2146 = vadd.f32 %v473, %v2145
    %2147 = vmatmul.bf16.gmra.mxu0 %v1498
    %v2148 = vpop.f32.mrf.mxu0
    %v2149 = vadd.f32 %v473, %v2148
    %v2150 = vpop.f32.mrf.mxu0
    %v2151 = vadd.f32 %v473, %v2150
    %2152 = vdwg.mxu0
    %v2153 = vmax.f32 %v1514, 0.0
    %v2154 = vmax.f32 %v1516, 0.0
    %v2155 = vmax.f32 %v1519, 0.0
    %v2156 = vmax.f32 %v1521, 0.0
    %v2157 = vmax.f32 %v1524, 0.0
    %v2158 = vmax.f32 %v1526, 0.0
    %v2159 = vmax.f32 %v1529, 0.0
    %v2160 = vmax.f32 %v1531, 0.0
    %v2161 = vmax.f32 %v1534, 0.0
    %v2162 = vmax.f32 %v1536, 0.0
    %v2163 = vmax.f32 %v1539, 0.0
    %v2164 = vmax.f32 %v1541, 0.0
    %v2165 = vmax.f32 %v1544, 0.0
    %v2166 = vmax.f32 %v1546, 0.0
    %v2167 = vmax.f32 %v1549, 0.0
    %v2168 = vmax.f32 %v1551, 0.0
    %v2169 = vmax.f32 %v1554, 0.0
    %v2170 = vmax.f32 %v1556, 0.0
    %v2171 = vmax.f32 %v1559, 0.0
    %v2172 = vmax.f32 %v1561, 0.0
    %v2173 = vmax.f32 %v1564, 0.0
    %v2174 = vmax.f32 %v1566, 0.0
    %v2175 = vmax.f32 %v1569, 0.0
    %v2176 = vmax.f32 %v1571, 0.0
    %v2177 = vmax.f32 %v1574, 0.0
    %v2178 = vmax.f32 %v1576, 0.0
    %v2179 = vmax.f32 %v1579, 0.0
    %v2180 = vmax.f32 %v1581, 0.0
    %v2181 = vmax.f32 %v1584, 0.0
    %v2182 = vmax.f32 %v1586, 0.0
    %v2183 = vmax.f32 %v1589, 0.0
    %v2184 = vmax.f32 %v1591, 0.0
    %v2185 = vmax.f32 %v1594, 0.0
    %v2186 = vmax.f32 %v1596, 0.0
    %v2187 = vmax.f32 %v1599, 0.0
    %v2188 = vmax.f32 %v1601, 0.0
    %v2189 = vmax.f32 %v1604, 0.0
    %v2190 = vmax.f32 %v1606, 0.0
    %v2191 = vmax.f32 %v1609, 0.0
    %v2192 = vmax.f32 %v1611, 0.0
    %v2193 = vmax.f32 %v1614, 0.0
    %v2194 = vmax.f32 %v1616, 0.0
    %v2195 = vmax.f32 %v1619, 0.0
    %v2196 = vmax.f32 %v1621, 0.0
    %v2197 = vmax.f32 %v1624, 0.0
    %v2198 = vmax.f32 %v1626, 0.0
    %v2199 = vmax.f32 %v1629, 0.0
    %v2200 = vmax.f32 %v1631, 0.0
    %v2201 = vmax.f32 %v1634, 0.0
    %v2202 = vmax.f32 %v1636, 0.0
    %v2203 = vmax.f32 %v1639, 0.0
    %v2204 = vmax.f32 %v1641, 0.0
    %v2205 = vmax.f32 %v1644, 0.0
    %v2206 = vmax.f32 %v1646, 0.0
    %v2207 = vmax.f32 %v1649, 0.0
    %v2208 = vmax.f32 %v1651, 0.0
    %v2209 = vmax.f32 %v1654, 0.0
    %v2210 = vmax.f32 %v1656, 0.0
    %v2211 = vmax.f32 %v1659, 0.0
    %v2212 = vmax.f32 %v1661, 0.0
    %v2213 = vmax.f32 %v1664, 0.0
    %v2214 = vmax.f32 %v1666, 0.0
    %v2215 = vmax.f32 %v1669, 0.0
    %v2216 = vmax.f32 %v1671, 0.0
    %v2217 = vmax.f32 %v1674, 0.0
    %v2218 = vmax.f32 %v1676, 0.0
    %v2219 = vmax.f32 %v1679, 0.0
    %v2220 = vmax.f32 %v1681, 0.0
    %v2221 = vmax.f32 %v1684, 0.0
    %v2222 = vmax.f32 %v1686, 0.0
    %v2223 = vmax.f32 %v1689, 0.0
    %v2224 = vmax.f32 %v1691, 0.0
    %v2225 = vmax.f32 %v1694, 0.0
    %v2226 = vmax.f32 %v1696, 0.0
    %v2227 = vmax.f32 %v1699, 0.0
    %v2228 = vmax.f32 %v1701, 0.0
    %v2229 = vmax.f32 %v1704, 0.0
    %v2230 = vmax.f32 %v1706, 0.0
    %v2231 = vmax.f32 %v1709, 0.0
    %v2232 = vmax.f32 %v1711, 0.0
    %v2233 = vmax.f32 %v1714, 0.0
    %v2234 = vmax.f32 %v1716, 0.0
    %v2235 = vmax.f32 %v1719, 0.0
    %v2236 = vmax.f32 %v1721, 0.0
    %v2237 = vmax.f32 %v1724, 0.0
    %v2238 = vmax.f32 %v1726, 0.0
    %v2239 = vmax.f32 %v1729, 0.0
    %v2240 = vmax.f32 %v1731, 0.0
    %v2241 = vmax.f32 %v1734, 0.0
    %v2242 = vmax.f32 %v1736, 0.0
    %v2243 = vmax.f32 %v1739, 0.0
    %v2244 = vmax.f32 %v1741, 0.0
    %v2245 = vmax.f32 %v1744, 0.0
    %v2246 = vmax.f32 %v1746, 0.0
    %v2247 = vmax.f32 %v1749, 0.0
    %v2248 = vmax.f32 %v1751, 0.0
    %v2249 = vmax.f32 %v1754, 0.0
    %v2250 = vmax.f32 %v1756, 0.0
    %v2251 = vmax.f32 %v1759, 0.0
    %v2252 = vmax.f32 %v1761, 0.0
    %v2253 = vmax.f32 %v1764, 0.0
    %v2254 = vmax.f32 %v1766, 0.0
    %v2255 = vmax.f32 %v1769, 0.0
    %v2256 = vmax.f32 %v1771, 0.0
    %v2257 = vmax.f32 %v1774, 0.0
    %v2258 = vmax.f32 %v1776, 0.0
    %v2259 = vmax.f32 %v1779, 0.0
    %v2260 = vmax.f32 %v1781, 0.0
    %v2261 = vmax.f32 %v1784, 0.0
    %v2262 = vmax.f32 %v1786, 0.0
    %v2263 = vmax.f32 %v1789, 0.0
    %v2264 = vmax.f32 %v1791, 0.0
    %v2265 = vmax.f32 %v1794, 0.0
    %v2266 = vmax.f32 %v1796, 0.0
    %v2267 = vmax.f32 %v1799, 0.0
    %v2268 = vmax.f32 %v1801, 0.0
    %v2269 = vmax.f32 %v1804, 0.0
    %v2270 = vmax.f32 %v1806, 0.0
    %v2271 = vmax.f32 %v1809, 0.0
    %v2272 = vmax.f32 %v1811, 0.0
    %v2273 = vmax.f32 %v1814, 0.0
    %v2274 = vmax.f32 %v1816, 0.0
    %v2275 = vmax.f32 %v1819, 0.0
    %v2276 = vmax.f32 %v1821, 0.0
    %v2277 = vmax.f32 %v1824, 0.0
    %v2278 = vmax.f32 %v1826, 0.0
    %v2279 = vmax.f32 %v1829, 0.0
    %v2280 = vmax.f32 %v1831, 0.0
    %v2281 = vmax.f32 %v1834, 0.0
    %v2282 = vmax.f32 %v1836, 0.0
    %v2283 = vmax.f32 %v1839, 0.0
    %v2284 = vmax.f32 %v1841, 0.0
    %v2285 = vmax.f32 %v1844, 0.0
    %v2286 = vmax.f32 %v1846, 0.0
    %v2287 = vmax.f32 %v1849, 0.0
    %v2288 = vmax.f32 %v1851, 0.0
    %v2289 = vmax.f32 %v1854, 0.0
    %v2290 = vmax.f32 %v1856, 0.0
    %v2291 = vmax.f32 %v1859, 0.0
    %v2292 = vmax.f32 %v1861, 0.0
    %v2293 = vmax.f32 %v1864, 0.0
    %v2294 = vmax.f32 %v1866, 0.0
    %v2295 = vmax.f32 %v1869, 0.0
    %v2296 = vmax.f32 %v1871, 0.0
    %v2297 = vmax.f32 %v1874, 0.0
    %v2298 = vmax.f32 %v1876, 0.0
    %v2299 = vmax.f32 %v1879, 0.0
    %v2300 = vmax.f32 %v1881, 0.0
    %v2301 = vmax.f32 %v1884, 0.0
    %v2302 = vmax.f32 %v1886, 0.0
    %v2303 = vmax.f32 %v1889, 0.0
    %v2304 = vmax.f32 %v1891, 0.0
    %v2305 = vmax.f32 %v1894, 0.0
    %v2306 = vmax.f32 %v1896, 0.0
    %v2307 = vmax.f32 %v1899, 0.0
    %v2308 = vmax.f32 %v1901, 0.0
    %v2309 = vmax.f32 %v1904, 0.0
    %v2310 = vmax.f32 %v1906, 0.0
    %v2311 = vmax.f32 %v1909, 0.0
    %v2312 = vmax.f32 %v1911, 0.0
    %v2313 = vmax.f32 %v1914, 0.0
    %v2314 = vmax.f32 %v1916, 0.0
    %v2315 = vmax.f32 %v1919, 0.0
    %v2316 = vmax.f32 %v1921, 0.0
    %v2317 = vmax.f32 %v1924, 0.0
    %v2318 = vmax.f32 %v1926, 0.0
    %v2319 = vmax.f32 %v1929, 0.0
    %v2320 = vmax.f32 %v1931, 0.0
    %v2321 = vmax.f32 %v1934, 0.0
    %v2322 = vmax.f32 %v1936, 0.0
    %v2323 = vmax.f32 %v1939, 0.0
    %v2324 = vmax.f32 %v1941, 0.0
    %v2325 = vmax.f32 %v1944, 0.0
    %v2326 = vmax.f32 %v1946, 0.0
    %v2327 = vmax.f32 %v1949, 0.0
    %v2328 = vmax.f32 %v1951, 0.0
    %v2329 = vmax.f32 %v1954, 0.0
    %v2330 = vmax.f32 %v1956, 0.0
    %v2331 = vmax.f32 %v1959, 0.0
    %v2332 = vmax.f32 %v1961, 0.0
    %v2333 = vmax.f32 %v1964, 0.0
    %v2334 = vmax.f32 %v1966, 0.0
    %v2335 = vmax.f32 %v1969, 0.0
    %v2336 = vmax.f32 %v1971, 0.0
    %v2337 = vmax.f32 %v1974, 0.0
    %v2338 = vmax.f32 %v1976, 0.0
    %v2339 = vmax.f32 %v1979, 0.0
    %v2340 = vmax.f32 %v1981, 0.0
    %v2341 = vmax.f32 %v1984, 0.0
    %v2342 = vmax.f32 %v1986, 0.0
    %v2343 = vmax.f32 %v1989, 0.0
    %v2344 = vmax.f32 %v1991, 0.0
    %v2345 = vmax.f32 %v1994, 0.0
    %v2346 = vmax.f32 %v1996, 0.0
    %v2347 = vmax.f32 %v1999, 0.0
    %v2348 = vmax.f32 %v2001, 0.0
    %v2349 = vmax.f32 %v2004, 0.0
    %v2350 = vmax.f32 %v2006, 0.0
    %v2351 = vmax.f32 %v2009, 0.0
    %v2352 = vmax.f32 %v2011, 0.0
    %v2353 = vmax.f32 %v2014, 0.0
    %v2354 = vmax.f32 %v2016, 0.0
    %v2355 = vmax.f32 %v2019, 0.0
    %v2356 = vmax.f32 %v2021, 0.0
    %v2357 = vmax.f32 %v2024, 0.0
    %v2358 = vmax.f32 %v2026, 0.0
    %v2359 = vmax.f32 %v2029, 0.0
    %v2360 = vmax.f32 %v2031, 0.0
    %v2361 = vmax.f32 %v2034, 0.0
    %v2362 = vmax.f32 %v2036, 0.0
    %v2363 = vmax.f32 %v2039, 0.0
    %v2364 = vmax.f32 %v2041, 0.0
    %v2365 = vmax.f32 %v2044, 0.0
    %v2366 = vmax.f32 %v2046, 0.0
    %v2367 = vmax.f32 %v2049, 0.0
    %v2368 = vmax.f32 %v2051, 0.0
    %v2369 = vmax.f32 %v2054, 0.0
    %v2370 = vmax.f32 %v2056, 0.0
    %v2371 = vmax.f32 %v2059, 0.0
    %v2372 = vmax.f32 %v2061, 0.0
    %v2373 = vmax.f32 %v2064, 0.0
    %v2374 = vmax.f32 %v2066, 0.0
    %v2375 = vmax.f32 %v2069, 0.0
    %v2376 = vmax.f32 %v2071, 0.0
    %v2377 = vmax.f32 %v2074, 0.0
    %v2378 = vmax.f32 %v2076, 0.0
    %v2379 = vmax.f32 %v2079, 0.0
    %v2380 = vmax.f32 %v2081, 0.0
    %v2381 = vmax.f32 %v2084, 0.0
    %v2382 = vmax.f32 %v2086, 0.0
    %v2383 = vmax.f32 %v2089, 0.0
    %v2384 = vmax.f32 %v2091, 0.0
    %v2385 = vmax.f32 %v2094, 0.0
    %v2386 = vmax.f32 %v2096, 0.0
    %v2387 = vmax.f32 %v2099, 0.0
    %v2388 = vmax.f32 %v2101, 0.0
    %v2389 = vmax.f32 %v2104, 0.0
    %v2390 = vmax.f32 %v2106, 0.0
    %v2391 = vmax.f32 %v2109, 0.0
    %v2392 = vmax.f32 %v2111, 0.0
    %v2393 = vmax.f32 %v2114, 0.0
    %v2394 = vmax.f32 %v2116, 0.0
    %v2395 = vmax.f32 %v2119, 0.0
    %v2396 = vmax.f32 %v2121, 0.0
    %v2397 = vmax.f32 %v2124, 0.0
    %v2398 = vmax.f32 %v2126, 0.0
    %v2399 = vmax.f32 %v2129, 0.0
    %v2400 = vmax.f32 %v2131, 0.0
    %v2401 = vmax.f32 %v2134, 0.0
    %v2402 = vmax.f32 %v2136, 0.0
    %v2403 = vmax.f32 %v2139, 0.0
    %v2404 = vmax.f32 %v2141, 0.0
    %v2405 = vmax.f32 %v2144, 0.0
    %v2406 = vmax.f32 %v2146, 0.0
    %v2407 = vmax.f32 %v2149, 0.0
    %v2408 = vmax.f32 %v2151, 0.0
    %v2409 = vsel %vm121, %v2153, 0.0
    %v2410 = vsel %vm121, %v2154, 0.0
    %v2411 = vadd.f32 %v2409, %v2410
    %v2412 = vsel %vm121, %v2155, 0.0
    %v2413 = vadd.f32 %v2411, %v2412
    %v2414 = vsel %vm121, %v2156, 0.0
    %v2415 = vadd.f32 %v2413, %v2414
    %v2416 = vsel %vm121, %v2157, 0.0
    %v2417 = vadd.f32 %v2415, %v2416
    %v2418 = vsel %vm121, %v2158, 0.0
    %v2419 = vadd.f32 %v2417, %v2418
    %v2420 = vsel %vm121, %v2159, 0.0
    %v2421 = vadd.f32 %v2419, %v2420
    %v2422 = vsel %vm121, %v2160, 0.0
    %v2423 = vadd.f32 %v2421, %v2422
    %v2424 = vsel %vm121, %v2161, 0.0
    %v2425 = vadd.f32 %v2423, %v2424
    %v2426 = vsel %vm121, %v2162, 0.0
    %v2427 = vadd.f32 %v2425, %v2426
    %v2428 = vsel %vm121, %v2163, 0.0
    %v2429 = vadd.f32 %v2427, %v2428
    %v2430 = vsel %vm121, %v2164, 0.0
    %v2431 = vadd.f32 %v2429, %v2430
    %v2432 = vsel %vm121, %v2165, 0.0
    %v2433 = vadd.f32 %v2431, %v2432
    %v2434 = vsel %vm121, %v2166, 0.0
    %v2435 = vadd.f32 %v2433, %v2434
    %v2436 = vsel %vm121, %v2167, 0.0
    %v2437 = vadd.f32 %v2435, %v2436
    %v2438 = vsel %vm121, %v2168, 0.0
    %v2439 = vadd.f32 %v2437, %v2438
    %v2440 = vsel %vm121, %v2169, 0.0
    %v2441 = vadd.f32 %v2439, %v2440
    %v2442 = vsel %vm121, %v2170, 0.0
    %v2443 = vadd.f32 %v2441, %v2442
    %v2444 = vsel %vm121, %v2171, 0.0
    %v2445 = vadd.f32 %v2443, %v2444
    %v2446 = vsel %vm121, %v2172, 0.0
    %v2447 = vadd.f32 %v2445, %v2446
    %v2448 = vsel %vm121, %v2173, 0.0
    %v2449 = vadd.f32 %v2447, %v2448
    %v2450 = vsel %vm121, %v2174, 0.0
    %v2451 = vadd.f32 %v2449, %v2450
    %v2452 = vsel %vm121, %v2175, 0.0
    %v2453 = vadd.f32 %v2451, %v2452
    %v2454 = vsel %vm121, %v2176, 0.0
    %v2455 = vadd.f32 %v2453, %v2454
    %v2456 = vsel %vm121, %v2177, 0.0
    %v2457 = vadd.f32 %v2455, %v2456
    %v2458 = vsel %vm121, %v2178, 0.0
    %v2459 = vadd.f32 %v2457, %v2458
    %v2460 = vsel %vm121, %v2179, 0.0
    %v2461 = vadd.f32 %v2459, %v2460
    %v2462 = vsel %vm121, %v2180, 0.0
    %v2463 = vadd.f32 %v2461, %v2462
    %v2464 = vsel %vm121, %v2181, 0.0
    %v2465 = vadd.f32 %v2463, %v2464
    %v2466 = vsel %vm121, %v2182, 0.0
    %v2467 = vadd.f32 %v2465, %v2466
    %v2468 = vsel %vm121, %v2183, 0.0
    %v2469 = vadd.f32 %v2467, %v2468
    %v2470 = vsel %vm121, %v2184, 0.0
    %v2471 = vadd.f32 %v2469, %v2470
    %v2472 = vrot.slane %v2471, 4
    %v2473 = vadd.f32 %v2471, %v2472
    %v2474 = vrot.slane %v2473, 2
    %v2475 = vadd.f32 %v2473, %v2474
    %v2476 = vrot.slane %v2475, 1
    %v2477 = vadd.f32 %v2475, %v2476
    %v2478 = vsel %vm121, %v2185, 0.0
    %v2479 = vsel %vm121, %v2186, 0.0
    %v2480 = vadd.f32 %v2478, %v2479
    %v2481 = vsel %vm121, %v2187, 0.0
    %v2482 = vadd.f32 %v2480, %v2481
    %v2483 = vsel %vm121, %v2188, 0.0
    %v2484 = vadd.f32 %v2482, %v2483
    %v2485 = vsel %vm121, %v2189, 0.0
    %v2486 = vadd.f32 %v2484, %v2485
    %v2487 = vsel %vm121, %v2190, 0.0
    %v2488 = vadd.f32 %v2486, %v2487
    %v2489 = vsel %vm121, %v2191, 0.0
    %v2490 = vadd.f32 %v2488, %v2489
    %v2491 = vsel %vm121, %v2192, 0.0
    %v2492 = vadd.f32 %v2490, %v2491
    %v2493 = vsel %vm121, %v2193, 0.0
    %v2494 = vadd.f32 %v2492, %v2493
    %v2495 = vsel %vm121, %v2194, 0.0
    %v2496 = vadd.f32 %v2494, %v2495
    %v2497 = vsel %vm121, %v2195, 0.0
    %v2498 = vadd.f32 %v2496, %v2497
    %v2499 = vsel %vm121, %v2196, 0.0
    %v2500 = vadd.f32 %v2498, %v2499
    %v2501 = vsel %vm121, %v2197, 0.0
    %v2502 = vadd.f32 %v2500, %v2501
    %v2503 = vsel %vm121, %v2198, 0.0
    %v2504 = vadd.f32 %v2502, %v2503
    %v2505 = vsel %vm121, %v2199, 0.0
    %v2506 = vadd.f32 %v2504, %v2505
    %v2507 = vsel %vm121, %v2200, 0.0
    %v2508 = vadd.f32 %v2506, %v2507
    %v2509 = vsel %vm121, %v2201, 0.0
    %v2510 = vadd.f32 %v2508, %v2509
    %v2511 = vsel %vm121, %v2202, 0.0
    %v2512 = vadd.f32 %v2510, %v2511
    %v2513 = vsel %vm121, %v2203, 0.0
    %v2514 = vadd.f32 %v2512, %v2513
    %v2515 = vsel %vm121, %v2204, 0.0
    %v2516 = vadd.f32 %v2514, %v2515
    %v2517 = vsel %vm121, %v2205, 0.0
    %v2518 = vadd.f32 %v2516, %v2517
    %v2519 = vsel %vm121, %v2206, 0.0
    %v2520 = vadd.f32 %v2518, %v2519
    %v2521 = vsel %vm121, %v2207, 0.0
    %v2522 = vadd.f32 %v2520, %v2521
    %v2523 = vsel %vm121, %v2208, 0.0
    %v2524 = vadd.f32 %v2522, %v2523
    %v2525 = vsel %vm121, %v2209, 0.0
    %v2526 = vadd.f32 %v2524, %v2525
    %v2527 = vsel %vm121, %v2210, 0.0
    %v2528 = vadd.f32 %v2526, %v2527
    %v2529 = vsel %vm121, %v2211, 0.0
    %v2530 = vadd.f32 %v2528, %v2529
    %v2531 = vsel %vm121, %v2212, 0.0
    %v2532 = vadd.f32 %v2530, %v2531
    %v2533 = vsel %vm121, %v2213, 0.0
    %v2534 = vadd.f32 %v2532, %v2533
    %v2535 = vsel %vm121, %v2214, 0.0
    %v2536 = vadd.f32 %v2534, %v2535
    %v2537 = vsel %vm121, %v2215, 0.0
    %v2538 = vadd.f32 %v2536, %v2537
    %v2539 = vsel %vm121, %v2216, 0.0
    %v2540 = vadd.f32 %v2538, %v2539
    %v2541 = vrot.slane %v2540, 4
    %v2542 = vadd.f32 %v2540, %v2541
    %v2543 = vrot.slane %v2542, 2
    %v2544 = vadd.f32 %v2542, %v2543
    %v2545 = vrot.slane %v2544, 1
    %v2546 = vadd.f32 %v2544, %v2545
    %v2547 = vsel %vm121, %v2217, 0.0
    %v2548 = vsel %vm121, %v2218, 0.0
    %v2549 = vadd.f32 %v2547, %v2548
    %v2550 = vsel %vm121, %v2219, 0.0
    %v2551 = vadd.f32 %v2549, %v2550
    %v2552 = vsel %vm121, %v2220, 0.0
    %v2553 = vadd.f32 %v2551, %v2552
    %v2554 = vsel %vm121, %v2221, 0.0
    %v2555 = vadd.f32 %v2553, %v2554
    %v2556 = vsel %vm121, %v2222, 0.0
    %v2557 = vadd.f32 %v2555, %v2556
    %v2558 = vsel %vm121, %v2223, 0.0
    %v2559 = vadd.f32 %v2557, %v2558
    %v2560 = vsel %vm121, %v2224, 0.0
    %v2561 = vadd.f32 %v2559, %v2560
    %v2562 = vsel %vm121, %v2225, 0.0
    %v2563 = vadd.f32 %v2561, %v2562
    %v2564 = vsel %vm121, %v2226, 0.0
    %v2565 = vadd.f32 %v2563, %v2564
    %v2566 = vsel %vm121, %v2227, 0.0
    %v2567 = vadd.f32 %v2565, %v2566
    %v2568 = vsel %vm121, %v2228, 0.0
    %v2569 = vadd.f32 %v2567, %v2568
    %v2570 = vsel %vm121, %v2229, 0.0
    %v2571 = vadd.f32 %v2569, %v2570
    %v2572 = vsel %vm121, %v2230, 0.0
    %v2573 = vadd.f32 %v2571, %v2572
    %v2574 = vsel %vm121, %v2231, 0.0
    %v2575 = vadd.f32 %v2573, %v2574
    %v2576 = vsel %vm121, %v2232, 0.0
    %v2577 = vadd.f32 %v2575, %v2576
    %v2578 = vsel %vm121, %v2233, 0.0
    %v2579 = vadd.f32 %v2577, %v2578
    %v2580 = vsel %vm121, %v2234, 0.0
    %v2581 = vadd.f32 %v2579, %v2580
    %v2582 = vsel %vm121, %v2235, 0.0
    %v2583 = vadd.f32 %v2581, %v2582
    %v2584 = vsel %vm121, %v2236, 0.0
    %v2585 = vadd.f32 %v2583, %v2584
    %v2586 = vsel %vm121, %v2237, 0.0
    %v2587 = vadd.f32 %v2585, %v2586
    %v2588 = vsel %vm121, %v2238, 0.0
    %v2589 = vadd.f32 %v2587, %v2588
    %v2590 = vsel %vm121, %v2239, 0.0
    %v2591 = vadd.f32 %v2589, %v2590
    %v2592 = vsel %vm121, %v2240, 0.0
    %v2593 = vadd.f32 %v2591, %v2592
    %v2594 = vsel %vm121, %v2241, 0.0
    %v2595 = vadd.f32 %v2593, %v2594
    %v2596 = vsel %vm121, %v2242, 0.0
    %v2597 = vadd.f32 %v2595, %v2596
    %v2598 = vsel %vm121, %v2243, 0.0
    %v2599 = vadd.f32 %v2597, %v2598
    %v2600 = vsel %vm121, %v2244, 0.0
    %v2601 = vadd.f32 %v2599, %v2600
    %v2602 = vsel %vm121, %v2245, 0.0
    %v2603 = vadd.f32 %v2601, %v2602
    %v2604 = vsel %vm121, %v2246, 0.0
    %v2605 = vadd.f32 %v2603, %v2604
    %v2606 = vsel %vm121, %v2247, 0.0
    %v2607 = vadd.f32 %v2605, %v2606
    %v2608 = vsel %vm121, %v2248, 0.0
    %v2609 = vadd.f32 %v2607, %v2608
    %v2610 = vrot.slane %v2609, 4
    %v2611 = vadd.f32 %v2609, %v2610
    %v2612 = vrot.slane %v2611, 2
    %v2613 = vadd.f32 %v2611, %v2612
    %v2614 = vrot.slane %v2613, 1
    %v2615 = vadd.f32 %v2613, %v2614
    %v2616 = vsel %vm121, %v2249, 0.0
    %v2617 = vsel %vm121, %v2250, 0.0
    %v2618 = vadd.f32 %v2616, %v2617
    %v2619 = vsel %vm121, %v2251, 0.0
    %v2620 = vadd.f32 %v2618, %v2619
    %v2621 = vsel %vm121, %v2252, 0.0
    %v2622 = vadd.f32 %v2620, %v2621
    %v2623 = vsel %vm121, %v2253, 0.0
    %v2624 = vadd.f32 %v2622, %v2623
    %v2625 = vsel %vm121, %v2254, 0.0
    %v2626 = vadd.f32 %v2624, %v2625
    %v2627 = vsel %vm121, %v2255, 0.0
    %v2628 = vadd.f32 %v2626, %v2627
    %v2629 = vsel %vm121, %v2256, 0.0
    %v2630 = vadd.f32 %v2628, %v2629
    %v2631 = vsel %vm121, %v2257, 0.0
    %v2632 = vadd.f32 %v2630, %v2631
    %v2633 = vsel %vm121, %v2258, 0.0
    %v2634 = vadd.f32 %v2632, %v2633
    %v2635 = vsel %vm121, %v2259, 0.0
    %v2636 = vadd.f32 %v2634, %v2635
    %v2637 = vsel %vm121, %v2260, 0.0
    %v2638 = vadd.f32 %v2636, %v2637
    %v2639 = vsel %vm121, %v2261, 0.0
    %v2640 = vadd.f32 %v2638, %v2639
    %v2641 = vsel %vm121, %v2262, 0.0
    %v2642 = vadd.f32 %v2640, %v2641
    %v2643 = vsel %vm121, %v2263, 0.0
    %v2644 = vadd.f32 %v2642, %v2643
    %v2645 = vsel %vm121, %v2264, 0.0
    %v2646 = vadd.f32 %v2644, %v2645
    %v2647 = vsel %vm121, %v2265, 0.0
    %v2648 = vadd.f32 %v2646, %v2647
    %v2649 = vsel %vm121, %v2266, 0.0
    %v2650 = vadd.f32 %v2648, %v2649
    %v2651 = vsel %vm121, %v2267, 0.0
    %v2652 = vadd.f32 %v2650, %v2651
    %v2653 = vsel %vm121, %v2268, 0.0
    %v2654 = vadd.f32 %v2652, %v2653
    %v2655 = vsel %vm121, %v2269, 0.0
    %v2656 = vadd.f32 %v2654, %v2655
    %v2657 = vsel %vm121, %v2270, 0.0
    %v2658 = vadd.f32 %v2656, %v2657
    %v2659 = vsel %vm121, %v2271, 0.0
    %v2660 = vadd.f32 %v2658, %v2659
    %v2661 = vsel %vm121, %v2272, 0.0
    %v2662 = vadd.f32 %v2660, %v2661
    %v2663 = vsel %vm121, %v2273, 0.0
    %v2664 = vadd.f32 %v2662, %v2663
    %v2665 = vsel %vm121, %v2274, 0.0
    %v2666 = vadd.f32 %v2664, %v2665
    %v2667 = vsel %vm121, %v2275, 0.0
    %v2668 = vadd.f32 %v2666, %v2667
    %v2669 = vsel %vm121, %v2276, 0.0
    %v2670 = vadd.f32 %v2668, %v2669
    %v2671 = vsel %vm121, %v2277, 0.0
    %v2672 = vadd.f32 %v2670, %v2671
    %v2673 = vsel %vm121, %v2278, 0.0
    %v2674 = vadd.f32 %v2672, %v2673
    %v2675 = vsel %vm121, %v2279, 0.0
    %v2676 = vadd.f32 %v2674, %v2675
    %v2677 = vsel %vm121, %v2280, 0.0
    %v2678 = vadd.f32 %v2676, %v2677
    %v2679 = vrot.slane %v2678, 4
    %v2680 = vadd.f32 %v2678, %v2679
    %v2681 = vrot.slane %v2680, 2
    %v2682 = vadd.f32 %v2680, %v2681
    %v2683 = vrot.slane %v2682, 1
    %v2684 = vadd.f32 %v2682, %v2683
    %v2685 = vsel %vm121, %v2281, 0.0
    %v2686 = vsel %vm121, %v2282, 0.0
    %v2687 = vadd.f32 %v2685, %v2686
    %v2688 = vsel %vm121, %v2283, 0.0
    %v2689 = vadd.f32 %v2687, %v2688
    %v2690 = vsel %vm121, %v2284, 0.0
    %v2691 = vadd.f32 %v2689, %v2690
    %v2692 = vsel %vm121, %v2285, 0.0
    %v2693 = vadd.f32 %v2691, %v2692
    %v2694 = vsel %vm121, %v2286, 0.0
    %v2695 = vadd.f32 %v2693, %v2694
    %v2696 = vsel %vm121, %v2287, 0.0
    %v2697 = vadd.f32 %v2695, %v2696
    %v2698 = vsel %vm121, %v2288, 0.0
    %v2699 = vadd.f32 %v2697, %v2698
    %v2700 = vsel %vm121, %v2289, 0.0
    %v2701 = vadd.f32 %v2699, %v2700
    %v2702 = vsel %vm121, %v2290, 0.0
    %v2703 = vadd.f32 %v2701, %v2702
    %v2704 = vsel %vm121, %v2291, 0.0
    %v2705 = vadd.f32 %v2703, %v2704
    %v2706 = vsel %vm121, %v2292, 0.0
    %v2707 = vadd.f32 %v2705, %v2706
    %v2708 = vsel %vm121, %v2293, 0.0
    %v2709 = vadd.f32 %v2707, %v2708
    %v2710 = vsel %vm121, %v2294, 0.0
    %v2711 = vadd.f32 %v2709, %v2710
    %v2712 = vsel %vm121, %v2295, 0.0
    %v2713 = vadd.f32 %v2711, %v2712
    %v2714 = vsel %vm121, %v2296, 0.0
    %v2715 = vadd.f32 %v2713, %v2714
    %v2716 = vsel %vm121, %v2297, 0.0
    %v2717 = vadd.f32 %v2715, %v2716
    %v2718 = vsel %vm121, %v2298, 0.0
    %v2719 = vadd.f32 %v2717, %v2718
    %v2720 = vsel %vm121, %v2299, 0.0
    %v2721 = vadd.f32 %v2719, %v2720
    %v2722 = vsel %vm121, %v2300, 0.0
    %v2723 = vadd.f32 %v2721, %v2722
    %v2724 = vsel %vm121, %v2301, 0.0
    %v2725 = vadd.f32 %v2723, %v2724
    %v2726 = vsel %vm121, %v2302, 0.0
    %v2727 = vadd.f32 %v2725, %v2726
    %v2728 = vsel %vm121, %v2303, 0.0
    %v2729 = vadd.f32 %v2727, %v2728
    %v2730 = vsel %vm121, %v2304, 0.0
    %v2731 = vadd.f32 %v2729, %v2730
    %v2732 = vsel %vm121, %v2305, 0.0
    %v2733 = vadd.f32 %v2731, %v2732
    %v2734 = vsel %vm121, %v2306, 0.0
    %v2735 = vadd.f32 %v2733, %v2734
    %v2736 = vsel %vm121, %v2307, 0.0
    %v2737 = vadd.f32 %v2735, %v2736
    %v2738 = vsel %vm121, %v2308, 0.0
    %v2739 = vadd.f32 %v2737, %v2738
    %v2740 = vsel %vm121, %v2309, 0.0
    %v2741 = vadd.f32 %v2739, %v2740
    %v2742 = vsel %vm121, %v2310, 0.0
    %v2743 = vadd.f32 %v2741, %v2742
    %v2744 = vsel %vm121, %v2311, 0.0
    %v2745 = vadd.f32 %v2743, %v2744
    %v2746 = vsel %vm121, %v2312, 0.0
    %v2747 = vadd.f32 %v2745, %v2746
    %v2748 = vrot.slane %v2747, 4
    %v2749 = vadd.f32 %v2747, %v2748
    %v2750 = vrot.slane %v2749, 2
    %v2751 = vadd.f32 %v2749, %v2750
    %v2752 = vrot.slane %v2751, 1
    %v2753 = vadd.f32 %v2751, %v2752
    %v2754 = vsel %vm121, %v2313, 0.0
    %v2755 = vsel %vm121, %v2314, 0.0
    %v2756 = vadd.f32 %v2754, %v2755
    %v2757 = vsel %vm121, %v2315, 0.0
    %v2758 = vadd.f32 %v2756, %v2757
    %v2759 = vsel %vm121, %v2316, 0.0
    %v2760 = vadd.f32 %v2758, %v2759
    %v2761 = vsel %vm121, %v2317, 0.0
    %v2762 = vadd.f32 %v2760, %v2761
    %v2763 = vsel %vm121, %v2318, 0.0
    %v2764 = vadd.f32 %v2762, %v2763
    %v2765 = vsel %vm121, %v2319, 0.0
    %v2766 = vadd.f32 %v2764, %v2765
    %v2767 = vsel %vm121, %v2320, 0.0
    %v2768 = vadd.f32 %v2766, %v2767
    %v2769 = vsel %vm121, %v2321, 0.0
    %v2770 = vadd.f32 %v2768, %v2769
    %v2771 = vsel %vm121, %v2322, 0.0
    %v2772 = vadd.f32 %v2770, %v2771
    %v2773 = vsel %vm121, %v2323, 0.0
    %v2774 = vadd.f32 %v2772, %v2773
    %v2775 = vsel %vm121, %v2324, 0.0
    %v2776 = vadd.f32 %v2774, %v2775
    %v2777 = vsel %vm121, %v2325, 0.0
    %v2778 = vadd.f32 %v2776, %v2777
    %v2779 = vsel %vm121, %v2326, 0.0
    %v2780 = vadd.f32 %v2778, %v2779
    %v2781 = vsel %vm121, %v2327, 0.0
    %v2782 = vadd.f32 %v2780, %v2781
    %v2783 = vsel %vm121, %v2328, 0.0
    %v2784 = vadd.f32 %v2782, %v2783
    %v2785 = vsel %vm121, %v2329, 0.0
    %v2786 = vadd.f32 %v2784, %v2785
    %v2787 = vsel %vm121, %v2330, 0.0
    %v2788 = vadd.f32 %v2786, %v2787
    %v2789 = vsel %vm121, %v2331, 0.0
    %v2790 = vadd.f32 %v2788, %v2789
    %v2791 = vsel %vm121, %v2332, 0.0
    %v2792 = vadd.f32 %v2790, %v2791
    %v2793 = vsel %vm121, %v2333, 0.0
    %v2794 = vadd.f32 %v2792, %v2793
    %v2795 = vsel %vm121, %v2334, 0.0
    %v2796 = vadd.f32 %v2794, %v2795
    %v2797 = vsel %vm121, %v2335, 0.0
    %v2798 = vadd.f32 %v2796, %v2797
    %v2799 = vsel %vm121, %v2336, 0.0
    %v2800 = vadd.f32 %v2798, %v2799
    %v2801 = vsel %vm121, %v2337, 0.0
    %v2802 = vadd.f32 %v2800, %v2801
    %v2803 = vsel %vm121, %v2338, 0.0
    %v2804 = vadd.f32 %v2802, %v2803
    %v2805 = vsel %vm121, %v2339, 0.0
    %v2806 = vadd.f32 %v2804, %v2805
    %v2807 = vsel %vm121, %v2340, 0.0
    %v2808 = vadd.f32 %v2806, %v2807
    %v2809 = vsel %vm121, %v2341, 0.0
    %v2810 = vadd.f32 %v2808, %v2809
    %v2811 = vsel %vm121, %v2342, 0.0
    %v2812 = vadd.f32 %v2810, %v2811
    %v2813 = vsel %vm121, %v2343, 0.0
    %v2814 = vadd.f32 %v2812, %v2813
    %v2815 = vsel %vm121, %v2344, 0.0
    %v2816 = vadd.f32 %v2814, %v2815
    %v2817 = vrot.slane %v2816, 4
    %v2818 = vadd.f32 %v2816, %v2817
    %v2819 = vrot.slane %v2818, 2
    %v2820 = vadd.f32 %v2818, %v2819
    %v2821 = vrot.slane %v2820, 1
    %v2822 = vadd.f32 %v2820, %v2821
    %v2823 = vsel %vm121, %v2345, 0.0
    %v2824 = vsel %vm121, %v2346, 0.0
    %v2825 = vadd.f32 %v2823, %v2824
    %v2826 = vsel %vm121, %v2347, 0.0
    %v2827 = vadd.f32 %v2825, %v2826
    %v2828 = vsel %vm121, %v2348, 0.0
    %v2829 = vadd.f32 %v2827, %v2828
    %v2830 = vsel %vm121, %v2349, 0.0
    %v2831 = vadd.f32 %v2829, %v2830
    %v2832 = vsel %vm121, %v2350, 0.0
    %v2833 = vadd.f32 %v2831, %v2832
    %v2834 = vsel %vm121, %v2351, 0.0
    %v2835 = vadd.f32 %v2833, %v2834
    %v2836 = vsel %vm121, %v2352, 0.0
    %v2837 = vadd.f32 %v2835, %v2836
    %v2838 = vsel %vm121, %v2353, 0.0
    %v2839 = vadd.f32 %v2837, %v2838
    %v2840 = vsel %vm121, %v2354, 0.0
    %v2841 = vadd.f32 %v2839, %v2840
    %v2842 = vsel %vm121, %v2355, 0.0
    %v2843 = vadd.f32 %v2841, %v2842
    %v2844 = vsel %vm121, %v2356, 0.0
    %v2845 = vadd.f32 %v2843, %v2844
    %v2846 = vsel %vm121, %v2357, 0.0
    %v2847 = vadd.f32 %v2845, %v2846
    %v2848 = vsel %vm121, %v2358, 0.0
    %v2849 = vadd.f32 %v2847, %v2848
    %v2850 = vsel %vm121, %v2359, 0.0
    %v2851 = vadd.f32 %v2849, %v2850
    %v2852 = vsel %vm121, %v2360, 0.0
    %v2853 = vadd.f32 %v2851, %v2852
    %v2854 = vsel %vm121, %v2361, 0.0
    %v2855 = vadd.f32 %v2853, %v2854
    %v2856 = vsel %vm121, %v2362, 0.0
    %v2857 = vadd.f32 %v2855, %v2856
    %v2858 = vsel %vm121, %v2363, 0.0
    %v2859 = vadd.f32 %v2857, %v2858
    %v2860 = vsel %vm121, %v2364, 0.0
    %v2861 = vadd.f32 %v2859, %v2860
    %v2862 = vsel %vm121, %v2365, 0.0
    %v2863 = vadd.f32 %v2861, %v2862
    %v2864 = vsel %vm121, %v2366, 0.0
    %v2865 = vadd.f32 %v2863, %v2864
    %v2866 = vsel %vm121, %v2367, 0.0
    %v2867 = vadd.f32 %v2865, %v2866
    %v2868 = vsel %vm121, %v2368, 0.0
    %v2869 = vadd.f32 %v2867, %v2868
    %v2870 = vsel %vm121, %v2369, 0.0
    %v2871 = vadd.f32 %v2869, %v2870
    %v2872 = vsel %vm121, %v2370, 0.0
    %v2873 = vadd.f32 %v2871, %v2872
    %v2874 = vsel %vm121, %v2371, 0.0
    %v2875 = vadd.f32 %v2873, %v2874
    %v2876 = vsel %vm121, %v2372, 0.0
    %v2877 = vadd.f32 %v2875, %v2876
    %v2878 = vsel %vm121, %v2373, 0.0
    %v2879 = vadd.f32 %v2877, %v2878
    %v2880 = vsel %vm121, %v2374, 0.0
    %v2881 = vadd.f32 %v2879, %v2880
    %v2882 = vsel %vm121, %v2375, 0.0
    %v2883 = vadd.f32 %v2881, %v2882
    %v2884 = vsel %vm121, %v2376, 0.0
    %v2885 = vadd.f32 %v2883, %v2884
    %v2886 = vrot.slane %v2885, 4
    %v2887 = vadd.f32 %v2885, %v2886
    %v2888 = vrot.slane %v2887, 2
    %v2889 = vadd.f32 %v2887, %v2888
    %v2890 = vrot.slane %v2889, 1
    %v2891 = vadd.f32 %v2889, %v2890
    %v2892 = vsel %vm121, %v2377, 0.0
    %v2893 = vsel %vm121, %v2378, 0.0
    %v2894 = vadd.f32 %v2892, %v2893
    %v2895 = vsel %vm121, %v2379, 0.0
    %v2896 = vadd.f32 %v2894, %v2895
    %v2897 = vsel %vm121, %v2380, 0.0
    %v2898 = vadd.f32 %v2896, %v2897
    %v2899 = vsel %vm121, %v2381, 0.0
    %v2900 = vadd.f32 %v2898, %v2899
    %v2901 = vsel %vm121, %v2382, 0.0
    %v2902 = vadd.f32 %v2900, %v2901
    %v2903 = vsel %vm121, %v2383, 0.0
    %v2904 = vadd.f32 %v2902, %v2903
    %v2905 = vsel %vm121, %v2384, 0.0
    %v2906 = vadd.f32 %v2904, %v2905
    %v2907 = vsel %vm121, %v2385, 0.0
    %v2908 = vadd.f32 %v2906, %v2907
    %v2909 = vsel %vm121, %v2386, 0.0
    %v2910 = vadd.f32 %v2908, %v2909
    %v2911 = vsel %vm121, %v2387, 0.0
    %v2912 = vadd.f32 %v2910, %v2911
    %v2913 = vsel %vm121, %v2388, 0.0
    %v2914 = vadd.f32 %v2912, %v2913
    %v2915 = vsel %vm121, %v2389, 0.0
    %v2916 = vadd.f32 %v2914, %v2915
    %v2917 = vsel %vm121, %v2390, 0.0
    %v2918 = vadd.f32 %v2916, %v2917
    %v2919 = vsel %vm121, %v2391, 0.0
    %v2920 = vadd.f32 %v2918, %v2919
    %v2921 = vsel %vm121, %v2392, 0.0
    %v2922 = vadd.f32 %v2920, %v2921
    %v2923 = vsel %vm121, %v2393, 0.0
    %v2924 = vadd.f32 %v2922, %v2923
    %v2925 = vsel %vm121, %v2394, 0.0
    %v2926 = vadd.f32 %v2924, %v2925
    %v2927 = vsel %vm121, %v2395, 0.0
    %v2928 = vadd.f32 %v2926, %v2927
    %v2929 = vsel %vm121, %v2396, 0.0
    %v2930 = vadd.f32 %v2928, %v2929
    %v2931 = vsel %vm121, %v2397, 0.0
    %v2932 = vadd.f32 %v2930, %v2931
    %v2933 = vsel %vm121, %v2398, 0.0
    %v2934 = vadd.f32 %v2932, %v2933
    %v2935 = vsel %vm121, %v2399, 0.0
    %v2936 = vadd.f32 %v2934, %v2935
    %v2937 = vsel %vm121, %v2400, 0.0
    %v2938 = vadd.f32 %v2936, %v2937
    %v2939 = vsel %vm121, %v2401, 0.0
    %v2940 = vadd.f32 %v2938, %v2939
    %v2941 = vsel %vm121, %v2402, 0.0
    %v2942 = vadd.f32 %v2940, %v2941
    %v2943 = vsel %vm121, %v2403, 0.0
    %v2944 = vadd.f32 %v2942, %v2943
    %v2945 = vsel %vm121, %v2404, 0.0
    %v2946 = vadd.f32 %v2944, %v2945
    %v2947 = vsel %vm121, %v2405, 0.0
    %v2948 = vadd.f32 %v2946, %v2947
    %v2949 = vsel %vm121, %v2406, 0.0
    %v2950 = vadd.f32 %v2948, %v2949
    %v2951 = vsel %vm121, %v2407, 0.0
    %v2952 = vadd.f32 %v2950, %v2951
    %v2953 = vsel %vm121, %v2408, 0.0
    %v2954 = vadd.f32 %v2952, %v2953
    %v2955 = vrot.slane %v2954, 4
    %v2956 = vadd.f32 %v2954, %v2955
    %v2957 = vrot.slane %v2956, 2
    %v2958 = vadd.f32 %v2956, %v2957
    %v2959 = vrot.slane %v2958, 1
    %v2960 = vadd.f32 %v2958, %v2959
    %vm2961 = vcmask 1040384
    %v2962 = vsel %vm2961, %v2477, %v2546
    %v2963 = vsel %vm1500, %v2962, %v2615
    %vm2964 = vcmask 1042432
    %v2965 = vsel %vm2964, %v2963, %v2684
    %vm2966 = vcmask 1043456
    %v2967 = vsel %vm2966, %v2965, %v2753
    %vm2968 = vcmask 1044480
    %v2969 = vsel %vm2968, %v2967, %v2822
    %vm2970 = vcmask 1045504
    %v2971 = vsel %vm2970, %v2969, %v2891
    %vm2972 = vcmask 1046528
    %v2973 = vsel %vm2972, %v2971, %v2960
    %v2974 = vmul.f32 %v2973, 0.00390625
    %v2976 = vperm.slane %v463, 0
    %v2979 = vsel %vm121, %v2974, 0
    %2981 = vmatpush.msra.mxu0 0.0
    %2982 = vmatpush.msra.mxu0 0.0
    %2983 = vmatpush.msra.mxu0 0.0
    %2984 = vmatpush.msra.mxu0 0.0
    %2985 = vmatpush.msra.mxu0 0.0
    %2986 = vmatpush.msra.mxu0 0.0
    %2987 = vmatpush.msra.mxu0 0.0
    %2988 = vmatpush.msra.mxu0 0.0
    %2989 = vmatpush.msra.mxu0 0.0
    %2990 = vmatpush.msra.mxu0 0.0
    %2991 = vmatpush.msra.mxu0 0.0
    %2992 = vmatpush.msra.mxu0 0.0
    %2993 = vmatpush.msra.mxu0 %v462
    %2994 = vmatpush.msra.mxu0 %v461
    %2995 = vmatpush.msra.mxu0 %v460
    %2996 = vmatpush.msra.mxu0 %v459
    %2997 = vmatmul.f32.gmra.mxu0 %v2979
    %v2998 = vpop.f32.mrf.mxu0
    %v2999 = vadd.f32 %v2976, %v2998
    %3000 = vdwg.mxu0
    %v3001 = vmax.f32 %v2999, 0.0
    %v3003 = vperm.slane %v468, 0
    %v3006 = vsel %vm121, %v3001, 0
    %3008 = vmatpush.msra.mxu0 0.0
    %3009 = vmatpush.msra.mxu0 0.0
    %3010 = vmatpush.msra.mxu0 0.0
    %3011 = vmatpush.msra.mxu0 0.0
    %3012 = vmatpush.msra.mxu0 0.0
    %3013 = vmatpush.msra.mxu0 0.0
    %3014 = vmatpush.msra.mxu0 0.0
    %3015 = vmatpush.msra.mxu0 0.0
    %3016 = vmatpush.msra.mxu0 0.0
    %3017 = vmatpush.msra.mxu0 0.0
    %3018 = vmatpush.msra.mxu0 0.0
    %3019 = vmatpush.msra.mxu0 0.0
    %3020 = vmatpush.msra.mxu0 %v467
    %3021 = vmatpush.msra.mxu0 %v466
    %3022 = vmatpush.msra.mxu0 %v465
    %3023 = vmatpush.msra.mxu0 %v464
    %3024 = vmatmul.f32.gmra.mxu0 %v3006
    %v3025 = vpop.f32.mrf.mxu0
    %v3026 = vadd.f32 %v3003, %v3025
    %3027 = vdwg.mxu0
    %v3028 = vld [vmem:[%s2] sm:$0xf]
    %v3029 = vld [vmem:[%s2 + $0x4] sm:$0xf]
    %v3030 = vld [vmem:[%s2 + $0x8] sm:$0xf]
    %v3031 = vld [vmem:[%s2 + $0xc] sm:$0xf]
    %v3032 = vld [vmem:[%s2 + $0x10] sm:$0xf]
    %v3033 = vld [vmem:[%s2 + $0x14] sm:$0xf]
    %v3034 = vld [vmem:[%s2 + $0x18] sm:$0xf]
    %v3035 = vld [vmem:[%s2 + $0x1c] sm:$0xf]
    %v3036 = vld [vmem:[%s2 + $0x20] sm:$0xf]
    %v3037 = vld [vmem:[%s2 + $0x24] sm:$0xf]
    %v3038 = vld [vmem:[%s2 + $0x28] sm:$0xf]
    %v3039 = vld [vmem:[%s2 + $0x2c] sm:$0xf]
    %v3040 = vld [vmem:[%s2 + $0x30] sm:$0xf]
    %v3041 = vld [vmem:[%s2 + $0x34] sm:$0xf]
    %v3042 = vld [vmem:[%s2 + $0x38] sm:$0xf]
    %v3043 = vld [vmem:[%s2 + $0x3c] sm:$0xf]
    %v3044 = vld [vmem:[%s2 + $0x40] sm:$0xf]
    %v3045 = vld [vmem:[%s2 + $0x44] sm:$0xf]
    %v3046 = vld [vmem:[%s2 + $0x48] sm:$0xf]
    %v3047 = vld [vmem:[%s2 + $0x4c] sm:$0xf]
    %v3048 = vld [vmem:[%s2 + $0x50] sm:$0xf]
    %v3049 = vld [vmem:[%s2 + $0x54] sm:$0xf]
    %v3050 = vld [vmem:[%s2 + $0x58] sm:$0xf]
    %v3051 = vld [vmem:[%s2 + $0x5c] sm:$0xf]
    %v3052 = vld [vmem:[%s2 + $0x60] sm:$0xf]
    %v3053 = vld [vmem:[%s2 + $0x64] sm:$0xf]
    %v3054 = vld [vmem:[%s2 + $0x68] sm:$0xf]
    %v3055 = vld [vmem:[%s2 + $0x6c] sm:$0xf]
    %v3056 = vld [vmem:[%s2 + $0x70] sm:$0xf]
    %v3057 = vld [vmem:[%s2 + $0x74] sm:$0xf]
    %v3058 = vld [vmem:[%s2 + $0x78] sm:$0xf]
    %v3059 = vld [vmem:[%s2 + $0x7c] sm:$0xf]
    %v3060 = vld [vmem:[%s2 + $0x80] sm:$0xf]
    %v3061 = vld [vmem:[%s2 + $0x84] sm:$0xf]
    %v3062 = vld [vmem:[%s2 + $0x88] sm:$0xf]
    %v3063 = vld [vmem:[%s2 + $0x8c] sm:$0xf]
    %v3064 = vld [vmem:[%s2 + $0x90] sm:$0xf]
    %v3065 = vld [vmem:[%s2 + $0x94] sm:$0xf]
    %v3066 = vld [vmem:[%s2 + $0x98] sm:$0xf]
    %v3067 = vld [vmem:[%s2 + $0x9c] sm:$0xf]
    %v3068 = vld [vmem:[%s2 + $0xa0] sm:$0xf]
    %v3069 = vld [vmem:[%s2 + $0xa4] sm:$0xf]
    %v3070 = vld [vmem:[%s2 + $0xa8] sm:$0xf]
    %v3071 = vld [vmem:[%s2 + $0xac] sm:$0xf]
    %v3072 = vld [vmem:[%s2 + $0xb0] sm:$0xf]
    %v3073 = vld [vmem:[%s2 + $0xb4] sm:$0xf]
    %v3074 = vld [vmem:[%s2 + $0xb8] sm:$0xf]
    %v3075 = vld [vmem:[%s2 + $0xbc] sm:$0xf]
    %v3076 = vld [vmem:[%s2 + $0xc0] sm:$0xf]
    %v3077 = vld [vmem:[%s2 + $0xc4] sm:$0xf]
    %v3078 = vld [vmem:[%s2 + $0xc8] sm:$0xf]
    %v3079 = vld [vmem:[%s2 + $0xcc] sm:$0xf]
    %v3080 = vld [vmem:[%s2 + $0xd0] sm:$0xf]
    %v3081 = vld [vmem:[%s2 + $0xd4] sm:$0xf]
    %v3082 = vld [vmem:[%s2 + $0xd8] sm:$0xf]
    %v3083 = vld [vmem:[%s2 + $0xdc] sm:$0xf]
    %v3084 = vld [vmem:[%s2 + $0xe0] sm:$0xf]
    %v3085 = vld [vmem:[%s2 + $0xe4] sm:$0xf]
    %v3086 = vld [vmem:[%s2 + $0xe8] sm:$0xf]
    %v3087 = vld [vmem:[%s2 + $0xec] sm:$0xf]
    %v3088 = vld [vmem:[%s2 + $0xf0] sm:$0xf]
    %v3089 = vld [vmem:[%s2 + $0xf4] sm:$0xf]
    %v3090 = vld [vmem:[%s2 + $0xf8] sm:$0xf]
    %v3091 = vld [vmem:[%s2 + $0xfc] sm:$0xf]
    %v3092 = vld [vmem:[%s2 + $0x100] sm:$0xf]
    %v3093 = vld [vmem:[%s2 + $0x104] sm:$0xf]
    %v3094 = vld [vmem:[%s2 + $0x108] sm:$0xf]
    %v3095 = vld [vmem:[%s2 + $0x10c] sm:$0xf]
    %v3096 = vld [vmem:[%s2 + $0x110] sm:$0xf]
    %v3097 = vld [vmem:[%s2 + $0x114] sm:$0xf]
    %v3098 = vld [vmem:[%s2 + $0x118] sm:$0xf]
    %v3099 = vld [vmem:[%s2 + $0x11c] sm:$0xf]
    %v3100 = vld [vmem:[%s2 + $0x120] sm:$0xf]
    %v3101 = vld [vmem:[%s2 + $0x124] sm:$0xf]
    %v3102 = vld [vmem:[%s2 + $0x128] sm:$0xf]
    %v3103 = vld [vmem:[%s2 + $0x12c] sm:$0xf]
    %v3104 = vld [vmem:[%s2 + $0x130] sm:$0xf]
    %v3105 = vld [vmem:[%s2 + $0x134] sm:$0xf]
    %v3106 = vld [vmem:[%s2 + $0x138] sm:$0xf]
    %v3107 = vld [vmem:[%s2 + $0x13c] sm:$0xf]
    %v3108 = vld [vmem:[%s2 + $0x140] sm:$0xf]
    %v3109 = vld [vmem:[%s2 + $0x144] sm:$0xf]
    %v3110 = vld [vmem:[%s2 + $0x148] sm:$0xf]
    %v3111 = vld [vmem:[%s2 + $0x14c] sm:$0xf]
    %v3112 = vld [vmem:[%s2 + $0x150] sm:$0xf]
    %v3113 = vld [vmem:[%s2 + $0x154] sm:$0xf]
    %v3114 = vld [vmem:[%s2 + $0x158] sm:$0xf]
    %v3115 = vld [vmem:[%s2 + $0x15c] sm:$0xf]
    %v3116 = vld [vmem:[%s2 + $0x160] sm:$0xf]
    %v3117 = vld [vmem:[%s2 + $0x164] sm:$0xf]
    %v3118 = vld [vmem:[%s2 + $0x168] sm:$0xf]
    %v3119 = vld [vmem:[%s2 + $0x16c] sm:$0xf]
    %v3120 = vld [vmem:[%s2 + $0x170] sm:$0xf]
    %v3121 = vld [vmem:[%s2 + $0x174] sm:$0xf]
    %v3122 = vld [vmem:[%s2 + $0x178] sm:$0xf]
    %v3123 = vld [vmem:[%s2 + $0x17c] sm:$0xf]
    %v3124 = vld [vmem:[%s2 + $0x180] sm:$0xf]
    %v3125 = vld [vmem:[%s2 + $0x184] sm:$0xf]
    %v3126 = vld [vmem:[%s2 + $0x188] sm:$0xf]
    %v3127 = vld [vmem:[%s2 + $0x18c] sm:$0xf]
    %v3128 = vld [vmem:[%s2 + $0x190] sm:$0xf]
    %v3129 = vld [vmem:[%s2 + $0x194] sm:$0xf]
    %v3130 = vld [vmem:[%s2 + $0x198] sm:$0xf]
    %v3131 = vld [vmem:[%s2 + $0x19c] sm:$0xf]
    %v3132 = vld [vmem:[%s2 + $0x1a0] sm:$0xf]
    %v3133 = vld [vmem:[%s2 + $0x1a4] sm:$0xf]
    %v3134 = vld [vmem:[%s2 + $0x1a8] sm:$0xf]
    %v3135 = vld [vmem:[%s2 + $0x1ac] sm:$0xf]
    %v3136 = vld [vmem:[%s2 + $0x1b0] sm:$0xf]
    %v3137 = vld [vmem:[%s2 + $0x1b4] sm:$0xf]
    %v3138 = vld [vmem:[%s2 + $0x1b8] sm:$0xf]
    %v3139 = vld [vmem:[%s2 + $0x1bc] sm:$0xf]
    %v3140 = vld [vmem:[%s2 + $0x1c0] sm:$0xf]
    %v3141 = vld [vmem:[%s2 + $0x1c4] sm:$0xf]
    %v3142 = vld [vmem:[%s2 + $0x1c8] sm:$0xf]
    %v3143 = vld [vmem:[%s2 + $0x1cc] sm:$0xf]
    %v3144 = vld [vmem:[%s2 + $0x1d0] sm:$0xf]
    %v3145 = vld [vmem:[%s2 + $0x1d4] sm:$0xf]
    %v3146 = vld [vmem:[%s2 + $0x1d8] sm:$0xf]
    %v3147 = vld [vmem:[%s2 + $0x1dc] sm:$0xf]
    %v3148 = vld [vmem:[%s2 + $0x1e0] sm:$0xf]
    %v3149 = vld [vmem:[%s2 + $0x1e4] sm:$0xf]
    %v3150 = vld [vmem:[%s2 + $0x1e8] sm:$0xf]
    %v3151 = vld [vmem:[%s2 + $0x1ec] sm:$0xf]
    %v3152 = vld [vmem:[%s2 + $0x1f0] sm:$0xf]
    %v3153 = vld [vmem:[%s2 + $0x1f4] sm:$0xf]
    %v3154 = vld [vmem:[%s2 + $0x1f8] sm:$0xf]
    %v3155 = vld [vmem:[%s2 + $0x1fc] sm:$0xf]
    %v3156 = vld [vmem:[%s2 + $0x200] sm:$0xf]
    %v3157 = vld [vmem:[%s2 + $0x204] sm:$0xf]
    %v3158 = vld [vmem:[%s2 + $0x208] sm:$0xf]
    %v3159 = vld [vmem:[%s2 + $0x20c] sm:$0xf]
    %v3160 = vld [vmem:[%s2 + $0x210] sm:$0xf]
    %v3161 = vld [vmem:[%s2 + $0x214] sm:$0xf]
    %v3162 = vld [vmem:[%s2 + $0x218] sm:$0xf]
    %v3163 = vld [vmem:[%s2 + $0x21c] sm:$0xf]
    %v3164 = vld [vmem:[%s2 + $0x220] sm:$0xf]
    %v3165 = vld [vmem:[%s2 + $0x224] sm:$0xf]
    %v3166 = vld [vmem:[%s2 + $0x228] sm:$0xf]
    %v3167 = vld [vmem:[%s2 + $0x22c] sm:$0xf]
    %v3168 = vld [vmem:[%s2 + $0x230] sm:$0xf]
    %v3169 = vld [vmem:[%s2 + $0x234] sm:$0xf]
    %v3170 = vld [vmem:[%s2 + $0x238] sm:$0xf]
    %v3171 = vld [vmem:[%s2 + $0x23c] sm:$0xf]
    %v3172 = vld [vmem:[%s2 + $0x240] sm:$0xf]
    %v3173 = vld [vmem:[%s2 + $0x244] sm:$0xf]
    %v3174 = vld [vmem:[%s2 + $0x248] sm:$0xf]
    %v3175 = vld [vmem:[%s2 + $0x24c] sm:$0xf]
    %v3176 = vld [vmem:[%s2 + $0x250] sm:$0xf]
    %v3177 = vld [vmem:[%s2 + $0x254] sm:$0xf]
    %v3178 = vld [vmem:[%s2 + $0x258] sm:$0xf]
    %v3179 = vld [vmem:[%s2 + $0x25c] sm:$0xf]
    %v3180 = vld [vmem:[%s2 + $0x260] sm:$0xf]
    %v3181 = vld [vmem:[%s2 + $0x264] sm:$0xf]
    %v3182 = vld [vmem:[%s2 + $0x268] sm:$0xf]
    %v3183 = vld [vmem:[%s2 + $0x26c] sm:$0xf]
    %v3184 = vld [vmem:[%s2 + $0x270] sm:$0xf]
    %v3185 = vld [vmem:[%s2 + $0x274] sm:$0xf]
    %v3186 = vld [vmem:[%s2 + $0x278] sm:$0xf]
    %v3187 = vld [vmem:[%s2 + $0x27c] sm:$0xf]
    %v3188 = vld [vmem:[%s2 + $0x280] sm:$0xf]
    %v3189 = vld [vmem:[%s2 + $0x284] sm:$0xf]
    %v3190 = vld [vmem:[%s2 + $0x288] sm:$0xf]
    %v3191 = vld [vmem:[%s2 + $0x28c] sm:$0xf]
    %v3192 = vld [vmem:[%s2 + $0x290] sm:$0xf]
    %v3193 = vld [vmem:[%s2 + $0x294] sm:$0xf]
    %v3194 = vld [vmem:[%s2 + $0x298] sm:$0xf]
    %v3195 = vld [vmem:[%s2 + $0x29c] sm:$0xf]
    %v3196 = vld [vmem:[%s2 + $0x2a0] sm:$0xf]
    %v3197 = vld [vmem:[%s2 + $0x2a4] sm:$0xf]
    %v3198 = vld [vmem:[%s2 + $0x2a8] sm:$0xf]
    %v3199 = vld [vmem:[%s2 + $0x2ac] sm:$0xf]
    %v3200 = vld [vmem:[%s2 + $0x2b0] sm:$0xf]
    %v3201 = vld [vmem:[%s2 + $0x2b4] sm:$0xf]
    %v3202 = vld [vmem:[%s2 + $0x2b8] sm:$0xf]
    %v3203 = vld [vmem:[%s2 + $0x2bc] sm:$0xf]
    %v3204 = vld [vmem:[%s2 + $0x2c0] sm:$0xf]
    %v3205 = vld [vmem:[%s2 + $0x2c4] sm:$0xf]
    %v3206 = vld [vmem:[%s2 + $0x2c8] sm:$0xf]
    %v3207 = vld [vmem:[%s2 + $0x2cc] sm:$0xf]
    %v3208 = vld [vmem:[%s2 + $0x2d0] sm:$0xf]
    %v3209 = vld [vmem:[%s2 + $0x2d4] sm:$0xf]
    %v3210 = vld [vmem:[%s2 + $0x2d8] sm:$0xf]
    %v3211 = vld [vmem:[%s2 + $0x2dc] sm:$0xf]
    %v3212 = vld [vmem:[%s2 + $0x2e0] sm:$0xf]
    %v3213 = vld [vmem:[%s2 + $0x2e4] sm:$0xf]
    %v3214 = vld [vmem:[%s2 + $0x2e8] sm:$0xf]
    %v3215 = vld [vmem:[%s2 + $0x2ec] sm:$0xf]
    %v3216 = vld [vmem:[%s2 + $0x2f0] sm:$0xf]
    %v3217 = vld [vmem:[%s2 + $0x2f4] sm:$0xf]
    %v3218 = vld [vmem:[%s2 + $0x2f8] sm:$0xf]
    %v3219 = vld [vmem:[%s2 + $0x2fc] sm:$0xf]
    %v3220 = vld [vmem:[%s2 + $0x300] sm:$0xf]
    %v3221 = vld [vmem:[%s2 + $0x304] sm:$0xf]
    %v3222 = vld [vmem:[%s2 + $0x308] sm:$0xf]
    %v3223 = vld [vmem:[%s2 + $0x30c] sm:$0xf]
    %v3224 = vld [vmem:[%s2 + $0x310] sm:$0xf]
    %v3225 = vld [vmem:[%s2 + $0x314] sm:$0xf]
    %v3226 = vld [vmem:[%s2 + $0x318] sm:$0xf]
    %v3227 = vld [vmem:[%s2 + $0x31c] sm:$0xf]
    %v3228 = vld [vmem:[%s2 + $0x320] sm:$0xf]
    %v3229 = vld [vmem:[%s2 + $0x324] sm:$0xf]
    %v3230 = vld [vmem:[%s2 + $0x328] sm:$0xf]
    %v3231 = vld [vmem:[%s2 + $0x32c] sm:$0xf]
    %v3232 = vld [vmem:[%s2 + $0x330] sm:$0xf]
    %v3233 = vld [vmem:[%s2 + $0x334] sm:$0xf]
    %v3234 = vld [vmem:[%s2 + $0x338] sm:$0xf]
    %v3235 = vld [vmem:[%s2 + $0x33c] sm:$0xf]
    %v3236 = vld [vmem:[%s2 + $0x340] sm:$0xf]
    %v3237 = vld [vmem:[%s2 + $0x344] sm:$0xf]
    %v3238 = vld [vmem:[%s2 + $0x348] sm:$0xf]
    %v3239 = vld [vmem:[%s2 + $0x34c] sm:$0xf]
    %v3240 = vld [vmem:[%s2 + $0x350] sm:$0xf]
    %v3241 = vld [vmem:[%s2 + $0x354] sm:$0xf]
    %v3242 = vld [vmem:[%s2 + $0x358] sm:$0xf]
    %v3243 = vld [vmem:[%s2 + $0x35c] sm:$0xf]
    %v3244 = vld [vmem:[%s2 + $0x360] sm:$0xf]
    %v3245 = vld [vmem:[%s2 + $0x364] sm:$0xf]
    %v3246 = vld [vmem:[%s2 + $0x368] sm:$0xf]
    %v3247 = vld [vmem:[%s2 + $0x36c] sm:$0xf]
    %v3248 = vld [vmem:[%s2 + $0x370] sm:$0xf]
    %v3249 = vld [vmem:[%s2 + $0x374] sm:$0xf]
    %v3250 = vld [vmem:[%s2 + $0x378] sm:$0xf]
    %v3251 = vld [vmem:[%s2 + $0x37c] sm:$0xf]
    %v3252 = vld [vmem:[%s2 + $0x380] sm:$0xf]
    %v3253 = vld [vmem:[%s2 + $0x384] sm:$0xf]
    %v3254 = vld [vmem:[%s2 + $0x388] sm:$0xf]
    %v3255 = vld [vmem:[%s2 + $0x38c] sm:$0xf]
    %v3256 = vld [vmem:[%s2 + $0x390] sm:$0xf]
    %v3257 = vld [vmem:[%s2 + $0x394] sm:$0xf]
    %v3258 = vld [vmem:[%s2 + $0x398] sm:$0xf]
    %v3259 = vld [vmem:[%s2 + $0x39c] sm:$0xf]
    %v3260 = vld [vmem:[%s2 + $0x3a0] sm:$0xf]
    %v3261 = vld [vmem:[%s2 + $0x3a4] sm:$0xf]
    %v3262 = vld [vmem:[%s2 + $0x3a8] sm:$0xf]
    %v3263 = vld [vmem:[%s2 + $0x3ac] sm:$0xf]
    %v3264 = vld [vmem:[%s2 + $0x3b0] sm:$0xf]
    %v3265 = vld [vmem:[%s2 + $0x3b4] sm:$0xf]
    %v3266 = vld [vmem:[%s2 + $0x3b8] sm:$0xf]
    %v3267 = vld [vmem:[%s2 + $0x3bc] sm:$0xf]
    %v3268 = vld [vmem:[%s2 + $0x3c0] sm:$0xf]
    %v3269 = vld [vmem:[%s2 + $0x3c4] sm:$0xf]
    %v3270 = vld [vmem:[%s2 + $0x3c8] sm:$0xf]
    %v3271 = vld [vmem:[%s2 + $0x3cc] sm:$0xf]
    %v3272 = vld [vmem:[%s2 + $0x3d0] sm:$0xf]
    %v3273 = vld [vmem:[%s2 + $0x3d4] sm:$0xf]
    %v3274 = vld [vmem:[%s2 + $0x3d8] sm:$0xf]
    %v3275 = vld [vmem:[%s2 + $0x3dc] sm:$0xf]
    %v3276 = vld [vmem:[%s2 + $0x3e0] sm:$0xf]
    %v3277 = vld [vmem:[%s2 + $0x3e4] sm:$0xf]
    %v3278 = vld [vmem:[%s2 + $0x3e8] sm:$0xf]
    %v3279 = vld [vmem:[%s2 + $0x3ec] sm:$0xf]
    %v3280 = vld [vmem:[%s2 + $0x3f0] sm:$0xf]
    %v3281 = vld [vmem:[%s2 + $0x3f4] sm:$0xf]
    %v3282 = vld [vmem:[%s2 + $0x3f8] sm:$0xf]
    %v3283 = vld [vmem:[%s2 + $0x3fc] sm:$0xf]
    %v3284 = vpack.c.bf16 %v117, %v116
    %v3285 = vpack.c.bf16 %v119, %v118
    %v3286 = vpack.c.bf16 %v120, %v120
    %v3288 = vperm.slane %v132, 0
    %v3546 = vunpack.c.l.b16 %v3028
    %v3547 = vunpack.c.l.b16 %v3029
    %v3548 = vunpack.c.l.b16 %v3030
    %v3549 = vunpack.c.l.b16 %v3031
    %v3550 = vunpack.c.l.b16 %v3032
    %v3551 = vunpack.c.l.b16 %v3033
    %v3552 = vunpack.c.l.b16 %v3034
    %v3553 = vunpack.c.l.b16 %v3035
    %v3554 = vunpack.c.l.b16 %v3036
    %v3555 = vunpack.c.l.b16 %v3037
    %v3556 = vunpack.c.l.b16 %v3038
    %v3557 = vunpack.c.l.b16 %v3039
    %v3558 = vunpack.c.l.b16 %v3040
    %v3559 = vunpack.c.l.b16 %v3041
    %v3560 = vunpack.c.l.b16 %v3042
    %v3561 = vunpack.c.l.b16 %v3043
    %v3562 = vunpack.c.l.b16 %v3044
    %v3563 = vunpack.c.l.b16 %v3045
    %v3564 = vunpack.c.l.b16 %v3046
    %v3565 = vunpack.c.l.b16 %v3047
    %v3566 = vunpack.c.l.b16 %v3048
    %v3567 = vunpack.c.l.b16 %v3049
    %v3568 = vunpack.c.l.b16 %v3050
    %v3569 = vunpack.c.l.b16 %v3051
    %v3570 = vunpack.c.l.b16 %v3052
    %v3571 = vunpack.c.l.b16 %v3053
    %v3572 = vunpack.c.l.b16 %v3054
    %v3573 = vunpack.c.l.b16 %v3055
    %v3574 = vunpack.c.l.b16 %v3056
    %v3575 = vunpack.c.l.b16 %v3057
    %v3576 = vunpack.c.l.b16 %v3058
    %v3577 = vunpack.c.l.b16 %v3059
    %v3578 = vunpack.c.l.b16 %v3060
    %v3579 = vunpack.c.l.b16 %v3061
    %v3580 = vunpack.c.l.b16 %v3062
    %v3581 = vunpack.c.l.b16 %v3063
    %v3582 = vunpack.c.l.b16 %v3064
    %v3583 = vunpack.c.l.b16 %v3065
    %v3584 = vunpack.c.l.b16 %v3066
    %v3585 = vunpack.c.l.b16 %v3067
    %v3586 = vunpack.c.l.b16 %v3068
    %v3587 = vunpack.c.l.b16 %v3069
    %v3588 = vunpack.c.l.b16 %v3070
    %v3589 = vunpack.c.l.b16 %v3071
    %v3590 = vunpack.c.l.b16 %v3072
    %v3591 = vunpack.c.l.b16 %v3073
    %v3592 = vunpack.c.l.b16 %v3074
    %v3593 = vunpack.c.l.b16 %v3075
    %v3594 = vunpack.c.l.b16 %v3076
    %v3595 = vunpack.c.l.b16 %v3077
    %v3596 = vunpack.c.l.b16 %v3078
    %v3597 = vunpack.c.l.b16 %v3079
    %v3598 = vunpack.c.l.b16 %v3080
    %v3599 = vunpack.c.l.b16 %v3081
    %v3600 = vunpack.c.l.b16 %v3082
    %v3601 = vunpack.c.l.b16 %v3083
    %v3602 = vunpack.c.l.b16 %v3084
    %v3603 = vunpack.c.l.b16 %v3085
    %v3604 = vunpack.c.l.b16 %v3086
    %v3605 = vunpack.c.l.b16 %v3087
    %v3606 = vunpack.c.l.b16 %v3088
    %v3607 = vunpack.c.l.b16 %v3089
    %v3608 = vunpack.c.l.b16 %v3090
    %v3609 = vunpack.c.l.b16 %v3091
    %v3610 = vunpack.c.l.b16 %v3092
    %v3611 = vunpack.c.l.b16 %v3093
    %v3612 = vunpack.c.l.b16 %v3094
    %v3613 = vunpack.c.l.b16 %v3095
    %v3614 = vunpack.c.l.b16 %v3096
    %v3615 = vunpack.c.l.b16 %v3097
    %v3616 = vunpack.c.l.b16 %v3098
    %v3617 = vunpack.c.l.b16 %v3099
    %v3618 = vunpack.c.l.b16 %v3100
    %v3619 = vunpack.c.l.b16 %v3101
    %v3620 = vunpack.c.l.b16 %v3102
    %v3621 = vunpack.c.l.b16 %v3103
    %v3622 = vunpack.c.l.b16 %v3104
    %v3623 = vunpack.c.l.b16 %v3105
    %v3624 = vunpack.c.l.b16 %v3106
    %v3625 = vunpack.c.l.b16 %v3107
    %v3626 = vunpack.c.l.b16 %v3108
    %v3627 = vunpack.c.l.b16 %v3109
    %v3628 = vunpack.c.l.b16 %v3110
    %v3629 = vunpack.c.l.b16 %v3111
    %v3630 = vunpack.c.l.b16 %v3112
    %v3631 = vunpack.c.l.b16 %v3113
    %v3632 = vunpack.c.l.b16 %v3114
    %v3633 = vunpack.c.l.b16 %v3115
    %v3634 = vunpack.c.l.b16 %v3116
    %v3635 = vunpack.c.l.b16 %v3117
    %v3636 = vunpack.c.l.b16 %v3118
    %v3637 = vunpack.c.l.b16 %v3119
    %v3638 = vunpack.c.l.b16 %v3120
    %v3639 = vunpack.c.l.b16 %v3121
    %v3640 = vunpack.c.l.b16 %v3122
    %v3641 = vunpack.c.l.b16 %v3123
    %v3642 = vunpack.c.l.b16 %v3124
    %v3643 = vunpack.c.l.b16 %v3125
    %v3644 = vunpack.c.l.b16 %v3126
    %v3645 = vunpack.c.l.b16 %v3127
    %v3646 = vunpack.c.l.b16 %v3128
    %v3647 = vunpack.c.l.b16 %v3129
    %v3648 = vunpack.c.l.b16 %v3130
    %v3649 = vunpack.c.l.b16 %v3131
    %v3650 = vunpack.c.l.b16 %v3132
    %v3651 = vunpack.c.l.b16 %v3133
    %v3652 = vunpack.c.l.b16 %v3134
    %v3653 = vunpack.c.l.b16 %v3135
    %v3654 = vunpack.c.l.b16 %v3136
    %v3655 = vunpack.c.l.b16 %v3137
    %v3656 = vunpack.c.l.b16 %v3138
    %v3657 = vunpack.c.l.b16 %v3139
    %v3658 = vunpack.c.l.b16 %v3140
    %v3659 = vunpack.c.l.b16 %v3141
    %v3660 = vunpack.c.l.b16 %v3142
    %v3661 = vunpack.c.l.b16 %v3143
    %v3662 = vunpack.c.l.b16 %v3144
    %v3663 = vunpack.c.l.b16 %v3145
    %v3664 = vunpack.c.l.b16 %v3146
    %v3665 = vunpack.c.l.b16 %v3147
    %v3666 = vunpack.c.l.b16 %v3148
    %v3667 = vunpack.c.l.b16 %v3149
    %v3668 = vunpack.c.l.b16 %v3150
    %v3669 = vunpack.c.l.b16 %v3151
    %v3670 = vunpack.c.l.b16 %v3152
    %v3671 = vunpack.c.l.b16 %v3153
    %v3672 = vunpack.c.l.b16 %v3154
    %v3673 = vunpack.c.l.b16 %v3155
    %v3674 = vunpack.c.l.b16 %v3156
    %v3675 = vunpack.c.l.b16 %v3157
    %v3676 = vunpack.c.l.b16 %v3158
    %v3677 = vunpack.c.l.b16 %v3159
    %v3678 = vunpack.c.l.b16 %v3160
    %v3679 = vunpack.c.l.b16 %v3161
    %v3680 = vunpack.c.l.b16 %v3162
    %v3681 = vunpack.c.l.b16 %v3163
    %v3682 = vunpack.c.l.b16 %v3164
    %v3683 = vunpack.c.l.b16 %v3165
    %v3684 = vunpack.c.l.b16 %v3166
    %v3685 = vunpack.c.l.b16 %v3167
    %v3686 = vunpack.c.l.b16 %v3168
    %v3687 = vunpack.c.l.b16 %v3169
    %v3688 = vunpack.c.l.b16 %v3170
    %v3689 = vunpack.c.l.b16 %v3171
    %v3690 = vunpack.c.l.b16 %v3172
    %v3691 = vunpack.c.l.b16 %v3173
    %v3692 = vunpack.c.l.b16 %v3174
    %v3693 = vunpack.c.l.b16 %v3175
    %v3694 = vunpack.c.l.b16 %v3176
    %v3695 = vunpack.c.l.b16 %v3177
    %v3696 = vunpack.c.l.b16 %v3178
    %v3697 = vunpack.c.l.b16 %v3179
    %v3698 = vunpack.c.l.b16 %v3180
    %v3699 = vunpack.c.l.b16 %v3181
    %v3700 = vunpack.c.l.b16 %v3182
    %v3701 = vunpack.c.l.b16 %v3183
    %v3702 = vunpack.c.l.b16 %v3184
    %v3703 = vunpack.c.l.b16 %v3185
    %v3704 = vunpack.c.l.b16 %v3186
    %v3705 = vunpack.c.l.b16 %v3187
    %v3706 = vunpack.c.l.b16 %v3188
    %v3707 = vunpack.c.l.b16 %v3189
    %v3708 = vunpack.c.l.b16 %v3190
    %v3709 = vunpack.c.l.b16 %v3191
    %v3710 = vunpack.c.l.b16 %v3192
    %v3711 = vunpack.c.l.b16 %v3193
    %v3712 = vunpack.c.l.b16 %v3194
    %v3713 = vunpack.c.l.b16 %v3195
    %v3714 = vunpack.c.l.b16 %v3196
    %v3715 = vunpack.c.l.b16 %v3197
    %v3716 = vunpack.c.l.b16 %v3198
    %v3717 = vunpack.c.l.b16 %v3199
    %v3718 = vunpack.c.l.b16 %v3200
    %v3719 = vunpack.c.l.b16 %v3201
    %v3720 = vunpack.c.l.b16 %v3202
    %v3721 = vunpack.c.l.b16 %v3203
    %v3722 = vunpack.c.l.b16 %v3204
    %v3723 = vunpack.c.l.b16 %v3205
    %v3724 = vunpack.c.l.b16 %v3206
    %v3725 = vunpack.c.l.b16 %v3207
    %v3726 = vunpack.c.l.b16 %v3208
    %v3727 = vunpack.c.l.b16 %v3209
    %v3728 = vunpack.c.l.b16 %v3210
    %v3729 = vunpack.c.l.b16 %v3211
    %v3730 = vunpack.c.l.b16 %v3212
    %v3731 = vunpack.c.l.b16 %v3213
    %v3732 = vunpack.c.l.b16 %v3214
    %v3733 = vunpack.c.l.b16 %v3215
    %v3734 = vunpack.c.l.b16 %v3216
    %v3735 = vunpack.c.l.b16 %v3217
    %v3736 = vunpack.c.l.b16 %v3218
    %v3737 = vunpack.c.l.b16 %v3219
    %v3738 = vunpack.c.l.b16 %v3220
    %v3739 = vunpack.c.l.b16 %v3221
    %v3740 = vunpack.c.l.b16 %v3222
    %v3741 = vunpack.c.l.b16 %v3223
    %v3742 = vunpack.c.l.b16 %v3224
    %v3743 = vunpack.c.l.b16 %v3225
    %v3744 = vunpack.c.l.b16 %v3226
    %v3745 = vunpack.c.l.b16 %v3227
    %v3746 = vunpack.c.l.b16 %v3228
    %v3747 = vunpack.c.l.b16 %v3229
    %v3748 = vunpack.c.l.b16 %v3230
    %v3749 = vunpack.c.l.b16 %v3231
    %v3750 = vunpack.c.l.b16 %v3232
    %v3751 = vunpack.c.l.b16 %v3233
    %v3752 = vunpack.c.l.b16 %v3234
    %v3753 = vunpack.c.l.b16 %v3235
    %v3754 = vunpack.c.l.b16 %v3236
    %v3755 = vunpack.c.l.b16 %v3237
    %v3756 = vunpack.c.l.b16 %v3238
    %v3757 = vunpack.c.l.b16 %v3239
    %v3758 = vunpack.c.l.b16 %v3240
    %v3759 = vunpack.c.l.b16 %v3241
    %v3760 = vunpack.c.l.b16 %v3242
    %v3761 = vunpack.c.l.b16 %v3243
    %v3762 = vunpack.c.l.b16 %v3244
    %v3763 = vunpack.c.l.b16 %v3245
    %v3764 = vunpack.c.l.b16 %v3246
    %v3765 = vunpack.c.l.b16 %v3247
    %v3766 = vunpack.c.l.b16 %v3248
    %v3767 = vunpack.c.l.b16 %v3249
    %v3768 = vunpack.c.l.b16 %v3250
    %v3769 = vunpack.c.l.b16 %v3251
    %v3770 = vunpack.c.l.b16 %v3252
    %v3771 = vunpack.c.l.b16 %v3253
    %v3772 = vunpack.c.l.b16 %v3254
    %v3773 = vunpack.c.l.b16 %v3255
    %v3774 = vunpack.c.l.b16 %v3256
    %v3775 = vunpack.c.l.b16 %v3257
    %v3776 = vunpack.c.l.b16 %v3258
    %v3777 = vunpack.c.l.b16 %v3259
    %v3778 = vunpack.c.l.b16 %v3260
    %v3779 = vunpack.c.l.b16 %v3261
    %v3780 = vunpack.c.l.b16 %v3262
    %v3781 = vunpack.c.l.b16 %v3263
    %v3782 = vunpack.c.l.b16 %v3264
    %v3783 = vunpack.c.l.b16 %v3265
    %v3784 = vunpack.c.l.b16 %v3266
    %v3785 = vunpack.c.l.b16 %v3267
    %v3786 = vunpack.c.l.b16 %v3268
    %v3787 = vunpack.c.l.b16 %v3269
    %v3788 = vunpack.c.l.b16 %v3270
    %v3789 = vunpack.c.l.b16 %v3271
    %v3790 = vunpack.c.l.b16 %v3272
    %v3791 = vunpack.c.l.b16 %v3273
    %v3792 = vunpack.c.l.b16 %v3274
    %v3793 = vunpack.c.l.b16 %v3275
    %v3794 = vunpack.c.l.b16 %v3276
    %v3795 = vunpack.c.l.b16 %v3277
    %v3796 = vunpack.c.l.b16 %v3278
    %v3797 = vunpack.c.l.b16 %v3279
    %v3798 = vunpack.c.l.b16 %v3280
    %v3799 = vunpack.c.l.b16 %v3281
    %v3800 = vunpack.c.l.b16 %v3282
    %v3801 = vunpack.c.l.b16 %v3283
    %v3802 = vpack.c.b16 %v3547, %v3546
    %v3803 = vpack.c.b16 %v3549, %v3548
    %v3804 = vpack.c.b16 %v3551, %v3550
    %v3805 = vpack.c.b16 %v3553, %v3552
    %v3806 = vpack.c.b16 %v3555, %v3554
    %v3807 = vpack.c.b16 %v3557, %v3556
    %v3808 = vpack.c.b16 %v3559, %v3558
    %v3809 = vpack.c.b16 %v3561, %v3560
    %v3810 = vpack.c.b16 %v3563, %v3562
    %v3811 = vpack.c.b16 %v3565, %v3564
    %v3812 = vpack.c.b16 %v3567, %v3566
    %v3813 = vpack.c.b16 %v3569, %v3568
    %v3814 = vpack.c.b16 %v3571, %v3570
    %v3815 = vpack.c.b16 %v3573, %v3572
    %v3816 = vpack.c.b16 %v3575, %v3574
    %v3817 = vpack.c.b16 %v3577, %v3576
    %v3818 = vpack.c.b16 %v3579, %v3578
    %v3819 = vpack.c.b16 %v3581, %v3580
    %v3820 = vpack.c.b16 %v3583, %v3582
    %v3821 = vpack.c.b16 %v3585, %v3584
    %v3822 = vpack.c.b16 %v3587, %v3586
    %v3823 = vpack.c.b16 %v3589, %v3588
    %v3824 = vpack.c.b16 %v3591, %v3590
    %v3825 = vpack.c.b16 %v3593, %v3592
    %v3826 = vpack.c.b16 %v3595, %v3594
    %v3827 = vpack.c.b16 %v3597, %v3596
    %v3828 = vpack.c.b16 %v3599, %v3598
    %v3829 = vpack.c.b16 %v3601, %v3600
    %v3830 = vpack.c.b16 %v3603, %v3602
    %v3831 = vpack.c.b16 %v3605, %v3604
    %v3832 = vpack.c.b16 %v3607, %v3606
    %v3833 = vpack.c.b16 %v3609, %v3608
    %v3834 = vpack.c.b16 %v3611, %v3610
    %v3835 = vpack.c.b16 %v3613, %v3612
    %v3836 = vpack.c.b16 %v3615, %v3614
    %v3837 = vpack.c.b16 %v3617, %v3616
    %v3838 = vpack.c.b16 %v3619, %v3618
    %v3839 = vpack.c.b16 %v3621, %v3620
    %v3840 = vpack.c.b16 %v3623, %v3622
    %v3841 = vpack.c.b16 %v3625, %v3624
    %v3842 = vpack.c.b16 %v3627, %v3626
    %v3843 = vpack.c.b16 %v3629, %v3628
    %v3844 = vpack.c.b16 %v3631, %v3630
    %v3845 = vpack.c.b16 %v3633, %v3632
    %v3846 = vpack.c.b16 %v3635, %v3634
    %v3847 = vpack.c.b16 %v3637, %v3636
    %v3848 = vpack.c.b16 %v3639, %v3638
    %v3849 = vpack.c.b16 %v3641, %v3640
    %v3850 = vpack.c.b16 %v3643, %v3642
    %v3851 = vpack.c.b16 %v3645, %v3644
    %v3852 = vpack.c.b16 %v3647, %v3646
    %v3853 = vpack.c.b16 %v3649, %v3648
    %v3854 = vpack.c.b16 %v3651, %v3650
    %v3855 = vpack.c.b16 %v3653, %v3652
    %v3856 = vpack.c.b16 %v3655, %v3654
    %v3857 = vpack.c.b16 %v3657, %v3656
    %v3858 = vpack.c.b16 %v3659, %v3658
    %v3859 = vpack.c.b16 %v3661, %v3660
    %v3860 = vpack.c.b16 %v3663, %v3662
    %v3861 = vpack.c.b16 %v3665, %v3664
    %v3862 = vpack.c.b16 %v3667, %v3666
    %v3863 = vpack.c.b16 %v3669, %v3668
    %v3864 = vpack.c.b16 %v3671, %v3670
    %v3865 = vpack.c.b16 %v3673, %v3672
    %v3866 = vpack.c.b16 %v3675, %v3674
    %v3867 = vpack.c.b16 %v3677, %v3676
    %v3868 = vpack.c.b16 %v3679, %v3678
    %v3869 = vpack.c.b16 %v3681, %v3680
    %v3870 = vpack.c.b16 %v3683, %v3682
    %v3871 = vpack.c.b16 %v3685, %v3684
    %v3872 = vpack.c.b16 %v3687, %v3686
    %v3873 = vpack.c.b16 %v3689, %v3688
    %v3874 = vpack.c.b16 %v3691, %v3690
    %v3875 = vpack.c.b16 %v3693, %v3692
    %v3876 = vpack.c.b16 %v3695, %v3694
    %v3877 = vpack.c.b16 %v3697, %v3696
    %v3878 = vpack.c.b16 %v3699, %v3698
    %v3879 = vpack.c.b16 %v3701, %v3700
    %v3880 = vpack.c.b16 %v3703, %v3702
    %v3881 = vpack.c.b16 %v3705, %v3704
    %v3882 = vpack.c.b16 %v3707, %v3706
    %v3883 = vpack.c.b16 %v3709, %v3708
    %v3884 = vpack.c.b16 %v3711, %v3710
    %v3885 = vpack.c.b16 %v3713, %v3712
    %v3886 = vpack.c.b16 %v3715, %v3714
    %v3887 = vpack.c.b16 %v3717, %v3716
    %v3888 = vpack.c.b16 %v3719, %v3718
    %v3889 = vpack.c.b16 %v3721, %v3720
    %v3890 = vpack.c.b16 %v3723, %v3722
    %v3891 = vpack.c.b16 %v3725, %v3724
    %v3892 = vpack.c.b16 %v3727, %v3726
    %v3893 = vpack.c.b16 %v3729, %v3728
    %v3894 = vpack.c.b16 %v3731, %v3730
    %v3895 = vpack.c.b16 %v3733, %v3732
    %v3896 = vpack.c.b16 %v3735, %v3734
    %v3897 = vpack.c.b16 %v3737, %v3736
    %v3898 = vpack.c.b16 %v3739, %v3738
    %v3899 = vpack.c.b16 %v3741, %v3740
    %v3900 = vpack.c.b16 %v3743, %v3742
    %v3901 = vpack.c.b16 %v3745, %v3744
    %v3902 = vpack.c.b16 %v3747, %v3746
    %v3903 = vpack.c.b16 %v3749, %v3748
    %v3904 = vpack.c.b16 %v3751, %v3750
    %v3905 = vpack.c.b16 %v3753, %v3752
    %v3906 = vpack.c.b16 %v3755, %v3754
    %v3907 = vpack.c.b16 %v3757, %v3756
    %v3908 = vpack.c.b16 %v3759, %v3758
    %v3909 = vpack.c.b16 %v3761, %v3760
    %v3910 = vpack.c.b16 %v3763, %v3762
    %v3911 = vpack.c.b16 %v3765, %v3764
    %v3912 = vpack.c.b16 %v3767, %v3766
    %v3913 = vpack.c.b16 %v3769, %v3768
    %v3914 = vpack.c.b16 %v3771, %v3770
    %v3915 = vpack.c.b16 %v3773, %v3772
    %v3916 = vpack.c.b16 %v3775, %v3774
    %v3917 = vpack.c.b16 %v3777, %v3776
    %v3918 = vpack.c.b16 %v3779, %v3778
    %v3919 = vpack.c.b16 %v3781, %v3780
    %v3920 = vpack.c.b16 %v3783, %v3782
    %v3921 = vpack.c.b16 %v3785, %v3784
    %v3922 = vpack.c.b16 %v3787, %v3786
    %v3923 = vpack.c.b16 %v3789, %v3788
    %v3924 = vpack.c.b16 %v3791, %v3790
    %v3925 = vpack.c.b16 %v3793, %v3792
    %v3926 = vpack.c.b16 %v3795, %v3794
    %v3927 = vpack.c.b16 %v3797, %v3796
    %v3928 = vpack.c.b16 %v3799, %v3798
    %v3929 = vpack.c.b16 %v3801, %v3800
    %v3931 = vsel %vm1115, %v3802, 0
    %v3934 = vsel %vm1115, %v3803, 0
    %v3937 = vsel %vm1115, %v3804, 0
    %v3940 = vsel %vm1115, %v3805, 0
    %v3943 = vsel %vm1115, %v3806, 0
    %v3946 = vsel %vm1115, %v3807, 0
    %v3949 = vsel %vm1115, %v3808, 0
    %v3952 = vsel %vm1115, %v3809, 0
    %v3955 = vsel %vm1115, %v3810, 0
    %v3958 = vsel %vm1115, %v3811, 0
    %v3961 = vsel %vm1115, %v3812, 0
    %v3964 = vsel %vm1115, %v3813, 0
    %v3967 = vsel %vm1115, %v3814, 0
    %v3970 = vsel %vm1115, %v3815, 0
    %v3973 = vsel %vm1115, %v3816, 0
    %v3976 = vsel %vm1115, %v3817, 0
    %v3979 = vsel %vm1115, %v3818, 0
    %v3982 = vsel %vm1115, %v3819, 0
    %v3985 = vsel %vm1115, %v3820, 0
    %v3988 = vsel %vm1115, %v3821, 0
    %v3991 = vsel %vm1115, %v3822, 0
    %v3994 = vsel %vm1115, %v3823, 0
    %v3997 = vsel %vm1115, %v3824, 0
    %v4000 = vsel %vm1115, %v3825, 0
    %v4003 = vsel %vm1115, %v3826, 0
    %v4006 = vsel %vm1115, %v3827, 0
    %v4009 = vsel %vm1115, %v3828, 0
    %v4012 = vsel %vm1115, %v3829, 0
    %v4015 = vsel %vm1115, %v3830, 0
    %v4018 = vsel %vm1115, %v3831, 0
    %v4021 = vsel %vm1115, %v3832, 0
    %v4024 = vsel %vm1115, %v3833, 0
    %v4027 = vsel %vm1115, %v3834, 0
    %v4030 = vsel %vm1115, %v3835, 0
    %v4033 = vsel %vm1115, %v3836, 0
    %v4036 = vsel %vm1115, %v3837, 0
    %v4039 = vsel %vm1115, %v3838, 0
    %v4042 = vsel %vm1115, %v3839, 0
    %v4045 = vsel %vm1115, %v3840, 0
    %v4048 = vsel %vm1115, %v3841, 0
    %v4051 = vsel %vm1115, %v3842, 0
    %v4054 = vsel %vm1115, %v3843, 0
    %v4057 = vsel %vm1115, %v3844, 0
    %v4060 = vsel %vm1115, %v3845, 0
    %v4063 = vsel %vm1115, %v3846, 0
    %v4066 = vsel %vm1115, %v3847, 0
    %v4069 = vsel %vm1115, %v3848, 0
    %v4072 = vsel %vm1115, %v3849, 0
    %v4075 = vsel %vm1115, %v3850, 0
    %v4078 = vsel %vm1115, %v3851, 0
    %v4081 = vsel %vm1115, %v3852, 0
    %v4084 = vsel %vm1115, %v3853, 0
    %v4087 = vsel %vm1115, %v3854, 0
    %v4090 = vsel %vm1115, %v3855, 0
    %v4093 = vsel %vm1115, %v3856, 0
    %v4096 = vsel %vm1115, %v3857, 0
    %v4099 = vsel %vm1115, %v3858, 0
    %v4102 = vsel %vm1115, %v3859, 0
    %v4105 = vsel %vm1115, %v3860, 0
    %v4108 = vsel %vm1115, %v3861, 0
    %v4111 = vsel %vm1115, %v3862, 0
    %v4114 = vsel %vm1115, %v3863, 0
    %v4117 = vsel %vm1115, %v3864, 0
    %v4120 = vsel %vm1115, %v3865, 0
    %v4123 = vsel %vm1115, %v3866, 0
    %v4126 = vsel %vm1115, %v3867, 0
    %v4129 = vsel %vm1115, %v3868, 0
    %v4132 = vsel %vm1115, %v3869, 0
    %v4135 = vsel %vm1115, %v3870, 0
    %v4138 = vsel %vm1115, %v3871, 0
    %v4141 = vsel %vm1115, %v3872, 0
    %v4144 = vsel %vm1115, %v3873, 0
    %v4147 = vsel %vm1115, %v3874, 0
    %v4150 = vsel %vm1115, %v3875, 0
    %v4153 = vsel %vm1115, %v3876, 0
    %v4156 = vsel %vm1115, %v3877, 0
    %v4159 = vsel %vm1115, %v3878, 0
    %v4162 = vsel %vm1115, %v3879, 0
    %v4165 = vsel %vm1115, %v3880, 0
    %v4168 = vsel %vm1115, %v3881, 0
    %v4171 = vsel %vm1115, %v3882, 0
    %v4174 = vsel %vm1115, %v3883, 0
    %v4177 = vsel %vm1115, %v3884, 0
    %v4180 = vsel %vm1115, %v3885, 0
    %v4183 = vsel %vm1115, %v3886, 0
    %v4186 = vsel %vm1115, %v3887, 0
    %v4189 = vsel %vm1115, %v3888, 0
    %v4192 = vsel %vm1115, %v3889, 0
    %v4195 = vsel %vm1115, %v3890, 0
    %v4198 = vsel %vm1115, %v3891, 0
    %v4201 = vsel %vm1115, %v3892, 0
    %v4204 = vsel %vm1115, %v3893, 0
    %v4207 = vsel %vm1115, %v3894, 0
    %v4210 = vsel %vm1115, %v3895, 0
    %v4213 = vsel %vm1115, %v3896, 0
    %v4216 = vsel %vm1115, %v3897, 0
    %v4219 = vsel %vm1115, %v3898, 0
    %v4222 = vsel %vm1115, %v3899, 0
    %v4225 = vsel %vm1115, %v3900, 0
    %v4228 = vsel %vm1115, %v3901, 0
    %v4231 = vsel %vm1115, %v3902, 0
    %v4234 = vsel %vm1115, %v3903, 0
    %v4237 = vsel %vm1115, %v3904, 0
    %v4240 = vsel %vm1115, %v3905, 0
    %v4243 = vsel %vm1115, %v3906, 0
    %v4246 = vsel %vm1115, %v3907, 0
    %v4249 = vsel %vm1115, %v3908, 0
    %v4252 = vsel %vm1115, %v3909, 0
    %v4255 = vsel %vm1115, %v3910, 0
    %v4258 = vsel %vm1115, %v3911, 0
    %v4261 = vsel %vm1115, %v3912, 0
    %v4264 = vsel %vm1115, %v3913, 0
    %v4267 = vsel %vm1115, %v3914, 0
    %v4270 = vsel %vm1115, %v3915, 0
    %v4273 = vsel %vm1115, %v3916, 0
    %v4276 = vsel %vm1115, %v3917, 0
    %v4279 = vsel %vm1115, %v3918, 0
    %v4282 = vsel %vm1115, %v3919, 0
    %v4285 = vsel %vm1115, %v3920, 0
    %v4288 = vsel %vm1115, %v3921, 0
    %v4291 = vsel %vm1115, %v3922, 0
    %v4294 = vsel %vm1115, %v3923, 0
    %v4297 = vsel %vm1115, %v3924, 0
    %v4300 = vsel %vm1115, %v3925, 0
    %v4303 = vsel %vm1115, %v3926, 0
    %v4306 = vsel %vm1115, %v3927, 0
    %v4309 = vsel %vm1115, %v3928, 0
    %v4312 = vsel %vm1115, %v3929, 0
    %v4315 = vsel %vm1500, %v3286, 0
    %4317 = vmatpush.bf16.msra.mxu0 0
    %4318 = vmatpush.bf16.msra.mxu0 0
    %4319 = vmatpush.bf16.msra.mxu0 0
    %4320 = vmatpush.bf16.msra.mxu0 0
    %4321 = vmatpush.bf16.msra.mxu0 0
    %4322 = vmatpush.bf16.msra.mxu0 %v4315
    %4323 = vmatpush.bf16.msra.mxu0 %v3285
    %4324 = vmatpush.bf16.msra.mxu0 %v3284
    %4325 = vmatmul.bf16.gmra.mxu0 %v3931
    %v4326 = vpop.f32.mrf.mxu0
    %v4327 = vadd.f32 %v3288, %v4326
    %v4328 = vpop.f32.mrf.mxu0
    %v4329 = vadd.f32 %v3288, %v4328
    %4330 = vmatmul.bf16.gmra.mxu0 %v3934
    %v4331 = vpop.f32.mrf.mxu0
    %v4332 = vadd.f32 %v3288, %v4331
    %v4333 = vpop.f32.mrf.mxu0
    %v4334 = vadd.f32 %v3288, %v4333
    %4335 = vmatmul.bf16.gmra.mxu0 %v3937
    %v4336 = vpop.f32.mrf.mxu0
    %v4337 = vadd.f32 %v3288, %v4336
    %v4338 = vpop.f32.mrf.mxu0
    %v4339 = vadd.f32 %v3288, %v4338
    %4340 = vmatmul.bf16.gmra.mxu0 %v3940
    %v4341 = vpop.f32.mrf.mxu0
    %v4342 = vadd.f32 %v3288, %v4341
    %v4343 = vpop.f32.mrf.mxu0
    %v4344 = vadd.f32 %v3288, %v4343
    %4345 = vmatmul.bf16.gmra.mxu0 %v3943
    %v4346 = vpop.f32.mrf.mxu0
    %v4347 = vadd.f32 %v3288, %v4346
    %v4348 = vpop.f32.mrf.mxu0
    %v4349 = vadd.f32 %v3288, %v4348
    %4350 = vmatmul.bf16.gmra.mxu0 %v3946
    %v4351 = vpop.f32.mrf.mxu0
    %v4352 = vadd.f32 %v3288, %v4351
    %v4353 = vpop.f32.mrf.mxu0
    %v4354 = vadd.f32 %v3288, %v4353
    %4355 = vmatmul.bf16.gmra.mxu0 %v3949
    %v4356 = vpop.f32.mrf.mxu0
    %v4357 = vadd.f32 %v3288, %v4356
    %v4358 = vpop.f32.mrf.mxu0
    %v4359 = vadd.f32 %v3288, %v4358
    %4360 = vmatmul.bf16.gmra.mxu0 %v3952
    %v4361 = vpop.f32.mrf.mxu0
    %v4362 = vadd.f32 %v3288, %v4361
    %v4363 = vpop.f32.mrf.mxu0
    %v4364 = vadd.f32 %v3288, %v4363
    %4365 = vmatmul.bf16.gmra.mxu0 %v3955
    %v4366 = vpop.f32.mrf.mxu0
    %v4367 = vadd.f32 %v3288, %v4366
    %v4368 = vpop.f32.mrf.mxu0
    %v4369 = vadd.f32 %v3288, %v4368
    %4370 = vmatmul.bf16.gmra.mxu0 %v3958
    %v4371 = vpop.f32.mrf.mxu0
    %v4372 = vadd.f32 %v3288, %v4371
    %v4373 = vpop.f32.mrf.mxu0
    %v4374 = vadd.f32 %v3288, %v4373
    %4375 = vmatmul.bf16.gmra.mxu0 %v3961
    %v4376 = vpop.f32.mrf.mxu0
    %v4377 = vadd.f32 %v3288, %v4376
    %v4378 = vpop.f32.mrf.mxu0
    %v4379 = vadd.f32 %v3288, %v4378
    %4380 = vmatmul.bf16.gmra.mxu0 %v3964
    %v4381 = vpop.f32.mrf.mxu0
    %v4382 = vadd.f32 %v3288, %v4381
    %v4383 = vpop.f32.mrf.mxu0
    %v4384 = vadd.f32 %v3288, %v4383
    %4385 = vmatmul.bf16.gmra.mxu0 %v3967
    %v4386 = vpop.f32.mrf.mxu0
    %v4387 = vadd.f32 %v3288, %v4386
    %v4388 = vpop.f32.mrf.mxu0
    %v4389 = vadd.f32 %v3288, %v4388
    %4390 = vmatmul.bf16.gmra.mxu0 %v3970
    %v4391 = vpop.f32.mrf.mxu0
    %v4392 = vadd.f32 %v3288, %v4391
    %v4393 = vpop.f32.mrf.mxu0
    %v4394 = vadd.f32 %v3288, %v4393
    %4395 = vmatmul.bf16.gmra.mxu0 %v3973
    %v4396 = vpop.f32.mrf.mxu0
    %v4397 = vadd.f32 %v3288, %v4396
    %v4398 = vpop.f32.mrf.mxu0
    %v4399 = vadd.f32 %v3288, %v4398
    %4400 = vmatmul.bf16.gmra.mxu0 %v3976
    %v4401 = vpop.f32.mrf.mxu0
    %v4402 = vadd.f32 %v3288, %v4401
    %v4403 = vpop.f32.mrf.mxu0
    %v4404 = vadd.f32 %v3288, %v4403
    %4405 = vmatmul.bf16.gmra.mxu0 %v3979
    %v4406 = vpop.f32.mrf.mxu0
    %v4407 = vadd.f32 %v3288, %v4406
    %v4408 = vpop.f32.mrf.mxu0
    %v4409 = vadd.f32 %v3288, %v4408
    %4410 = vmatmul.bf16.gmra.mxu0 %v3982
    %v4411 = vpop.f32.mrf.mxu0
    %v4412 = vadd.f32 %v3288, %v4411
    %v4413 = vpop.f32.mrf.mxu0
    %v4414 = vadd.f32 %v3288, %v4413
    %4415 = vmatmul.bf16.gmra.mxu0 %v3985
    %v4416 = vpop.f32.mrf.mxu0
    %v4417 = vadd.f32 %v3288, %v4416
    %v4418 = vpop.f32.mrf.mxu0
    %v4419 = vadd.f32 %v3288, %v4418
    %4420 = vmatmul.bf16.gmra.mxu0 %v3988
    %v4421 = vpop.f32.mrf.mxu0
    %v4422 = vadd.f32 %v3288, %v4421
    %v4423 = vpop.f32.mrf.mxu0
    %v4424 = vadd.f32 %v3288, %v4423
    %4425 = vmatmul.bf16.gmra.mxu0 %v3991
    %v4426 = vpop.f32.mrf.mxu0
    %v4427 = vadd.f32 %v3288, %v4426
    %v4428 = vpop.f32.mrf.mxu0
    %v4429 = vadd.f32 %v3288, %v4428
    %4430 = vmatmul.bf16.gmra.mxu0 %v3994
    %v4431 = vpop.f32.mrf.mxu0
    %v4432 = vadd.f32 %v3288, %v4431
    %v4433 = vpop.f32.mrf.mxu0
    %v4434 = vadd.f32 %v3288, %v4433
    %4435 = vmatmul.bf16.gmra.mxu0 %v3997
    %v4436 = vpop.f32.mrf.mxu0
    %v4437 = vadd.f32 %v3288, %v4436
    %v4438 = vpop.f32.mrf.mxu0
    %v4439 = vadd.f32 %v3288, %v4438
    %4440 = vmatmul.bf16.gmra.mxu0 %v4000
    %v4441 = vpop.f32.mrf.mxu0
    %v4442 = vadd.f32 %v3288, %v4441
    %v4443 = vpop.f32.mrf.mxu0
    %v4444 = vadd.f32 %v3288, %v4443
    %4445 = vmatmul.bf16.gmra.mxu0 %v4003
    %v4446 = vpop.f32.mrf.mxu0
    %v4447 = vadd.f32 %v3288, %v4446
    %v4448 = vpop.f32.mrf.mxu0
    %v4449 = vadd.f32 %v3288, %v4448
    %4450 = vmatmul.bf16.gmra.mxu0 %v4006
    %v4451 = vpop.f32.mrf.mxu0
    %v4452 = vadd.f32 %v3288, %v4451
    %v4453 = vpop.f32.mrf.mxu0
    %v4454 = vadd.f32 %v3288, %v4453
    %4455 = vmatmul.bf16.gmra.mxu0 %v4009
    %v4456 = vpop.f32.mrf.mxu0
    %v4457 = vadd.f32 %v3288, %v4456
    %v4458 = vpop.f32.mrf.mxu0
    %v4459 = vadd.f32 %v3288, %v4458
    %4460 = vmatmul.bf16.gmra.mxu0 %v4012
    %v4461 = vpop.f32.mrf.mxu0
    %v4462 = vadd.f32 %v3288, %v4461
    %v4463 = vpop.f32.mrf.mxu0
    %v4464 = vadd.f32 %v3288, %v4463
    %4465 = vmatmul.bf16.gmra.mxu0 %v4015
    %v4466 = vpop.f32.mrf.mxu0
    %v4467 = vadd.f32 %v3288, %v4466
    %v4468 = vpop.f32.mrf.mxu0
    %v4469 = vadd.f32 %v3288, %v4468
    %4470 = vmatmul.bf16.gmra.mxu0 %v4018
    %v4471 = vpop.f32.mrf.mxu0
    %v4472 = vadd.f32 %v3288, %v4471
    %v4473 = vpop.f32.mrf.mxu0
    %v4474 = vadd.f32 %v3288, %v4473
    %4475 = vmatmul.bf16.gmra.mxu0 %v4021
    %v4476 = vpop.f32.mrf.mxu0
    %v4477 = vadd.f32 %v3288, %v4476
    %v4478 = vpop.f32.mrf.mxu0
    %v4479 = vadd.f32 %v3288, %v4478
    %4480 = vmatmul.bf16.gmra.mxu0 %v4024
    %v4481 = vpop.f32.mrf.mxu0
    %v4482 = vadd.f32 %v3288, %v4481
    %v4483 = vpop.f32.mrf.mxu0
    %v4484 = vadd.f32 %v3288, %v4483
    %4485 = vmatmul.bf16.gmra.mxu0 %v4027
    %v4486 = vpop.f32.mrf.mxu0
    %v4487 = vadd.f32 %v3288, %v4486
    %v4488 = vpop.f32.mrf.mxu0
    %v4489 = vadd.f32 %v3288, %v4488
    %4490 = vmatmul.bf16.gmra.mxu0 %v4030
    %v4491 = vpop.f32.mrf.mxu0
    %v4492 = vadd.f32 %v3288, %v4491
    %v4493 = vpop.f32.mrf.mxu0
    %v4494 = vadd.f32 %v3288, %v4493
    %4495 = vmatmul.bf16.gmra.mxu0 %v4033
    %v4496 = vpop.f32.mrf.mxu0
    %v4497 = vadd.f32 %v3288, %v4496
    %v4498 = vpop.f32.mrf.mxu0
    %v4499 = vadd.f32 %v3288, %v4498
    %4500 = vmatmul.bf16.gmra.mxu0 %v4036
    %v4501 = vpop.f32.mrf.mxu0
    %v4502 = vadd.f32 %v3288, %v4501
    %v4503 = vpop.f32.mrf.mxu0
    %v4504 = vadd.f32 %v3288, %v4503
    %4505 = vmatmul.bf16.gmra.mxu0 %v4039
    %v4506 = vpop.f32.mrf.mxu0
    %v4507 = vadd.f32 %v3288, %v4506
    %v4508 = vpop.f32.mrf.mxu0
    %v4509 = vadd.f32 %v3288, %v4508
    %4510 = vmatmul.bf16.gmra.mxu0 %v4042
    %v4511 = vpop.f32.mrf.mxu0
    %v4512 = vadd.f32 %v3288, %v4511
    %v4513 = vpop.f32.mrf.mxu0
    %v4514 = vadd.f32 %v3288, %v4513
    %4515 = vmatmul.bf16.gmra.mxu0 %v4045
    %v4516 = vpop.f32.mrf.mxu0
    %v4517 = vadd.f32 %v3288, %v4516
    %v4518 = vpop.f32.mrf.mxu0
    %v4519 = vadd.f32 %v3288, %v4518
    %4520 = vmatmul.bf16.gmra.mxu0 %v4048
    %v4521 = vpop.f32.mrf.mxu0
    %v4522 = vadd.f32 %v3288, %v4521
    %v4523 = vpop.f32.mrf.mxu0
    %v4524 = vadd.f32 %v3288, %v4523
    %4525 = vmatmul.bf16.gmra.mxu0 %v4051
    %v4526 = vpop.f32.mrf.mxu0
    %v4527 = vadd.f32 %v3288, %v4526
    %v4528 = vpop.f32.mrf.mxu0
    %v4529 = vadd.f32 %v3288, %v4528
    %4530 = vmatmul.bf16.gmra.mxu0 %v4054
    %v4531 = vpop.f32.mrf.mxu0
    %v4532 = vadd.f32 %v3288, %v4531
    %v4533 = vpop.f32.mrf.mxu0
    %v4534 = vadd.f32 %v3288, %v4533
    %4535 = vmatmul.bf16.gmra.mxu0 %v4057
    %v4536 = vpop.f32.mrf.mxu0
    %v4537 = vadd.f32 %v3288, %v4536
    %v4538 = vpop.f32.mrf.mxu0
    %v4539 = vadd.f32 %v3288, %v4538
    %4540 = vmatmul.bf16.gmra.mxu0 %v4060
    %v4541 = vpop.f32.mrf.mxu0
    %v4542 = vadd.f32 %v3288, %v4541
    %v4543 = vpop.f32.mrf.mxu0
    %v4544 = vadd.f32 %v3288, %v4543
    %4545 = vmatmul.bf16.gmra.mxu0 %v4063
    %v4546 = vpop.f32.mrf.mxu0
    %v4547 = vadd.f32 %v3288, %v4546
    %v4548 = vpop.f32.mrf.mxu0
    %v4549 = vadd.f32 %v3288, %v4548
    %4550 = vmatmul.bf16.gmra.mxu0 %v4066
    %v4551 = vpop.f32.mrf.mxu0
    %v4552 = vadd.f32 %v3288, %v4551
    %v4553 = vpop.f32.mrf.mxu0
    %v4554 = vadd.f32 %v3288, %v4553
    %4555 = vmatmul.bf16.gmra.mxu0 %v4069
    %v4556 = vpop.f32.mrf.mxu0
    %v4557 = vadd.f32 %v3288, %v4556
    %v4558 = vpop.f32.mrf.mxu0
    %v4559 = vadd.f32 %v3288, %v4558
    %4560 = vmatmul.bf16.gmra.mxu0 %v4072
    %v4561 = vpop.f32.mrf.mxu0
    %v4562 = vadd.f32 %v3288, %v4561
    %v4563 = vpop.f32.mrf.mxu0
    %v4564 = vadd.f32 %v3288, %v4563
    %4565 = vmatmul.bf16.gmra.mxu0 %v4075
    %v4566 = vpop.f32.mrf.mxu0
    %v4567 = vadd.f32 %v3288, %v4566
    %v4568 = vpop.f32.mrf.mxu0
    %v4569 = vadd.f32 %v3288, %v4568
    %4570 = vmatmul.bf16.gmra.mxu0 %v4078
    %v4571 = vpop.f32.mrf.mxu0
    %v4572 = vadd.f32 %v3288, %v4571
    %v4573 = vpop.f32.mrf.mxu0
    %v4574 = vadd.f32 %v3288, %v4573
    %4575 = vmatmul.bf16.gmra.mxu0 %v4081
    %v4576 = vpop.f32.mrf.mxu0
    %v4577 = vadd.f32 %v3288, %v4576
    %v4578 = vpop.f32.mrf.mxu0
    %v4579 = vadd.f32 %v3288, %v4578
    %4580 = vmatmul.bf16.gmra.mxu0 %v4084
    %v4581 = vpop.f32.mrf.mxu0
    %v4582 = vadd.f32 %v3288, %v4581
    %v4583 = vpop.f32.mrf.mxu0
    %v4584 = vadd.f32 %v3288, %v4583
    %4585 = vmatmul.bf16.gmra.mxu0 %v4087
    %v4586 = vpop.f32.mrf.mxu0
    %v4587 = vadd.f32 %v3288, %v4586
    %v4588 = vpop.f32.mrf.mxu0
    %v4589 = vadd.f32 %v3288, %v4588
    %4590 = vmatmul.bf16.gmra.mxu0 %v4090
    %v4591 = vpop.f32.mrf.mxu0
    %v4592 = vadd.f32 %v3288, %v4591
    %v4593 = vpop.f32.mrf.mxu0
    %v4594 = vadd.f32 %v3288, %v4593
    %4595 = vmatmul.bf16.gmra.mxu0 %v4093
    %v4596 = vpop.f32.mrf.mxu0
    %v4597 = vadd.f32 %v3288, %v4596
    %v4598 = vpop.f32.mrf.mxu0
    %v4599 = vadd.f32 %v3288, %v4598
    %4600 = vmatmul.bf16.gmra.mxu0 %v4096
    %v4601 = vpop.f32.mrf.mxu0
    %v4602 = vadd.f32 %v3288, %v4601
    %v4603 = vpop.f32.mrf.mxu0
    %v4604 = vadd.f32 %v3288, %v4603
    %4605 = vmatmul.bf16.gmra.mxu0 %v4099
    %v4606 = vpop.f32.mrf.mxu0
    %v4607 = vadd.f32 %v3288, %v4606
    %v4608 = vpop.f32.mrf.mxu0
    %v4609 = vadd.f32 %v3288, %v4608
    %4610 = vmatmul.bf16.gmra.mxu0 %v4102
    %v4611 = vpop.f32.mrf.mxu0
    %v4612 = vadd.f32 %v3288, %v4611
    %v4613 = vpop.f32.mrf.mxu0
    %v4614 = vadd.f32 %v3288, %v4613
    %4615 = vmatmul.bf16.gmra.mxu0 %v4105
    %v4616 = vpop.f32.mrf.mxu0
    %v4617 = vadd.f32 %v3288, %v4616
    %v4618 = vpop.f32.mrf.mxu0
    %v4619 = vadd.f32 %v3288, %v4618
    %4620 = vmatmul.bf16.gmra.mxu0 %v4108
    %v4621 = vpop.f32.mrf.mxu0
    %v4622 = vadd.f32 %v3288, %v4621
    %v4623 = vpop.f32.mrf.mxu0
    %v4624 = vadd.f32 %v3288, %v4623
    %4625 = vmatmul.bf16.gmra.mxu0 %v4111
    %v4626 = vpop.f32.mrf.mxu0
    %v4627 = vadd.f32 %v3288, %v4626
    %v4628 = vpop.f32.mrf.mxu0
    %v4629 = vadd.f32 %v3288, %v4628
    %4630 = vmatmul.bf16.gmra.mxu0 %v4114
    %v4631 = vpop.f32.mrf.mxu0
    %v4632 = vadd.f32 %v3288, %v4631
    %v4633 = vpop.f32.mrf.mxu0
    %v4634 = vadd.f32 %v3288, %v4633
    %4635 = vmatmul.bf16.gmra.mxu0 %v4117
    %v4636 = vpop.f32.mrf.mxu0
    %v4637 = vadd.f32 %v3288, %v4636
    %v4638 = vpop.f32.mrf.mxu0
    %v4639 = vadd.f32 %v3288, %v4638
    %4640 = vmatmul.bf16.gmra.mxu0 %v4120
    %v4641 = vpop.f32.mrf.mxu0
    %v4642 = vadd.f32 %v3288, %v4641
    %v4643 = vpop.f32.mrf.mxu0
    %v4644 = vadd.f32 %v3288, %v4643
    %4645 = vmatmul.bf16.gmra.mxu0 %v4123
    %v4646 = vpop.f32.mrf.mxu0
    %v4647 = vadd.f32 %v3288, %v4646
    %v4648 = vpop.f32.mrf.mxu0
    %v4649 = vadd.f32 %v3288, %v4648
    %4650 = vmatmul.bf16.gmra.mxu0 %v4126
    %v4651 = vpop.f32.mrf.mxu0
    %v4652 = vadd.f32 %v3288, %v4651
    %v4653 = vpop.f32.mrf.mxu0
    %v4654 = vadd.f32 %v3288, %v4653
    %4655 = vmatmul.bf16.gmra.mxu0 %v4129
    %v4656 = vpop.f32.mrf.mxu0
    %v4657 = vadd.f32 %v3288, %v4656
    %v4658 = vpop.f32.mrf.mxu0
    %v4659 = vadd.f32 %v3288, %v4658
    %4660 = vmatmul.bf16.gmra.mxu0 %v4132
    %v4661 = vpop.f32.mrf.mxu0
    %v4662 = vadd.f32 %v3288, %v4661
    %v4663 = vpop.f32.mrf.mxu0
    %v4664 = vadd.f32 %v3288, %v4663
    %4665 = vmatmul.bf16.gmra.mxu0 %v4135
    %v4666 = vpop.f32.mrf.mxu0
    %v4667 = vadd.f32 %v3288, %v4666
    %v4668 = vpop.f32.mrf.mxu0
    %v4669 = vadd.f32 %v3288, %v4668
    %4670 = vmatmul.bf16.gmra.mxu0 %v4138
    %v4671 = vpop.f32.mrf.mxu0
    %v4672 = vadd.f32 %v3288, %v4671
    %v4673 = vpop.f32.mrf.mxu0
    %v4674 = vadd.f32 %v3288, %v4673
    %4675 = vmatmul.bf16.gmra.mxu0 %v4141
    %v4676 = vpop.f32.mrf.mxu0
    %v4677 = vadd.f32 %v3288, %v4676
    %v4678 = vpop.f32.mrf.mxu0
    %v4679 = vadd.f32 %v3288, %v4678
    %4680 = vmatmul.bf16.gmra.mxu0 %v4144
    %v4681 = vpop.f32.mrf.mxu0
    %v4682 = vadd.f32 %v3288, %v4681
    %v4683 = vpop.f32.mrf.mxu0
    %v4684 = vadd.f32 %v3288, %v4683
    %4685 = vmatmul.bf16.gmra.mxu0 %v4147
    %v4686 = vpop.f32.mrf.mxu0
    %v4687 = vadd.f32 %v3288, %v4686
    %v4688 = vpop.f32.mrf.mxu0
    %v4689 = vadd.f32 %v3288, %v4688
    %4690 = vmatmul.bf16.gmra.mxu0 %v4150
    %v4691 = vpop.f32.mrf.mxu0
    %v4692 = vadd.f32 %v3288, %v4691
    %v4693 = vpop.f32.mrf.mxu0
    %v4694 = vadd.f32 %v3288, %v4693
    %4695 = vmatmul.bf16.gmra.mxu0 %v4153
    %v4696 = vpop.f32.mrf.mxu0
    %v4697 = vadd.f32 %v3288, %v4696
    %v4698 = vpop.f32.mrf.mxu0
    %v4699 = vadd.f32 %v3288, %v4698
    %4700 = vmatmul.bf16.gmra.mxu0 %v4156
    %v4701 = vpop.f32.mrf.mxu0
    %v4702 = vadd.f32 %v3288, %v4701
    %v4703 = vpop.f32.mrf.mxu0
    %v4704 = vadd.f32 %v3288, %v4703
    %4705 = vmatmul.bf16.gmra.mxu0 %v4159
    %v4706 = vpop.f32.mrf.mxu0
    %v4707 = vadd.f32 %v3288, %v4706
    %v4708 = vpop.f32.mrf.mxu0
    %v4709 = vadd.f32 %v3288, %v4708
    %4710 = vmatmul.bf16.gmra.mxu0 %v4162
    %v4711 = vpop.f32.mrf.mxu0
    %v4712 = vadd.f32 %v3288, %v4711
    %v4713 = vpop.f32.mrf.mxu0
    %v4714 = vadd.f32 %v3288, %v4713
    %4715 = vmatmul.bf16.gmra.mxu0 %v4165
    %v4716 = vpop.f32.mrf.mxu0
    %v4717 = vadd.f32 %v3288, %v4716
    %v4718 = vpop.f32.mrf.mxu0
    %v4719 = vadd.f32 %v3288, %v4718
    %4720 = vmatmul.bf16.gmra.mxu0 %v4168
    %v4721 = vpop.f32.mrf.mxu0
    %v4722 = vadd.f32 %v3288, %v4721
    %v4723 = vpop.f32.mrf.mxu0
    %v4724 = vadd.f32 %v3288, %v4723
    %4725 = vmatmul.bf16.gmra.mxu0 %v4171
    %v4726 = vpop.f32.mrf.mxu0
    %v4727 = vadd.f32 %v3288, %v4726
    %v4728 = vpop.f32.mrf.mxu0
    %v4729 = vadd.f32 %v3288, %v4728
    %4730 = vmatmul.bf16.gmra.mxu0 %v4174
    %v4731 = vpop.f32.mrf.mxu0
    %v4732 = vadd.f32 %v3288, %v4731
    %v4733 = vpop.f32.mrf.mxu0
    %v4734 = vadd.f32 %v3288, %v4733
    %4735 = vmatmul.bf16.gmra.mxu0 %v4177
    %v4736 = vpop.f32.mrf.mxu0
    %v4737 = vadd.f32 %v3288, %v4736
    %v4738 = vpop.f32.mrf.mxu0
    %v4739 = vadd.f32 %v3288, %v4738
    %4740 = vmatmul.bf16.gmra.mxu0 %v4180
    %v4741 = vpop.f32.mrf.mxu0
    %v4742 = vadd.f32 %v3288, %v4741
    %v4743 = vpop.f32.mrf.mxu0
    %v4744 = vadd.f32 %v3288, %v4743
    %4745 = vmatmul.bf16.gmra.mxu0 %v4183
    %v4746 = vpop.f32.mrf.mxu0
    %v4747 = vadd.f32 %v3288, %v4746
    %v4748 = vpop.f32.mrf.mxu0
    %v4749 = vadd.f32 %v3288, %v4748
    %4750 = vmatmul.bf16.gmra.mxu0 %v4186
    %v4751 = vpop.f32.mrf.mxu0
    %v4752 = vadd.f32 %v3288, %v4751
    %v4753 = vpop.f32.mrf.mxu0
    %v4754 = vadd.f32 %v3288, %v4753
    %4755 = vmatmul.bf16.gmra.mxu0 %v4189
    %v4756 = vpop.f32.mrf.mxu0
    %v4757 = vadd.f32 %v3288, %v4756
    %v4758 = vpop.f32.mrf.mxu0
    %v4759 = vadd.f32 %v3288, %v4758
    %4760 = vmatmul.bf16.gmra.mxu0 %v4192
    %v4761 = vpop.f32.mrf.mxu0
    %v4762 = vadd.f32 %v3288, %v4761
    %v4763 = vpop.f32.mrf.mxu0
    %v4764 = vadd.f32 %v3288, %v4763
    %4765 = vmatmul.bf16.gmra.mxu0 %v4195
    %v4766 = vpop.f32.mrf.mxu0
    %v4767 = vadd.f32 %v3288, %v4766
    %v4768 = vpop.f32.mrf.mxu0
    %v4769 = vadd.f32 %v3288, %v4768
    %4770 = vmatmul.bf16.gmra.mxu0 %v4198
    %v4771 = vpop.f32.mrf.mxu0
    %v4772 = vadd.f32 %v3288, %v4771
    %v4773 = vpop.f32.mrf.mxu0
    %v4774 = vadd.f32 %v3288, %v4773
    %4775 = vmatmul.bf16.gmra.mxu0 %v4201
    %v4776 = vpop.f32.mrf.mxu0
    %v4777 = vadd.f32 %v3288, %v4776
    %v4778 = vpop.f32.mrf.mxu0
    %v4779 = vadd.f32 %v3288, %v4778
    %4780 = vmatmul.bf16.gmra.mxu0 %v4204
    %v4781 = vpop.f32.mrf.mxu0
    %v4782 = vadd.f32 %v3288, %v4781
    %v4783 = vpop.f32.mrf.mxu0
    %v4784 = vadd.f32 %v3288, %v4783
    %4785 = vmatmul.bf16.gmra.mxu0 %v4207
    %v4786 = vpop.f32.mrf.mxu0
    %v4787 = vadd.f32 %v3288, %v4786
    %v4788 = vpop.f32.mrf.mxu0
    %v4789 = vadd.f32 %v3288, %v4788
    %4790 = vmatmul.bf16.gmra.mxu0 %v4210
    %v4791 = vpop.f32.mrf.mxu0
    %v4792 = vadd.f32 %v3288, %v4791
    %v4793 = vpop.f32.mrf.mxu0
    %v4794 = vadd.f32 %v3288, %v4793
    %4795 = vmatmul.bf16.gmra.mxu0 %v4213
    %v4796 = vpop.f32.mrf.mxu0
    %v4797 = vadd.f32 %v3288, %v4796
    %v4798 = vpop.f32.mrf.mxu0
    %v4799 = vadd.f32 %v3288, %v4798
    %4800 = vmatmul.bf16.gmra.mxu0 %v4216
    %v4801 = vpop.f32.mrf.mxu0
    %v4802 = vadd.f32 %v3288, %v4801
    %v4803 = vpop.f32.mrf.mxu0
    %v4804 = vadd.f32 %v3288, %v4803
    %4805 = vmatmul.bf16.gmra.mxu0 %v4219
    %v4806 = vpop.f32.mrf.mxu0
    %v4807 = vadd.f32 %v3288, %v4806
    %v4808 = vpop.f32.mrf.mxu0
    %v4809 = vadd.f32 %v3288, %v4808
    %4810 = vmatmul.bf16.gmra.mxu0 %v4222
    %v4811 = vpop.f32.mrf.mxu0
    %v4812 = vadd.f32 %v3288, %v4811
    %v4813 = vpop.f32.mrf.mxu0
    %v4814 = vadd.f32 %v3288, %v4813
    %4815 = vmatmul.bf16.gmra.mxu0 %v4225
    %v4816 = vpop.f32.mrf.mxu0
    %v4817 = vadd.f32 %v3288, %v4816
    %v4818 = vpop.f32.mrf.mxu0
    %v4819 = vadd.f32 %v3288, %v4818
    %4820 = vmatmul.bf16.gmra.mxu0 %v4228
    %v4821 = vpop.f32.mrf.mxu0
    %v4822 = vadd.f32 %v3288, %v4821
    %v4823 = vpop.f32.mrf.mxu0
    %v4824 = vadd.f32 %v3288, %v4823
    %4825 = vmatmul.bf16.gmra.mxu0 %v4231
    %v4826 = vpop.f32.mrf.mxu0
    %v4827 = vadd.f32 %v3288, %v4826
    %v4828 = vpop.f32.mrf.mxu0
    %v4829 = vadd.f32 %v3288, %v4828
    %4830 = vmatmul.bf16.gmra.mxu0 %v4234
    %v4831 = vpop.f32.mrf.mxu0
    %v4832 = vadd.f32 %v3288, %v4831
    %v4833 = vpop.f32.mrf.mxu0
    %v4834 = vadd.f32 %v3288, %v4833
    %4835 = vmatmul.bf16.gmra.mxu0 %v4237
    %v4836 = vpop.f32.mrf.mxu0
    %v4837 = vadd.f32 %v3288, %v4836
    %v4838 = vpop.f32.mrf.mxu0
    %v4839 = vadd.f32 %v3288, %v4838
    %4840 = vmatmul.bf16.gmra.mxu0 %v4240
    %v4841 = vpop.f32.mrf.mxu0
    %v4842 = vadd.f32 %v3288, %v4841
    %v4843 = vpop.f32.mrf.mxu0
    %v4844 = vadd.f32 %v3288, %v4843
    %4845 = vmatmul.bf16.gmra.mxu0 %v4243
    %v4846 = vpop.f32.mrf.mxu0
    %v4847 = vadd.f32 %v3288, %v4846
    %v4848 = vpop.f32.mrf.mxu0
    %v4849 = vadd.f32 %v3288, %v4848
    %4850 = vmatmul.bf16.gmra.mxu0 %v4246
    %v4851 = vpop.f32.mrf.mxu0
    %v4852 = vadd.f32 %v3288, %v4851
    %v4853 = vpop.f32.mrf.mxu0
    %v4854 = vadd.f32 %v3288, %v4853
    %4855 = vmatmul.bf16.gmra.mxu0 %v4249
    %v4856 = vpop.f32.mrf.mxu0
    %v4857 = vadd.f32 %v3288, %v4856
    %v4858 = vpop.f32.mrf.mxu0
    %v4859 = vadd.f32 %v3288, %v4858
    %4860 = vmatmul.bf16.gmra.mxu0 %v4252
    %v4861 = vpop.f32.mrf.mxu0
    %v4862 = vadd.f32 %v3288, %v4861
    %v4863 = vpop.f32.mrf.mxu0
    %v4864 = vadd.f32 %v3288, %v4863
    %4865 = vmatmul.bf16.gmra.mxu0 %v4255
    %v4866 = vpop.f32.mrf.mxu0
    %v4867 = vadd.f32 %v3288, %v4866
    %v4868 = vpop.f32.mrf.mxu0
    %v4869 = vadd.f32 %v3288, %v4868
    %4870 = vmatmul.bf16.gmra.mxu0 %v4258
    %v4871 = vpop.f32.mrf.mxu0
    %v4872 = vadd.f32 %v3288, %v4871
    %v4873 = vpop.f32.mrf.mxu0
    %v4874 = vadd.f32 %v3288, %v4873
    %4875 = vmatmul.bf16.gmra.mxu0 %v4261
    %v4876 = vpop.f32.mrf.mxu0
    %v4877 = vadd.f32 %v3288, %v4876
    %v4878 = vpop.f32.mrf.mxu0
    %v4879 = vadd.f32 %v3288, %v4878
    %4880 = vmatmul.bf16.gmra.mxu0 %v4264
    %v4881 = vpop.f32.mrf.mxu0
    %v4882 = vadd.f32 %v3288, %v4881
    %v4883 = vpop.f32.mrf.mxu0
    %v4884 = vadd.f32 %v3288, %v4883
    %4885 = vmatmul.bf16.gmra.mxu0 %v4267
    %v4886 = vpop.f32.mrf.mxu0
    %v4887 = vadd.f32 %v3288, %v4886
    %v4888 = vpop.f32.mrf.mxu0
    %v4889 = vadd.f32 %v3288, %v4888
    %4890 = vmatmul.bf16.gmra.mxu0 %v4270
    %v4891 = vpop.f32.mrf.mxu0
    %v4892 = vadd.f32 %v3288, %v4891
    %v4893 = vpop.f32.mrf.mxu0
    %v4894 = vadd.f32 %v3288, %v4893
    %4895 = vmatmul.bf16.gmra.mxu0 %v4273
    %v4896 = vpop.f32.mrf.mxu0
    %v4897 = vadd.f32 %v3288, %v4896
    %v4898 = vpop.f32.mrf.mxu0
    %v4899 = vadd.f32 %v3288, %v4898
    %4900 = vmatmul.bf16.gmra.mxu0 %v4276
    %v4901 = vpop.f32.mrf.mxu0
    %v4902 = vadd.f32 %v3288, %v4901
    %v4903 = vpop.f32.mrf.mxu0
    %v4904 = vadd.f32 %v3288, %v4903
    %4905 = vmatmul.bf16.gmra.mxu0 %v4279
    %v4906 = vpop.f32.mrf.mxu0
    %v4907 = vadd.f32 %v3288, %v4906
    %v4908 = vpop.f32.mrf.mxu0
    %v4909 = vadd.f32 %v3288, %v4908
    %4910 = vmatmul.bf16.gmra.mxu0 %v4282
    %v4911 = vpop.f32.mrf.mxu0
    %v4912 = vadd.f32 %v3288, %v4911
    %v4913 = vpop.f32.mrf.mxu0
    %v4914 = vadd.f32 %v3288, %v4913
    %4915 = vmatmul.bf16.gmra.mxu0 %v4285
    %v4916 = vpop.f32.mrf.mxu0
    %v4917 = vadd.f32 %v3288, %v4916
    %v4918 = vpop.f32.mrf.mxu0
    %v4919 = vadd.f32 %v3288, %v4918
    %4920 = vmatmul.bf16.gmra.mxu0 %v4288
    %v4921 = vpop.f32.mrf.mxu0
    %v4922 = vadd.f32 %v3288, %v4921
    %v4923 = vpop.f32.mrf.mxu0
    %v4924 = vadd.f32 %v3288, %v4923
    %4925 = vmatmul.bf16.gmra.mxu0 %v4291
    %v4926 = vpop.f32.mrf.mxu0
    %v4927 = vadd.f32 %v3288, %v4926
    %v4928 = vpop.f32.mrf.mxu0
    %v4929 = vadd.f32 %v3288, %v4928
    %4930 = vmatmul.bf16.gmra.mxu0 %v4294
    %v4931 = vpop.f32.mrf.mxu0
    %v4932 = vadd.f32 %v3288, %v4931
    %v4933 = vpop.f32.mrf.mxu0
    %v4934 = vadd.f32 %v3288, %v4933
    %4935 = vmatmul.bf16.gmra.mxu0 %v4297
    %v4936 = vpop.f32.mrf.mxu0
    %v4937 = vadd.f32 %v3288, %v4936
    %v4938 = vpop.f32.mrf.mxu0
    %v4939 = vadd.f32 %v3288, %v4938
    %4940 = vmatmul.bf16.gmra.mxu0 %v4300
    %v4941 = vpop.f32.mrf.mxu0
    %v4942 = vadd.f32 %v3288, %v4941
    %v4943 = vpop.f32.mrf.mxu0
    %v4944 = vadd.f32 %v3288, %v4943
    %4945 = vmatmul.bf16.gmra.mxu0 %v4303
    %v4946 = vpop.f32.mrf.mxu0
    %v4947 = vadd.f32 %v3288, %v4946
    %v4948 = vpop.f32.mrf.mxu0
    %v4949 = vadd.f32 %v3288, %v4948
    %4950 = vmatmul.bf16.gmra.mxu0 %v4306
    %v4951 = vpop.f32.mrf.mxu0
    %v4952 = vadd.f32 %v3288, %v4951
    %v4953 = vpop.f32.mrf.mxu0
    %v4954 = vadd.f32 %v3288, %v4953
    %4955 = vmatmul.bf16.gmra.mxu0 %v4309
    %v4956 = vpop.f32.mrf.mxu0
    %v4957 = vadd.f32 %v3288, %v4956
    %v4958 = vpop.f32.mrf.mxu0
    %v4959 = vadd.f32 %v3288, %v4958
    %4960 = vmatmul.bf16.gmra.mxu0 %v4312
    %v4961 = vpop.f32.mrf.mxu0
    %v4962 = vadd.f32 %v3288, %v4961
    %v4963 = vpop.f32.mrf.mxu0
    %v4964 = vadd.f32 %v3288, %v4963
    %4965 = vdwg.mxu0
    %v4966 = vmax.f32 %v4327, 0.0
    %v4967 = vmax.f32 %v4329, 0.0
    %v4968 = vmax.f32 %v4332, 0.0
    %v4969 = vmax.f32 %v4334, 0.0
    %v4970 = vmax.f32 %v4337, 0.0
    %v4971 = vmax.f32 %v4339, 0.0
    %v4972 = vmax.f32 %v4342, 0.0
    %v4973 = vmax.f32 %v4344, 0.0
    %v4974 = vmax.f32 %v4347, 0.0
    %v4975 = vmax.f32 %v4349, 0.0
    %v4976 = vmax.f32 %v4352, 0.0
    %v4977 = vmax.f32 %v4354, 0.0
    %v4978 = vmax.f32 %v4357, 0.0
    %v4979 = vmax.f32 %v4359, 0.0
    %v4980 = vmax.f32 %v4362, 0.0
    %v4981 = vmax.f32 %v4364, 0.0
    %v4982 = vmax.f32 %v4367, 0.0
    %v4983 = vmax.f32 %v4369, 0.0
    %v4984 = vmax.f32 %v4372, 0.0
    %v4985 = vmax.f32 %v4374, 0.0
    %v4986 = vmax.f32 %v4377, 0.0
    %v4987 = vmax.f32 %v4379, 0.0
    %v4988 = vmax.f32 %v4382, 0.0
    %v4989 = vmax.f32 %v4384, 0.0
    %v4990 = vmax.f32 %v4387, 0.0
    %v4991 = vmax.f32 %v4389, 0.0
    %v4992 = vmax.f32 %v4392, 0.0
    %v4993 = vmax.f32 %v4394, 0.0
    %v4994 = vmax.f32 %v4397, 0.0
    %v4995 = vmax.f32 %v4399, 0.0
    %v4996 = vmax.f32 %v4402, 0.0
    %v4997 = vmax.f32 %v4404, 0.0
    %v4998 = vmax.f32 %v4407, 0.0
    %v4999 = vmax.f32 %v4409, 0.0
    %v5000 = vmax.f32 %v4412, 0.0
    %v5001 = vmax.f32 %v4414, 0.0
    %v5002 = vmax.f32 %v4417, 0.0
    %v5003 = vmax.f32 %v4419, 0.0
    %v5004 = vmax.f32 %v4422, 0.0
    %v5005 = vmax.f32 %v4424, 0.0
    %v5006 = vmax.f32 %v4427, 0.0
    %v5007 = vmax.f32 %v4429, 0.0
    %v5008 = vmax.f32 %v4432, 0.0
    %v5009 = vmax.f32 %v4434, 0.0
    %v5010 = vmax.f32 %v4437, 0.0
    %v5011 = vmax.f32 %v4439, 0.0
    %v5012 = vmax.f32 %v4442, 0.0
    %v5013 = vmax.f32 %v4444, 0.0
    %v5014 = vmax.f32 %v4447, 0.0
    %v5015 = vmax.f32 %v4449, 0.0
    %v5016 = vmax.f32 %v4452, 0.0
    %v5017 = vmax.f32 %v4454, 0.0
    %v5018 = vmax.f32 %v4457, 0.0
    %v5019 = vmax.f32 %v4459, 0.0
    %v5020 = vmax.f32 %v4462, 0.0
    %v5021 = vmax.f32 %v4464, 0.0
    %v5022 = vmax.f32 %v4467, 0.0
    %v5023 = vmax.f32 %v4469, 0.0
    %v5024 = vmax.f32 %v4472, 0.0
    %v5025 = vmax.f32 %v4474, 0.0
    %v5026 = vmax.f32 %v4477, 0.0
    %v5027 = vmax.f32 %v4479, 0.0
    %v5028 = vmax.f32 %v4482, 0.0
    %v5029 = vmax.f32 %v4484, 0.0
    %v5030 = vmax.f32 %v4487, 0.0
    %v5031 = vmax.f32 %v4489, 0.0
    %v5032 = vmax.f32 %v4492, 0.0
    %v5033 = vmax.f32 %v4494, 0.0
    %v5034 = vmax.f32 %v4497, 0.0
    %v5035 = vmax.f32 %v4499, 0.0
    %v5036 = vmax.f32 %v4502, 0.0
    %v5037 = vmax.f32 %v4504, 0.0
    %v5038 = vmax.f32 %v4507, 0.0
    %v5039 = vmax.f32 %v4509, 0.0
    %v5040 = vmax.f32 %v4512, 0.0
    %v5041 = vmax.f32 %v4514, 0.0
    %v5042 = vmax.f32 %v4517, 0.0
    %v5043 = vmax.f32 %v4519, 0.0
    %v5044 = vmax.f32 %v4522, 0.0
    %v5045 = vmax.f32 %v4524, 0.0
    %v5046 = vmax.f32 %v4527, 0.0
    %v5047 = vmax.f32 %v4529, 0.0
    %v5048 = vmax.f32 %v4532, 0.0
    %v5049 = vmax.f32 %v4534, 0.0
    %v5050 = vmax.f32 %v4537, 0.0
    %v5051 = vmax.f32 %v4539, 0.0
    %v5052 = vmax.f32 %v4542, 0.0
    %v5053 = vmax.f32 %v4544, 0.0
    %v5054 = vmax.f32 %v4547, 0.0
    %v5055 = vmax.f32 %v4549, 0.0
    %v5056 = vmax.f32 %v4552, 0.0
    %v5057 = vmax.f32 %v4554, 0.0
    %v5058 = vmax.f32 %v4557, 0.0
    %v5059 = vmax.f32 %v4559, 0.0
    %v5060 = vmax.f32 %v4562, 0.0
    %v5061 = vmax.f32 %v4564, 0.0
    %v5062 = vmax.f32 %v4567, 0.0
    %v5063 = vmax.f32 %v4569, 0.0
    %v5064 = vmax.f32 %v4572, 0.0
    %v5065 = vmax.f32 %v4574, 0.0
    %v5066 = vmax.f32 %v4577, 0.0
    %v5067 = vmax.f32 %v4579, 0.0
    %v5068 = vmax.f32 %v4582, 0.0
    %v5069 = vmax.f32 %v4584, 0.0
    %v5070 = vmax.f32 %v4587, 0.0
    %v5071 = vmax.f32 %v4589, 0.0
    %v5072 = vmax.f32 %v4592, 0.0
    %v5073 = vmax.f32 %v4594, 0.0
    %v5074 = vmax.f32 %v4597, 0.0
    %v5075 = vmax.f32 %v4599, 0.0
    %v5076 = vmax.f32 %v4602, 0.0
    %v5077 = vmax.f32 %v4604, 0.0
    %v5078 = vmax.f32 %v4607, 0.0
    %v5079 = vmax.f32 %v4609, 0.0
    %v5080 = vmax.f32 %v4612, 0.0
    %v5081 = vmax.f32 %v4614, 0.0
    %v5082 = vmax.f32 %v4617, 0.0
    %v5083 = vmax.f32 %v4619, 0.0
    %v5084 = vmax.f32 %v4622, 0.0
    %v5085 = vmax.f32 %v4624, 0.0
    %v5086 = vmax.f32 %v4627, 0.0
    %v5087 = vmax.f32 %v4629, 0.0
    %v5088 = vmax.f32 %v4632, 0.0
    %v5089 = vmax.f32 %v4634, 0.0
    %v5090 = vmax.f32 %v4637, 0.0
    %v5091 = vmax.f32 %v4639, 0.0
    %v5092 = vmax.f32 %v4642, 0.0
    %v5093 = vmax.f32 %v4644, 0.0
    %v5094 = vmax.f32 %v4647, 0.0
    %v5095 = vmax.f32 %v4649, 0.0
    %v5096 = vmax.f32 %v4652, 0.0
    %v5097 = vmax.f32 %v4654, 0.0
    %v5098 = vmax.f32 %v4657, 0.0
    %v5099 = vmax.f32 %v4659, 0.0
    %v5100 = vmax.f32 %v4662, 0.0
    %v5101 = vmax.f32 %v4664, 0.0
    %v5102 = vmax.f32 %v4667, 0.0
    %v5103 = vmax.f32 %v4669, 0.0
    %v5104 = vmax.f32 %v4672, 0.0
    %v5105 = vmax.f32 %v4674, 0.0
    %v5106 = vmax.f32 %v4677, 0.0
    %v5107 = vmax.f32 %v4679, 0.0
    %v5108 = vmax.f32 %v4682, 0.0
    %v5109 = vmax.f32 %v4684, 0.0
    %v5110 = vmax.f32 %v4687, 0.0
    %v5111 = vmax.f32 %v4689, 0.0
    %v5112 = vmax.f32 %v4692, 0.0
    %v5113 = vmax.f32 %v4694, 0.0
    %v5114 = vmax.f32 %v4697, 0.0
    %v5115 = vmax.f32 %v4699, 0.0
    %v5116 = vmax.f32 %v4702, 0.0
    %v5117 = vmax.f32 %v4704, 0.0
    %v5118 = vmax.f32 %v4707, 0.0
    %v5119 = vmax.f32 %v4709, 0.0
    %v5120 = vmax.f32 %v4712, 0.0
    %v5121 = vmax.f32 %v4714, 0.0
    %v5122 = vmax.f32 %v4717, 0.0
    %v5123 = vmax.f32 %v4719, 0.0
    %v5124 = vmax.f32 %v4722, 0.0
    %v5125 = vmax.f32 %v4724, 0.0
    %v5126 = vmax.f32 %v4727, 0.0
    %v5127 = vmax.f32 %v4729, 0.0
    %v5128 = vmax.f32 %v4732, 0.0
    %v5129 = vmax.f32 %v4734, 0.0
    %v5130 = vmax.f32 %v4737, 0.0
    %v5131 = vmax.f32 %v4739, 0.0
    %v5132 = vmax.f32 %v4742, 0.0
    %v5133 = vmax.f32 %v4744, 0.0
    %v5134 = vmax.f32 %v4747, 0.0
    %v5135 = vmax.f32 %v4749, 0.0
    %v5136 = vmax.f32 %v4752, 0.0
    %v5137 = vmax.f32 %v4754, 0.0
    %v5138 = vmax.f32 %v4757, 0.0
    %v5139 = vmax.f32 %v4759, 0.0
    %v5140 = vmax.f32 %v4762, 0.0
    %v5141 = vmax.f32 %v4764, 0.0
    %v5142 = vmax.f32 %v4767, 0.0
    %v5143 = vmax.f32 %v4769, 0.0
    %v5144 = vmax.f32 %v4772, 0.0
    %v5145 = vmax.f32 %v4774, 0.0
    %v5146 = vmax.f32 %v4777, 0.0
    %v5147 = vmax.f32 %v4779, 0.0
    %v5148 = vmax.f32 %v4782, 0.0
    %v5149 = vmax.f32 %v4784, 0.0
    %v5150 = vmax.f32 %v4787, 0.0
    %v5151 = vmax.f32 %v4789, 0.0
    %v5152 = vmax.f32 %v4792, 0.0
    %v5153 = vmax.f32 %v4794, 0.0
    %v5154 = vmax.f32 %v4797, 0.0
    %v5155 = vmax.f32 %v4799, 0.0
    %v5156 = vmax.f32 %v4802, 0.0
    %v5157 = vmax.f32 %v4804, 0.0
    %v5158 = vmax.f32 %v4807, 0.0
    %v5159 = vmax.f32 %v4809, 0.0
    %v5160 = vmax.f32 %v4812, 0.0
    %v5161 = vmax.f32 %v4814, 0.0
    %v5162 = vmax.f32 %v4817, 0.0
    %v5163 = vmax.f32 %v4819, 0.0
    %v5164 = vmax.f32 %v4822, 0.0
    %v5165 = vmax.f32 %v4824, 0.0
    %v5166 = vmax.f32 %v4827, 0.0
    %v5167 = vmax.f32 %v4829, 0.0
    %v5168 = vmax.f32 %v4832, 0.0
    %v5169 = vmax.f32 %v4834, 0.0
    %v5170 = vmax.f32 %v4837, 0.0
    %v5171 = vmax.f32 %v4839, 0.0
    %v5172 = vmax.f32 %v4842, 0.0
    %v5173 = vmax.f32 %v4844, 0.0
    %v5174 = vmax.f32 %v4847, 0.0
    %v5175 = vmax.f32 %v4849, 0.0
    %v5176 = vmax.f32 %v4852, 0.0
    %v5177 = vmax.f32 %v4854, 0.0
    %v5178 = vmax.f32 %v4857, 0.0
    %v5179 = vmax.f32 %v4859, 0.0
    %v5180 = vmax.f32 %v4862, 0.0
    %v5181 = vmax.f32 %v4864, 0.0
    %v5182 = vmax.f32 %v4867, 0.0
    %v5183 = vmax.f32 %v4869, 0.0
    %v5184 = vmax.f32 %v4872, 0.0
    %v5185 = vmax.f32 %v4874, 0.0
    %v5186 = vmax.f32 %v4877, 0.0
    %v5187 = vmax.f32 %v4879, 0.0
    %v5188 = vmax.f32 %v4882, 0.0
    %v5189 = vmax.f32 %v4884, 0.0
    %v5190 = vmax.f32 %v4887, 0.0
    %v5191 = vmax.f32 %v4889, 0.0
    %v5192 = vmax.f32 %v4892, 0.0
    %v5193 = vmax.f32 %v4894, 0.0
    %v5194 = vmax.f32 %v4897, 0.0
    %v5195 = vmax.f32 %v4899, 0.0
    %v5196 = vmax.f32 %v4902, 0.0
    %v5197 = vmax.f32 %v4904, 0.0
    %v5198 = vmax.f32 %v4907, 0.0
    %v5199 = vmax.f32 %v4909, 0.0
    %v5200 = vmax.f32 %v4912, 0.0
    %v5201 = vmax.f32 %v4914, 0.0
    %v5202 = vmax.f32 %v4917, 0.0
    %v5203 = vmax.f32 %v4919, 0.0
    %v5204 = vmax.f32 %v4922, 0.0
    %v5205 = vmax.f32 %v4924, 0.0
    %v5206 = vmax.f32 %v4927, 0.0
    %v5207 = vmax.f32 %v4929, 0.0
    %v5208 = vmax.f32 %v4932, 0.0
    %v5209 = vmax.f32 %v4934, 0.0
    %v5210 = vmax.f32 %v4937, 0.0
    %v5211 = vmax.f32 %v4939, 0.0
    %v5212 = vmax.f32 %v4942, 0.0
    %v5213 = vmax.f32 %v4944, 0.0
    %v5214 = vmax.f32 %v4947, 0.0
    %v5215 = vmax.f32 %v4949, 0.0
    %v5216 = vmax.f32 %v4952, 0.0
    %v5217 = vmax.f32 %v4954, 0.0
    %v5218 = vmax.f32 %v4957, 0.0
    %v5219 = vmax.f32 %v4959, 0.0
    %v5220 = vmax.f32 %v4962, 0.0
    %v5221 = vmax.f32 %v4964, 0.0
    %v5222 = vsel %vm121, %v4966, 0.0
    %v5223 = vsel %vm121, %v4967, 0.0
    %v5224 = vadd.f32 %v5222, %v5223
    %v5225 = vsel %vm121, %v4968, 0.0
    %v5226 = vadd.f32 %v5224, %v5225
    %v5227 = vsel %vm121, %v4969, 0.0
    %v5228 = vadd.f32 %v5226, %v5227
    %v5229 = vsel %vm121, %v4970, 0.0
    %v5230 = vadd.f32 %v5228, %v5229
    %v5231 = vsel %vm121, %v4971, 0.0
    %v5232 = vadd.f32 %v5230, %v5231
    %v5233 = vsel %vm121, %v4972, 0.0
    %v5234 = vadd.f32 %v5232, %v5233
    %v5235 = vsel %vm121, %v4973, 0.0
    %v5236 = vadd.f32 %v5234, %v5235
    %v5237 = vsel %vm121, %v4974, 0.0
    %v5238 = vadd.f32 %v5236, %v5237
    %v5239 = vsel %vm121, %v4975, 0.0
    %v5240 = vadd.f32 %v5238, %v5239
    %v5241 = vsel %vm121, %v4976, 0.0
    %v5242 = vadd.f32 %v5240, %v5241
    %v5243 = vsel %vm121, %v4977, 0.0
    %v5244 = vadd.f32 %v5242, %v5243
    %v5245 = vsel %vm121, %v4978, 0.0
    %v5246 = vadd.f32 %v5244, %v5245
    %v5247 = vsel %vm121, %v4979, 0.0
    %v5248 = vadd.f32 %v5246, %v5247
    %v5249 = vsel %vm121, %v4980, 0.0
    %v5250 = vadd.f32 %v5248, %v5249
    %v5251 = vsel %vm121, %v4981, 0.0
    %v5252 = vadd.f32 %v5250, %v5251
    %v5253 = vsel %vm121, %v4982, 0.0
    %v5254 = vadd.f32 %v5252, %v5253
    %v5255 = vsel %vm121, %v4983, 0.0
    %v5256 = vadd.f32 %v5254, %v5255
    %v5257 = vsel %vm121, %v4984, 0.0
    %v5258 = vadd.f32 %v5256, %v5257
    %v5259 = vsel %vm121, %v4985, 0.0
    %v5260 = vadd.f32 %v5258, %v5259
    %v5261 = vsel %vm121, %v4986, 0.0
    %v5262 = vadd.f32 %v5260, %v5261
    %v5263 = vsel %vm121, %v4987, 0.0
    %v5264 = vadd.f32 %v5262, %v5263
    %v5265 = vsel %vm121, %v4988, 0.0
    %v5266 = vadd.f32 %v5264, %v5265
    %v5267 = vsel %vm121, %v4989, 0.0
    %v5268 = vadd.f32 %v5266, %v5267
    %v5269 = vsel %vm121, %v4990, 0.0
    %v5270 = vadd.f32 %v5268, %v5269
    %v5271 = vsel %vm121, %v4991, 0.0
    %v5272 = vadd.f32 %v5270, %v5271
    %v5273 = vsel %vm121, %v4992, 0.0
    %v5274 = vadd.f32 %v5272, %v5273
    %v5275 = vsel %vm121, %v4993, 0.0
    %v5276 = vadd.f32 %v5274, %v5275
    %v5277 = vsel %vm121, %v4994, 0.0
    %v5278 = vadd.f32 %v5276, %v5277
    %v5279 = vsel %vm121, %v4995, 0.0
    %v5280 = vadd.f32 %v5278, %v5279
    %v5281 = vsel %vm121, %v4996, 0.0
    %v5282 = vadd.f32 %v5280, %v5281
    %v5283 = vsel %vm121, %v4997, 0.0
    %v5284 = vadd.f32 %v5282, %v5283
    %v5285 = vrot.slane %v5284, 4
    %v5286 = vadd.f32 %v5284, %v5285
    %v5287 = vrot.slane %v5286, 2
    %v5288 = vadd.f32 %v5286, %v5287
    %v5289 = vrot.slane %v5288, 1
    %v5290 = vadd.f32 %v5288, %v5289
    %v5291 = vsel %vm121, %v4998, 0.0
    %v5292 = vsel %vm121, %v4999, 0.0
    %v5293 = vadd.f32 %v5291, %v5292
    %v5294 = vsel %vm121, %v5000, 0.0
    %v5295 = vadd.f32 %v5293, %v5294
    %v5296 = vsel %vm121, %v5001, 0.0
    %v5297 = vadd.f32 %v5295, %v5296
    %v5298 = vsel %vm121, %v5002, 0.0
    %v5299 = vadd.f32 %v5297, %v5298
    %v5300 = vsel %vm121, %v5003, 0.0
    %v5301 = vadd.f32 %v5299, %v5300
    %v5302 = vsel %vm121, %v5004, 0.0
    %v5303 = vadd.f32 %v5301, %v5302
    %v5304 = vsel %vm121, %v5005, 0.0
    %v5305 = vadd.f32 %v5303, %v5304
    %v5306 = vsel %vm121, %v5006, 0.0
    %v5307 = vadd.f32 %v5305, %v5306
    %v5308 = vsel %vm121, %v5007, 0.0
    %v5309 = vadd.f32 %v5307, %v5308
    %v5310 = vsel %vm121, %v5008, 0.0
    %v5311 = vadd.f32 %v5309, %v5310
    %v5312 = vsel %vm121, %v5009, 0.0
    %v5313 = vadd.f32 %v5311, %v5312
    %v5314 = vsel %vm121, %v5010, 0.0
    %v5315 = vadd.f32 %v5313, %v5314
    %v5316 = vsel %vm121, %v5011, 0.0
    %v5317 = vadd.f32 %v5315, %v5316
    %v5318 = vsel %vm121, %v5012, 0.0
    %v5319 = vadd.f32 %v5317, %v5318
    %v5320 = vsel %vm121, %v5013, 0.0
    %v5321 = vadd.f32 %v5319, %v5320
    %v5322 = vsel %vm121, %v5014, 0.0
    %v5323 = vadd.f32 %v5321, %v5322
    %v5324 = vsel %vm121, %v5015, 0.0
    %v5325 = vadd.f32 %v5323, %v5324
    %v5326 = vsel %vm121, %v5016, 0.0
    %v5327 = vadd.f32 %v5325, %v5326
    %v5328 = vsel %vm121, %v5017, 0.0
    %v5329 = vadd.f32 %v5327, %v5328
    %v5330 = vsel %vm121, %v5018, 0.0
    %v5331 = vadd.f32 %v5329, %v5330
    %v5332 = vsel %vm121, %v5019, 0.0
    %v5333 = vadd.f32 %v5331, %v5332
    %v5334 = vsel %vm121, %v5020, 0.0
    %v5335 = vadd.f32 %v5333, %v5334
    %v5336 = vsel %vm121, %v5021, 0.0
    %v5337 = vadd.f32 %v5335, %v5336
    %v5338 = vsel %vm121, %v5022, 0.0
    %v5339 = vadd.f32 %v5337, %v5338
    %v5340 = vsel %vm121, %v5023, 0.0
    %v5341 = vadd.f32 %v5339, %v5340
    %v5342 = vsel %vm121, %v5024, 0.0
    %v5343 = vadd.f32 %v5341, %v5342
    %v5344 = vsel %vm121, %v5025, 0.0
    %v5345 = vadd.f32 %v5343, %v5344
    %v5346 = vsel %vm121, %v5026, 0.0
    %v5347 = vadd.f32 %v5345, %v5346
    %v5348 = vsel %vm121, %v5027, 0.0
    %v5349 = vadd.f32 %v5347, %v5348
    %v5350 = vsel %vm121, %v5028, 0.0
    %v5351 = vadd.f32 %v5349, %v5350
    %v5352 = vsel %vm121, %v5029, 0.0
    %v5353 = vadd.f32 %v5351, %v5352
    %v5354 = vrot.slane %v5353, 4
    %v5355 = vadd.f32 %v5353, %v5354
    %v5356 = vrot.slane %v5355, 2
    %v5357 = vadd.f32 %v5355, %v5356
    %v5358 = vrot.slane %v5357, 1
    %v5359 = vadd.f32 %v5357, %v5358
    %v5360 = vsel %vm121, %v5030, 0.0
    %v5361 = vsel %vm121, %v5031, 0.0
    %v5362 = vadd.f32 %v5360, %v5361
    %v5363 = vsel %vm121, %v5032, 0.0
    %v5364 = vadd.f32 %v5362, %v5363
    %v5365 = vsel %vm121, %v5033, 0.0
    %v5366 = vadd.f32 %v5364, %v5365
    %v5367 = vsel %vm121, %v5034, 0.0
    %v5368 = vadd.f32 %v5366, %v5367
    %v5369 = vsel %vm121, %v5035, 0.0
    %v5370 = vadd.f32 %v5368, %v5369
    %v5371 = vsel %vm121, %v5036, 0.0
    %v5372 = vadd.f32 %v5370, %v5371
    %v5373 = vsel %vm121, %v5037, 0.0
    %v5374 = vadd.f32 %v5372, %v5373
    %v5375 = vsel %vm121, %v5038, 0.0
    %v5376 = vadd.f32 %v5374, %v5375
    %v5377 = vsel %vm121, %v5039, 0.0
    %v5378 = vadd.f32 %v5376, %v5377
    %v5379 = vsel %vm121, %v5040, 0.0
    %v5380 = vadd.f32 %v5378, %v5379
    %v5381 = vsel %vm121, %v5041, 0.0
    %v5382 = vadd.f32 %v5380, %v5381
    %v5383 = vsel %vm121, %v5042, 0.0
    %v5384 = vadd.f32 %v5382, %v5383
    %v5385 = vsel %vm121, %v5043, 0.0
    %v5386 = vadd.f32 %v5384, %v5385
    %v5387 = vsel %vm121, %v5044, 0.0
    %v5388 = vadd.f32 %v5386, %v5387
    %v5389 = vsel %vm121, %v5045, 0.0
    %v5390 = vadd.f32 %v5388, %v5389
    %v5391 = vsel %vm121, %v5046, 0.0
    %v5392 = vadd.f32 %v5390, %v5391
    %v5393 = vsel %vm121, %v5047, 0.0
    %v5394 = vadd.f32 %v5392, %v5393
    %v5395 = vsel %vm121, %v5048, 0.0
    %v5396 = vadd.f32 %v5394, %v5395
    %v5397 = vsel %vm121, %v5049, 0.0
    %v5398 = vadd.f32 %v5396, %v5397
    %v5399 = vsel %vm121, %v5050, 0.0
    %v5400 = vadd.f32 %v5398, %v5399
    %v5401 = vsel %vm121, %v5051, 0.0
    %v5402 = vadd.f32 %v5400, %v5401
    %v5403 = vsel %vm121, %v5052, 0.0
    %v5404 = vadd.f32 %v5402, %v5403
    %v5405 = vsel %vm121, %v5053, 0.0
    %v5406 = vadd.f32 %v5404, %v5405
    %v5407 = vsel %vm121, %v5054, 0.0
    %v5408 = vadd.f32 %v5406, %v5407
    %v5409 = vsel %vm121, %v5055, 0.0
    %v5410 = vadd.f32 %v5408, %v5409
    %v5411 = vsel %vm121, %v5056, 0.0
    %v5412 = vadd.f32 %v5410, %v5411
    %v5413 = vsel %vm121, %v5057, 0.0
    %v5414 = vadd.f32 %v5412, %v5413
    %v5415 = vsel %vm121, %v5058, 0.0
    %v5416 = vadd.f32 %v5414, %v5415
    %v5417 = vsel %vm121, %v5059, 0.0
    %v5418 = vadd.f32 %v5416, %v5417
    %v5419 = vsel %vm121, %v5060, 0.0
    %v5420 = vadd.f32 %v5418, %v5419
    %v5421 = vsel %vm121, %v5061, 0.0
    %v5422 = vadd.f32 %v5420, %v5421
    %v5423 = vrot.slane %v5422, 4
    %v5424 = vadd.f32 %v5422, %v5423
    %v5425 = vrot.slane %v5424, 2
    %v5426 = vadd.f32 %v5424, %v5425
    %v5427 = vrot.slane %v5426, 1
    %v5428 = vadd.f32 %v5426, %v5427
    %v5429 = vsel %vm121, %v5062, 0.0
    %v5430 = vsel %vm121, %v5063, 0.0
    %v5431 = vadd.f32 %v5429, %v5430
    %v5432 = vsel %vm121, %v5064, 0.0
    %v5433 = vadd.f32 %v5431, %v5432
    %v5434 = vsel %vm121, %v5065, 0.0
    %v5435 = vadd.f32 %v5433, %v5434
    %v5436 = vsel %vm121, %v5066, 0.0
    %v5437 = vadd.f32 %v5435, %v5436
    %v5438 = vsel %vm121, %v5067, 0.0
    %v5439 = vadd.f32 %v5437, %v5438
    %v5440 = vsel %vm121, %v5068, 0.0
    %v5441 = vadd.f32 %v5439, %v5440
    %v5442 = vsel %vm121, %v5069, 0.0
    %v5443 = vadd.f32 %v5441, %v5442
    %v5444 = vsel %vm121, %v5070, 0.0
    %v5445 = vadd.f32 %v5443, %v5444
    %v5446 = vsel %vm121, %v5071, 0.0
    %v5447 = vadd.f32 %v5445, %v5446
    %v5448 = vsel %vm121, %v5072, 0.0
    %v5449 = vadd.f32 %v5447, %v5448
    %v5450 = vsel %vm121, %v5073, 0.0
    %v5451 = vadd.f32 %v5449, %v5450
    %v5452 = vsel %vm121, %v5074, 0.0
    %v5453 = vadd.f32 %v5451, %v5452
    %v5454 = vsel %vm121, %v5075, 0.0
    %v5455 = vadd.f32 %v5453, %v5454
    %v5456 = vsel %vm121, %v5076, 0.0
    %v5457 = vadd.f32 %v5455, %v5456
    %v5458 = vsel %vm121, %v5077, 0.0
    %v5459 = vadd.f32 %v5457, %v5458
    %v5460 = vsel %vm121, %v5078, 0.0
    %v5461 = vadd.f32 %v5459, %v5460
    %v5462 = vsel %vm121, %v5079, 0.0
    %v5463 = vadd.f32 %v5461, %v5462
    %v5464 = vsel %vm121, %v5080, 0.0
    %v5465 = vadd.f32 %v5463, %v5464
    %v5466 = vsel %vm121, %v5081, 0.0
    %v5467 = vadd.f32 %v5465, %v5466
    %v5468 = vsel %vm121, %v5082, 0.0
    %v5469 = vadd.f32 %v5467, %v5468
    %v5470 = vsel %vm121, %v5083, 0.0
    %v5471 = vadd.f32 %v5469, %v5470
    %v5472 = vsel %vm121, %v5084, 0.0
    %v5473 = vadd.f32 %v5471, %v5472
    %v5474 = vsel %vm121, %v5085, 0.0
    %v5475 = vadd.f32 %v5473, %v5474
    %v5476 = vsel %vm121, %v5086, 0.0
    %v5477 = vadd.f32 %v5475, %v5476
    %v5478 = vsel %vm121, %v5087, 0.0
    %v5479 = vadd.f32 %v5477, %v5478
    %v5480 = vsel %vm121, %v5088, 0.0
    %v5481 = vadd.f32 %v5479, %v5480
    %v5482 = vsel %vm121, %v5089, 0.0
    %v5483 = vadd.f32 %v5481, %v5482
    %v5484 = vsel %vm121, %v5090, 0.0
    %v5485 = vadd.f32 %v5483, %v5484
    %v5486 = vsel %vm121, %v5091, 0.0
    %v5487 = vadd.f32 %v5485, %v5486
    %v5488 = vsel %vm121, %v5092, 0.0
    %v5489 = vadd.f32 %v5487, %v5488
    %v5490 = vsel %vm121, %v5093, 0.0
    %v5491 = vadd.f32 %v5489, %v5490
    %v5492 = vrot.slane %v5491, 4
    %v5493 = vadd.f32 %v5491, %v5492
    %v5494 = vrot.slane %v5493, 2
    %v5495 = vadd.f32 %v5493, %v5494
    %v5496 = vrot.slane %v5495, 1
    %v5497 = vadd.f32 %v5495, %v5496
    %v5498 = vsel %vm121, %v5094, 0.0
    %v5499 = vsel %vm121, %v5095, 0.0
    %v5500 = vadd.f32 %v5498, %v5499
    %v5501 = vsel %vm121, %v5096, 0.0
    %v5502 = vadd.f32 %v5500, %v5501
    %v5503 = vsel %vm121, %v5097, 0.0
    %v5504 = vadd.f32 %v5502, %v5503
    %v5505 = vsel %vm121, %v5098, 0.0
    %v5506 = vadd.f32 %v5504, %v5505
    %v5507 = vsel %vm121, %v5099, 0.0
    %v5508 = vadd.f32 %v5506, %v5507
    %v5509 = vsel %vm121, %v5100, 0.0
    %v5510 = vadd.f32 %v5508, %v5509
    %v5511 = vsel %vm121, %v5101, 0.0
    %v5512 = vadd.f32 %v5510, %v5511
    %v5513 = vsel %vm121, %v5102, 0.0
    %v5514 = vadd.f32 %v5512, %v5513
    %v5515 = vsel %vm121, %v5103, 0.0
    %v5516 = vadd.f32 %v5514, %v5515
    %v5517 = vsel %vm121, %v5104, 0.0
    %v5518 = vadd.f32 %v5516, %v5517
    %v5519 = vsel %vm121, %v5105, 0.0
    %v5520 = vadd.f32 %v5518, %v5519
    %v5521 = vsel %vm121, %v5106, 0.0
    %v5522 = vadd.f32 %v5520, %v5521
    %v5523 = vsel %vm121, %v5107, 0.0
    %v5524 = vadd.f32 %v5522, %v5523
    %v5525 = vsel %vm121, %v5108, 0.0
    %v5526 = vadd.f32 %v5524, %v5525
    %v5527 = vsel %vm121, %v5109, 0.0
    %v5528 = vadd.f32 %v5526, %v5527
    %v5529 = vsel %vm121, %v5110, 0.0
    %v5530 = vadd.f32 %v5528, %v5529
    %v5531 = vsel %vm121, %v5111, 0.0
    %v5532 = vadd.f32 %v5530, %v5531
    %v5533 = vsel %vm121, %v5112, 0.0
    %v5534 = vadd.f32 %v5532, %v5533
    %v5535 = vsel %vm121, %v5113, 0.0
    %v5536 = vadd.f32 %v5534, %v5535
    %v5537 = vsel %vm121, %v5114, 0.0
    %v5538 = vadd.f32 %v5536, %v5537
    %v5539 = vsel %vm121, %v5115, 0.0
    %v5540 = vadd.f32 %v5538, %v5539
    %v5541 = vsel %vm121, %v5116, 0.0
    %v5542 = vadd.f32 %v5540, %v5541
    %v5543 = vsel %vm121, %v5117, 0.0
    %v5544 = vadd.f32 %v5542, %v5543
    %v5545 = vsel %vm121, %v5118, 0.0
    %v5546 = vadd.f32 %v5544, %v5545
    %v5547 = vsel %vm121, %v5119, 0.0
    %v5548 = vadd.f32 %v5546, %v5547
    %v5549 = vsel %vm121, %v5120, 0.0
    %v5550 = vadd.f32 %v5548, %v5549
    %v5551 = vsel %vm121, %v5121, 0.0
    %v5552 = vadd.f32 %v5550, %v5551
    %v5553 = vsel %vm121, %v5122, 0.0
    %v5554 = vadd.f32 %v5552, %v5553
    %v5555 = vsel %vm121, %v5123, 0.0
    %v5556 = vadd.f32 %v5554, %v5555
    %v5557 = vsel %vm121, %v5124, 0.0
    %v5558 = vadd.f32 %v5556, %v5557
    %v5559 = vsel %vm121, %v5125, 0.0
    %v5560 = vadd.f32 %v5558, %v5559
    %v5561 = vrot.slane %v5560, 4
    %v5562 = vadd.f32 %v5560, %v5561
    %v5563 = vrot.slane %v5562, 2
    %v5564 = vadd.f32 %v5562, %v5563
    %v5565 = vrot.slane %v5564, 1
    %v5566 = vadd.f32 %v5564, %v5565
    %v5567 = vsel %vm121, %v5126, 0.0
    %v5568 = vsel %vm121, %v5127, 0.0
    %v5569 = vadd.f32 %v5567, %v5568
    %v5570 = vsel %vm121, %v5128, 0.0
    %v5571 = vadd.f32 %v5569, %v5570
    %v5572 = vsel %vm121, %v5129, 0.0
    %v5573 = vadd.f32 %v5571, %v5572
    %v5574 = vsel %vm121, %v5130, 0.0
    %v5575 = vadd.f32 %v5573, %v5574
    %v5576 = vsel %vm121, %v5131, 0.0
    %v5577 = vadd.f32 %v5575, %v5576
    %v5578 = vsel %vm121, %v5132, 0.0
    %v5579 = vadd.f32 %v5577, %v5578
    %v5580 = vsel %vm121, %v5133, 0.0
    %v5581 = vadd.f32 %v5579, %v5580
    %v5582 = vsel %vm121, %v5134, 0.0
    %v5583 = vadd.f32 %v5581, %v5582
    %v5584 = vsel %vm121, %v5135, 0.0
    %v5585 = vadd.f32 %v5583, %v5584
    %v5586 = vsel %vm121, %v5136, 0.0
    %v5587 = vadd.f32 %v5585, %v5586
    %v5588 = vsel %vm121, %v5137, 0.0
    %v5589 = vadd.f32 %v5587, %v5588
    %v5590 = vsel %vm121, %v5138, 0.0
    %v5591 = vadd.f32 %v5589, %v5590
    %v5592 = vsel %vm121, %v5139, 0.0
    %v5593 = vadd.f32 %v5591, %v5592
    %v5594 = vsel %vm121, %v5140, 0.0
    %v5595 = vadd.f32 %v5593, %v5594
    %v5596 = vsel %vm121, %v5141, 0.0
    %v5597 = vadd.f32 %v5595, %v5596
    %v5598 = vsel %vm121, %v5142, 0.0
    %v5599 = vadd.f32 %v5597, %v5598
    %v5600 = vsel %vm121, %v5143, 0.0
    %v5601 = vadd.f32 %v5599, %v5600
    %v5602 = vsel %vm121, %v5144, 0.0
    %v5603 = vadd.f32 %v5601, %v5602
    %v5604 = vsel %vm121, %v5145, 0.0
    %v5605 = vadd.f32 %v5603, %v5604
    %v5606 = vsel %vm121, %v5146, 0.0
    %v5607 = vadd.f32 %v5605, %v5606
    %v5608 = vsel %vm121, %v5147, 0.0
    %v5609 = vadd.f32 %v5607, %v5608
    %v5610 = vsel %vm121, %v5148, 0.0
    %v5611 = vadd.f32 %v5609, %v5610
    %v5612 = vsel %vm121, %v5149, 0.0
    %v5613 = vadd.f32 %v5611, %v5612
    %v5614 = vsel %vm121, %v5150, 0.0
    %v5615 = vadd.f32 %v5613, %v5614
    %v5616 = vsel %vm121, %v5151, 0.0
    %v5617 = vadd.f32 %v5615, %v5616
    %v5618 = vsel %vm121, %v5152, 0.0
    %v5619 = vadd.f32 %v5617, %v5618
    %v5620 = vsel %vm121, %v5153, 0.0
    %v5621 = vadd.f32 %v5619, %v5620
    %v5622 = vsel %vm121, %v5154, 0.0
    %v5623 = vadd.f32 %v5621, %v5622
    %v5624 = vsel %vm121, %v5155, 0.0
    %v5625 = vadd.f32 %v5623, %v5624
    %v5626 = vsel %vm121, %v5156, 0.0
    %v5627 = vadd.f32 %v5625, %v5626
    %v5628 = vsel %vm121, %v5157, 0.0
    %v5629 = vadd.f32 %v5627, %v5628
    %v5630 = vrot.slane %v5629, 4
    %v5631 = vadd.f32 %v5629, %v5630
    %v5632 = vrot.slane %v5631, 2
    %v5633 = vadd.f32 %v5631, %v5632
    %v5634 = vrot.slane %v5633, 1
    %v5635 = vadd.f32 %v5633, %v5634
    %v5636 = vsel %vm121, %v5158, 0.0
    %v5637 = vsel %vm121, %v5159, 0.0
    %v5638 = vadd.f32 %v5636, %v5637
    %v5639 = vsel %vm121, %v5160, 0.0
    %v5640 = vadd.f32 %v5638, %v5639
    %v5641 = vsel %vm121, %v5161, 0.0
    %v5642 = vadd.f32 %v5640, %v5641
    %v5643 = vsel %vm121, %v5162, 0.0
    %v5644 = vadd.f32 %v5642, %v5643
    %v5645 = vsel %vm121, %v5163, 0.0
    %v5646 = vadd.f32 %v5644, %v5645
    %v5647 = vsel %vm121, %v5164, 0.0
    %v5648 = vadd.f32 %v5646, %v5647
    %v5649 = vsel %vm121, %v5165, 0.0
    %v5650 = vadd.f32 %v5648, %v5649
    %v5651 = vsel %vm121, %v5166, 0.0
    %v5652 = vadd.f32 %v5650, %v5651
    %v5653 = vsel %vm121, %v5167, 0.0
    %v5654 = vadd.f32 %v5652, %v5653
    %v5655 = vsel %vm121, %v5168, 0.0
    %v5656 = vadd.f32 %v5654, %v5655
    %v5657 = vsel %vm121, %v5169, 0.0
    %v5658 = vadd.f32 %v5656, %v5657
    %v5659 = vsel %vm121, %v5170, 0.0
    %v5660 = vadd.f32 %v5658, %v5659
    %v5661 = vsel %vm121, %v5171, 0.0
    %v5662 = vadd.f32 %v5660, %v5661
    %v5663 = vsel %vm121, %v5172, 0.0
    %v5664 = vadd.f32 %v5662, %v5663
    %v5665 = vsel %vm121, %v5173, 0.0
    %v5666 = vadd.f32 %v5664, %v5665
    %v5667 = vsel %vm121, %v5174, 0.0
    %v5668 = vadd.f32 %v5666, %v5667
    %v5669 = vsel %vm121, %v5175, 0.0
    %v5670 = vadd.f32 %v5668, %v5669
    %v5671 = vsel %vm121, %v5176, 0.0
    %v5672 = vadd.f32 %v5670, %v5671
    %v5673 = vsel %vm121, %v5177, 0.0
    %v5674 = vadd.f32 %v5672, %v5673
    %v5675 = vsel %vm121, %v5178, 0.0
    %v5676 = vadd.f32 %v5674, %v5675
    %v5677 = vsel %vm121, %v5179, 0.0
    %v5678 = vadd.f32 %v5676, %v5677
    %v5679 = vsel %vm121, %v5180, 0.0
    %v5680 = vadd.f32 %v5678, %v5679
    %v5681 = vsel %vm121, %v5181, 0.0
    %v5682 = vadd.f32 %v5680, %v5681
    %v5683 = vsel %vm121, %v5182, 0.0
    %v5684 = vadd.f32 %v5682, %v5683
    %v5685 = vsel %vm121, %v5183, 0.0
    %v5686 = vadd.f32 %v5684, %v5685
    %v5687 = vsel %vm121, %v5184, 0.0
    %v5688 = vadd.f32 %v5686, %v5687
    %v5689 = vsel %vm121, %v5185, 0.0
    %v5690 = vadd.f32 %v5688, %v5689
    %v5691 = vsel %vm121, %v5186, 0.0
    %v5692 = vadd.f32 %v5690, %v5691
    %v5693 = vsel %vm121, %v5187, 0.0
    %v5694 = vadd.f32 %v5692, %v5693
    %v5695 = vsel %vm121, %v5188, 0.0
    %v5696 = vadd.f32 %v5694, %v5695
    %v5697 = vsel %vm121, %v5189, 0.0
    %v5698 = vadd.f32 %v5696, %v5697
    %v5699 = vrot.slane %v5698, 4
    %v5700 = vadd.f32 %v5698, %v5699
    %v5701 = vrot.slane %v5700, 2
    %v5702 = vadd.f32 %v5700, %v5701
    %v5703 = vrot.slane %v5702, 1
    %v5704 = vadd.f32 %v5702, %v5703
    %v5705 = vsel %vm121, %v5190, 0.0
    %v5706 = vsel %vm121, %v5191, 0.0
    %v5707 = vadd.f32 %v5705, %v5706
    %v5708 = vsel %vm121, %v5192, 0.0
    %v5709 = vadd.f32 %v5707, %v5708
    %v5710 = vsel %vm121, %v5193, 0.0
    %v5711 = vadd.f32 %v5709, %v5710
    %v5712 = vsel %vm121, %v5194, 0.0
    %v5713 = vadd.f32 %v5711, %v5712
    %v5714 = vsel %vm121, %v5195, 0.0
    %v5715 = vadd.f32 %v5713, %v5714
    %v5716 = vsel %vm121, %v5196, 0.0
    %v5717 = vadd.f32 %v5715, %v5716
    %v5718 = vsel %vm121, %v5197, 0.0
    %v5719 = vadd.f32 %v5717, %v5718
    %v5720 = vsel %vm121, %v5198, 0.0
    %v5721 = vadd.f32 %v5719, %v5720
    %v5722 = vsel %vm121, %v5199, 0.0
    %v5723 = vadd.f32 %v5721, %v5722
    %v5724 = vsel %vm121, %v5200, 0.0
    %v5725 = vadd.f32 %v5723, %v5724
    %v5726 = vsel %vm121, %v5201, 0.0
    %v5727 = vadd.f32 %v5725, %v5726
    %v5728 = vsel %vm121, %v5202, 0.0
    %v5729 = vadd.f32 %v5727, %v5728
    %v5730 = vsel %vm121, %v5203, 0.0
    %v5731 = vadd.f32 %v5729, %v5730
    %v5732 = vsel %vm121, %v5204, 0.0
    %v5733 = vadd.f32 %v5731, %v5732
    %v5734 = vsel %vm121, %v5205, 0.0
    %v5735 = vadd.f32 %v5733, %v5734
    %v5736 = vsel %vm121, %v5206, 0.0
    %v5737 = vadd.f32 %v5735, %v5736
    %v5738 = vsel %vm121, %v5207, 0.0
    %v5739 = vadd.f32 %v5737, %v5738
    %v5740 = vsel %vm121, %v5208, 0.0
    %v5741 = vadd.f32 %v5739, %v5740
    %v5742 = vsel %vm121, %v5209, 0.0
    %v5743 = vadd.f32 %v5741, %v5742
    %v5744 = vsel %vm121, %v5210, 0.0
    %v5745 = vadd.f32 %v5743, %v5744
    %v5746 = vsel %vm121, %v5211, 0.0
    %v5747 = vadd.f32 %v5745, %v5746
    %v5748 = vsel %vm121, %v5212, 0.0
    %v5749 = vadd.f32 %v5747, %v5748
    %v5750 = vsel %vm121, %v5213, 0.0
    %v5751 = vadd.f32 %v5749, %v5750
    %v5752 = vsel %vm121, %v5214, 0.0
    %v5753 = vadd.f32 %v5751, %v5752
    %v5754 = vsel %vm121, %v5215, 0.0
    %v5755 = vadd.f32 %v5753, %v5754
    %v5756 = vsel %vm121, %v5216, 0.0
    %v5757 = vadd.f32 %v5755, %v5756
    %v5758 = vsel %vm121, %v5217, 0.0
    %v5759 = vadd.f32 %v5757, %v5758
    %v5760 = vsel %vm121, %v5218, 0.0
    %v5761 = vadd.f32 %v5759, %v5760
    %v5762 = vsel %vm121, %v5219, 0.0
    %v5763 = vadd.f32 %v5761, %v5762
    %v5764 = vsel %vm121, %v5220, 0.0
    %v5765 = vadd.f32 %v5763, %v5764
    %v5766 = vsel %vm121, %v5221, 0.0
    %v5767 = vadd.f32 %v5765, %v5766
    %v5768 = vrot.slane %v5767, 4
    %v5769 = vadd.f32 %v5767, %v5768
    %v5770 = vrot.slane %v5769, 2
    %v5771 = vadd.f32 %v5769, %v5770
    %v5772 = vrot.slane %v5771, 1
    %v5773 = vadd.f32 %v5771, %v5772
    %v5774 = vsel %vm2961, %v5290, %v5359
    %v5775 = vsel %vm1500, %v5774, %v5428
    %v5776 = vsel %vm2964, %v5775, %v5497
    %v5777 = vsel %vm2966, %v5776, %v5566
    %v5778 = vsel %vm2968, %v5777, %v5635
    %v5779 = vsel %vm2970, %v5778, %v5704
    %v5780 = vsel %vm2972, %v5779, %v5773
    %v5781 = vmul.f32 %v5780, 0.00390625
    %v5783 = vperm.slane %v163, 0
    %v5786 = vsel %vm121, %v5781, 0
    %5788 = vmatpush.msra.mxu0 0.0
    %5789 = vmatpush.msra.mxu0 0.0
    %5790 = vmatpush.msra.mxu0 0.0
    %5791 = vmatpush.msra.mxu0 0.0
    %5792 = vmatpush.msra.mxu0 0.0
    %5793 = vmatpush.msra.mxu0 0.0
    %5794 = vmatpush.msra.mxu0 0.0
    %5795 = vmatpush.msra.mxu0 0.0
    %5796 = vmatpush.msra.mxu0 0.0
    %5797 = vmatpush.msra.mxu0 0.0
    %5798 = vmatpush.msra.mxu0 0.0
    %5799 = vmatpush.msra.mxu0 0.0
    %5800 = vmatpush.msra.mxu0 %v154
    %5801 = vmatpush.msra.mxu0 %v153
    %5802 = vmatpush.msra.mxu0 %v152
    %5803 = vmatpush.msra.mxu0 %v151
    %5804 = vmatmul.f32.gmra.mxu0 %v5786
    %v5805 = vpop.f32.mrf.mxu0
    %v5806 = vadd.f32 %v5783, %v5805
    %5807 = vdwg.mxu0
    %v5808 = vmax.f32 %v5806, 0.0
    %v5810 = vperm.slane %v194, 0
    %v5813 = vsel %vm121, %v5808, 0
    %5815 = vmatpush.msra.mxu0 0.0
    %5816 = vmatpush.msra.mxu0 0.0
    %5817 = vmatpush.msra.mxu0 0.0
    %5818 = vmatpush.msra.mxu0 0.0
    %5819 = vmatpush.msra.mxu0 0.0
    %5820 = vmatpush.msra.mxu0 0.0
    %5821 = vmatpush.msra.mxu0 0.0
    %5822 = vmatpush.msra.mxu0 0.0
    %5823 = vmatpush.msra.mxu0 0.0
    %5824 = vmatpush.msra.mxu0 0.0
    %5825 = vmatpush.msra.mxu0 0.0
    %5826 = vmatpush.msra.mxu0 0.0
    %5827 = vmatpush.msra.mxu0 %v184
    %5828 = vmatpush.msra.mxu0 %v183
    %5829 = vmatpush.msra.mxu0 %v182
    %5830 = vmatpush.msra.mxu0 %v181
    %5831 = vmatmul.f32.gmra.mxu0 %v5813
    %v5832 = vpop.f32.mrf.mxu0
    %v5833 = vadd.f32 %v5810, %v5832
    %5834 = vdwg.mxu0
    %5835 = vst.msk [vmem:[#allocation8] sm:$0xff] %vm185, %v3026
    %v5836 = vmul.f32 %v3026, %v3026
    %v5837 = vsel %vm185, %v5836, 0.0
    %5838 = vadd.xlane.f32.xlu0 %v5837
    %v5839 = vpop.xlane.xlu0 %5838
    %v5840 = vmax.f32 %v5839, 1e-24
    %v5841 = vrsqrt.pop %v5840
    %v5842 = vmul.f32 %v5841, %v5840
    %v5843 = vmul.f32 %v5842, %v5841
    %v5844 = vmul.f32 0.5, %v5843
    %v5845 = vsub.f32 1.5, %v5844
    %v5846 = vmul.f32 %v5841, %v5845
    %vm5847 = vweird.f32 %v5840
    %vm5848 = vweird.f32 %v5841
    %vm5849 = vmor %vm5847, %vm5848
    %v5850 = vsel %vm5849, %v5841, %v5846
    %v5851 = vmul.f32 %v3026, %v5850
    %v5852 = vmul.f32 %v5833, %v5833
    %v5853 = vsel %vm185, %v5852, 0.0
    %5854 = vadd.xlane.f32.xlu0 %v5853
    %v5855 = vpop.xlane.xlu0 %5854
    %v5856 = vmax.f32 %v5855, 1e-24
    %v5857 = vrsqrt.pop %v5856
    %v5858 = vmul.f32 %v5857, %v5856
    %v5859 = vmul.f32 %v5858, %v5857
    %v5860 = vmul.f32 0.5, %v5859
    %v5861 = vsub.f32 1.5, %v5860
    %v5862 = vmul.f32 %v5857, %v5861
    %vm5863 = vweird.f32 %v5856
    %vm5864 = vweird.f32 %v5857
    %vm5865 = vmor %vm5863, %vm5864
    %v5866 = vsel %vm5865, %v5857, %v5862
    %v5867 = vmul.f32 %v5833, %v5866
    %v5868 = vmul.f32 %v5851, %v5867
    %v5869 = vsel %vm185, %v5868, 0.0
    %5870 = vadd.xlane.f32.xlu0 %v5869
    %v5871 = vpop.xlane.xlu0 %5870
    %s5872 = smul.u32 64, 1
    %s5873 = sshll.u32 %s5872, 4
    %5874 = dma.done [#allocation4], %s5873
    %v5875 = vld [vmem:[#allocation2] sm:$0xff]
    %v5876 = vld [vmem:[#allocation2 + $0x8] sm:$0xff]
    %v5877 = vld [vmem:[#allocation2 + $0x10] sm:$0xff]
    %v5878 = vld [vmem:[#allocation2 + $0x18] sm:$0xff]
    %v5879 = vld [vmem:[#allocation2 + $0x20] sm:$0xff]
    %v5880 = vld [vmem:[#allocation2 + $0x28] sm:$0xff]
    %v5881 = vld [vmem:[#allocation2 + $0x30] sm:$0xff]
    %v5882 = vld [vmem:[#allocation2 + $0x38] sm:$0xff]
    %v5884 = vsel %vm185, %v5851, 0
    %v5887 = vsel %vm185, %v5875, 0
    %v5890 = vsel %vm185, %v5876, 0
    %v5893 = vsel %vm185, %v5877, 0
    %v5896 = vsel %vm185, %v5878, 0
    %v5899 = vsel %vm185, %v5879, 0
    %v5902 = vsel %vm185, %v5880, 0
    %v5905 = vsel %vm185, %v5881, 0
    %v5908 = vsel %vm185, %v5882, 0
    %5910 = vmatpush.xpose.msra.mxu0 0.0
    %5911 = vmatpush.xpose.msra.mxu0 0.0
    %5912 = vmatpush.xpose.msra.mxu0 0.0
    %5913 = vmatpush.xpose.msra.mxu0 0.0
    %5914 = vmatpush.xpose.msra.mxu0 0.0
    %5915 = vmatpush.xpose.msra.mxu0 0.0
    %5916 = vmatpush.xpose.msra.mxu0 0.0
    %5917 = vmatpush.xpose.msra.mxu0 0.0
    %5918 = vmatpush.xpose.msra.mxu0 %v5908
    %5919 = vmatpush.xpose.msra.mxu0 %v5905
    %5920 = vmatpush.xpose.msra.mxu0 %v5902
    %5921 = vmatpush.xpose.msra.mxu0 %v5899
    %5922 = vmatpush.xpose.msra.mxu0 %v5896
    %5923 = vmatpush.xpose.msra.mxu0 %v5893
    %5924 = vmatpush.xpose.msra.mxu0 %v5890
    %5925 = vmatpush.xpose.msra.mxu0 %v5887
    %5926 = vmatmul.f32.gmra.mxu0 %v5884
    %v5927 = vpop.f32.mrf.mxu0
    %v5928 = vadd.f32 0.0, %v5927
    %5929 = vdwg.mxu0
    %5931 = vrot.lane.b32.xlu0 %v5928, 1
    %v5932 = vpop.permute.xlu0 %5931
    %vm5934 = vcmask 7168
    %v5935 = vsel %vm5934, %v5871, %v5932
    %vm5936 = vcmask 531456
    %v5937 = vsel %vm5936, %v5935, 0.0
    %v5938 = vmul.f32 %v5937, 14.285714
    %5939 = vst [vmem:[#allocation6] sm:$0xff] %v5938
    %5940 = vst.msk [vmem:[#allocation3] sm:$0xff] %vm185, %v5867
    %s5941 = sld [smem:[#allocation5]]
    %s5942 = scalar_lea.vmem %s18, %s5941
    %s5943 = scalar_lea.sflag [#allocation4], 1
    // Predicated region
    $region81: #{moco_forward.1} parent=1 // pred_check
      _
    $region82: #{moco_forward.1} parent=1 // pred_check_branch
      %5945 = sbr.rel (0) target = $region84
    $region83: #{moco_forward.1} parent=1 // pred_region
      // Predicated region
      $region96: #{moco_forward.1} parent=83 // pred_check
        _
      $region97: #{moco_forward.1} parent=83 // pred_check_branch
        %5961 = sbr.rel (0) target = $region99
      $region98: #{moco_forward.1} parent=83 // pred_region
        loop: start=0, step=1, limit=1
        $region100: #{moco_forward.1} parent=98 // loop_pre_header
          _
        $region101: #{moco_forward.1} parent=98 // loop_header
          %s5963 = sphi 0, %s5967
          %p5964 = scmp.ge.s32.totalorder %s5963, 1
          %s5968 = sphi [#allocation3], [#allocation3]
          %s5969 = sphi %s5942, %s5942
        $region102: #{moco_forward.1} parent=98 // loop_header_branch
          %5966 = sbr.rel (%p5964) target = $region106
        $region103: #{moco_forward.1} parent=98 // loop_body
          %v5970 = vld [vmem:[%s5968] sm:$0xff]
          %5971 = vst [vmem:[%s5969] sm:$0xff] %v5970
        $region104: #{moco_forward.1} parent=98 // loop_footer
          %s5967 = sadd.s32 1, %s5963
        $region105: #{moco_forward.1} parent=98 // loop_footer_branch
          %5962 = sbr.rel target = $region101
        $region106: #{moco_forward.1} parent=98 // loop_exit
          _
      $region99: #{moco_forward.1} parent=83 // pred_fallthru
        _
      // Predicated region
      $region107: #{moco_forward.1} parent=83 // pred_check
        _
      $region108: #{moco_forward.1} parent=83 // pred_check_branch
        %5973 = sbr.rel target = $region110
      $region109: #{moco_forward.1} parent=83 // pred_region
        _
      $region110: #{moco_forward.1} parent=83 // pred_fallthru
        _
    $region84: #{moco_forward.1} parent=1 // pred_fallthru
      _
    // Predicated region
    $region85: #{moco_forward.1} parent=1 // pred_check
      _
    $region86: #{moco_forward.1} parent=1 // pred_check_branch
      %5947 = sbr.rel target = $region88
    $region87: #{moco_forward.1} parent=1 // pred_region
      %s5949 = ssub.s32 256, 1
      loop: start=0, step=1, limit=1
      $region89: #{moco_forward.1} parent=87 // loop_pre_header
        _
      $region90: #{moco_forward.1} parent=87 // loop_header
        %s5951 = sphi 0, %s5955
        %p5952 = scmp.ge.s32.totalorder %s5951, 1
        %s5956 = sphi [#allocation3], [#allocation3]
        %s5957 = sphi %s5942, %s5942
      $region91: #{moco_forward.1} parent=87 // loop_header_branch
        %5954 = sbr.rel (%p5952) target = $region95
      $region92: #{moco_forward.1} parent=87 // loop_body
        %v5958 = vld [vmem:[%s5956] sm:%s5949]
        %5959 = vst [vmem:[%s5957] sm:%s5949] %v5958
      $region93: #{moco_forward.1} parent=87 // loop_footer
        %s5955 = sadd.s32 1, %s5951
      $region94: #{moco_forward.1} parent=87 // loop_footer_branch
        %5950 = sbr.rel target = $region90
      $region95: #{moco_forward.1} parent=87 // loop_exit
        _
    $region88: #{moco_forward.1} parent=1 // pred_fallthru
      _
    // Predicated region
    $region111: #{moco_forward.1} parent=1 // pred_check
      _
    $region112: #{moco_forward.1} parent=1 // pred_check_branch
      %5976 = sbr.rel (0) target = $region114
    $region113: #{moco_forward.1} parent=1 // pred_region
      %5977 = vsyncadd %s5943, 128
    $region114: #{moco_forward.1} parent=1 // pred_fallthru
      _
    %s5978 = smul.u32 8, 1
    %s5979 = sshll.u32 %s5978, 4
    %5980 = dma.done %s5943, %s5979
    // Predicated region
    $region115: #{moco_forward.1} parent=1 // pred_check
      _
    $region116: #{moco_forward.1} parent=1 // pred_check_branch
      %5982 = sbr.rel (0) target = $region118
    $region117: #{moco_forward.1} parent=1 // pred_region
      %5984 = vsyncadd [#allocation7], 0
      %s5986 = sshll.u32 [#allocation6], 4
      %s5987 = int_to_ptr.vmem [resolvable:$true] %s5986
      %s5988 = sshll.u32 %s16, 4
      %s5989 = int_to_ptr.hbm [resolvable:$true] %s5988
      %5991 = dma.vmem_to_hbm [thread:$0]  %s5987, 128, %s5989, [#allocation7]
    $region118: #{moco_forward.1} parent=1 // pred_fallthru
      _
    // Predicated region
    $region119: #{moco_forward.1} parent=1 // pred_check
      _
    $region120: #{moco_forward.1} parent=1 // pred_check_branch
      %5993 = sbr.rel (0) target = $region122
    $region121: #{moco_forward.1} parent=1 // pred_region
      %5995 = vsyncadd [#allocation9], 0
      %s5997 = sshll.u32 [#allocation8], 4
      %s5998 = int_to_ptr.vmem [resolvable:$true] %s5997
      %s5999 = sshll.u32 %s17, 4
      %s6000 = int_to_ptr.hbm [resolvable:$true] %s5999
      %6002 = dma.vmem_to_hbm [thread:$0]  %s5998, 128, %s6000, [#allocation9]
    $region122: #{moco_forward.1} parent=1 // pred_fallthru
      _
    // Predicated region
    $region123: #{moco_forward.1} parent=1 // pred_check
      _
    $region124: #{moco_forward.1} parent=1 // pred_check_branch
      %6004 = sbr.rel (0) target = $region126
    $region125: #{moco_forward.1} parent=1 // pred_region
      _
    $region126: #{moco_forward.1} parent=1 // pred_fallthru
      _
    // Predicated region
    $region127: #{moco_forward.1} parent=1 // pred_check
      _
    $region128: #{moco_forward.1} parent=1 // pred_check_branch
      %6006 = sbr.rel (0) target = $region130
    $region129: #{moco_forward.1} parent=1 // pred_region
      _
    $region130: #{moco_forward.1} parent=1 // pred_fallthru
      _
    // Predicated region
    $region131: #{moco_forward.1} parent=1 // pred_check
      _
    $region132: #{moco_forward.1} parent=1 // pred_check_branch
      %6008 = sbr.rel (0) target = $region134
    $region133: #{moco_forward.1} parent=1 // pred_region
      _
    $region134: #{moco_forward.1} parent=1 // pred_fallthru
      _
    // Predicated region
    $region135: #{moco_forward.1} parent=1 // pred_check
      _
    $region136: #{moco_forward.1} parent=1 // pred_check_branch
      %6010 = sbr.rel (0) target = $region138
    $region137: #{moco_forward.1} parent=1 // pred_region
      _
    $region138: #{moco_forward.1} parent=1 // pred_fallthru
      _
    // Predicated region
    $region139: #{moco_forward.1} parent=1 // pred_check
      _
    $region140: #{moco_forward.1} parent=1 // pred_check_branch
      %6012 = sbr.rel (0) target = $region142
    $region141: #{moco_forward.1} parent=1 // pred_region
      _
    $region142: #{moco_forward.1} parent=1 // pred_fallthru
      _
    // Predicated region
    $region143: #{moco_forward.1} parent=1 // pred_check
      _
    $region144: #{moco_forward.1} parent=1 // pred_check_branch
      %6014 = sbr.rel (0) target = $region146
    $region145: #{moco_forward.1} parent=1 // pred_region
      _
    $region146: #{moco_forward.1} parent=1 // pred_fallthru
      _
    // Predicated region
    $region147: #{moco_forward.1} parent=1 // pred_check
      _
    $region148: #{moco_forward.1} parent=1 // pred_check_branch
      %6016 = sbr.rel (0) target = $region150
    $region149: #{moco_forward.1} parent=1 // pred_region
      %6018 = dma.done [#allocation7], 128
    $region150: #{moco_forward.1} parent=1 // pred_fallthru
      _
    // Predicated region
    $region151: #{moco_forward.1} parent=1 // pred_check
      _
    $region152: #{moco_forward.1} parent=1 // pred_check_branch
      %6020 = sbr.rel (0) target = $region154
    $region153: #{moco_forward.1} parent=1 // pred_region
      %6022 = dma.done [#allocation9], 128
    $region154: #{moco_forward.1} parent=1 // pred_fallthru
      _
    // Predicated region
    $region155: #{moco_forward.1} parent=1 // pred_check
      _
    $region156: #{moco_forward.1} parent=1 // pred_check_branch
      %6024 = sbr.rel (0) target = $region158
    $region157: #{moco_forward.1} parent=1 // pred_region
      _
    $region158: #{moco_forward.1} parent=1 // pred_fallthru
      _
    // Predicated region
    $region159: #{moco_forward.1} parent=1 // pred_check
      _
    $region160: #{moco_forward.1} parent=1 // pred_check_branch
      %6026 = sbr.rel (0) target = $region162
    $region161: #{moco_forward.1} parent=1 // pred_region
      _
    $region162: #{moco_forward.1} parent=1 // pred_fallthru
      _
    // Predicated region
    $region163: #{moco_forward.1} parent=1 // pred_check
      _
    $region164: #{moco_forward.1} parent=1 // pred_check_branch
      %6028 = sbr.rel (0) target = $region166
    $region165: #{moco_forward.1} parent=1 // pred_region
      _
    $region166: #{moco_forward.1} parent=1 // pred_fallthru
      _
    // Predicated region
    $region167: #{moco_forward.1} parent=1 // pred_check
      _
    $region168: #{moco_forward.1} parent=1 // pred_check_branch
      %6030 = sbr.rel (0) target = $region170
    $region169: #{moco_forward.1} parent=1 // pred_region
      _
    $region170: #{moco_forward.1} parent=1 // pred_fallthru
      _
    // Predicated region
    $region171: #{moco_forward.1} parent=1 // pred_check
      _
    $region172: #{moco_forward.1} parent=1 // pred_check_branch
      %6032 = sbr.rel (0) target = $region174
    $region173: #{moco_forward.1} parent=1 // pred_region
      _
    $region174: #{moco_forward.1} parent=1 // pred_fallthru
      _
    // Predicated region
    $region175: #{moco_forward.1} parent=1 // pred_check
      _
    $region176: #{moco_forward.1} parent=1 // pred_check_branch
      %6034 = sbr.rel (0) target = $region178
    $region177: #{moco_forward.1} parent=1 // pred_region
      _
    $region178: #{moco_forward.1} parent=1 // pred_fallthru
      _
    %6035 = vsyncpa [#allocation7], 1
    %6036 = vsyncpa [#allocation9], 1
  %6037 = vsyncmov [#allocation4]
  %s6038 = vpop.sfrf %6037
  %p6039 = scmp.eq.s32.totalorder %s6038, 0
  %p6040 = pneg %p6039
  %6042 = shalt.err (%p6040)
  %s6043 = scalar_lea.sflag [#allocation4], 1
  %6044 = vsyncmov %s6043
  %s6045 = vpop.sfrf %6044
  %p6046 = scmp.eq.s32.totalorder %s6045, 0
  %p6047 = pneg %p6046
  %6049 = shalt.err (%p6047)

</llo_original>
